<compile_context>
chip_gen: v5e
topology: v5e:2x2
jax: 0.10.0
libtpu: 0.0.40
codegen_flags: <defaults>
</compile_context>

<pallas_src>
import math
import functools

import jax
import jax.numpy as jnp
from jax.experimental import pallas as pl
from jax.experimental.pallas import tpu as pltpu


# Set to jnp.float32 to recover exact fp32 matmul numerics; bf16 operands with
# f32 accumulation double MXU throughput and halve VMEM pressure on v6e/v7x.
MATMUL_COMPUTE_DTYPE = jnp.bfloat16

# Tile preferences (multiples of (8, 128)); full-dim blocks are used when the
# dimension is smaller, so small/toy shapes never trigger padding.
_TM, _TN, _TK = 256, 256, 512


def _round_up(x, m):
    return ((x + m - 1) // m) * m


# ----------------------------- tiled matmul kernel -----------------------------

def _matmul_kernel(x_ref, w_ref, b_ref, o_ref, acc_ref, *, activation):
    @pl.when(pl.program_id(2) == 0)
    def _init():
        acc_ref[...] = jnp.zeros_like(acc_ref)

    cdtype = MATMUL_COMPUTE_DTYPE
    acc_ref[...] += jnp.dot(x_ref[...].astype(cdtype), w_ref[...].astype(cdtype),
                            preferred_element_type=jnp.float32)

    @pl.when(pl.program_id(2) == pl.num_programs(2) - 1)
    def _finalize():
        out = acc_ref[...] + b_ref[...]
        if activation == "relu":
            out = jnp.maximum(out, 0.0)
        o_ref[...] = out.astype(o_ref.dtype)


def pallas_matmul(x, w, b=None, activation=None, out_dtype=jnp.float32):
    """[M, K] @ [K, N] with fused bias + optional ReLU; f32 accumulation."""
    M, K = x.shape
    Kw, N = w.shape
    assert K == Kw
    if b is None:
        b = jnp.zeros((N,), jnp.float32)
    b = b.astype(jnp.float32).reshape(1, N)

    tm = M if M <= _TM else _TM
    tn = N if N <= _TN else _TN
    tk = K if K <= _TK else _TK
    Mp, Np, Kp = _round_up(M, tm), _round_up(N, tn), _round_up(K, tk)
    if (Mp, Kp) != (M, K):
        x = jnp.pad(x, ((0, Mp - M), (0, Kp - K)))
    if (Kp, Np) != (K, N):
        w = jnp.pad(w, ((0, Kp - K), (0, Np - N)))
    if Np != N:
        b = jnp.pad(b, ((0, 0), (0, Np - N)))

    out = pl.pallas_call(
        functools.partial(_matmul_kernel, activation=activation),
        grid=(Mp // tm, Np // tn, Kp // tk),
        in_specs=[
            pl.BlockSpec((tm, tk), lambda i, j, k: (i, k)),
            pl.BlockSpec((tk, tn), lambda i, j, k: (k, j)),
            pl.BlockSpec((1, tn), lambda i, j, k: (0, j)),
        ],
        out_specs=pl.BlockSpec((tm, tn), lambda i, j, k: (i, j)),
        out_shape=jax.ShapeDtypeStruct((Mp, Np), out_dtype),
        scratch_shapes=[pltpu.VMEM((tm, tn), jnp.float32)],
        compiler_params=pltpu.CompilerParams(
            dimension_semantics=("parallel", "parallel", "arbitrary")),
    )(x, w, b)
    if (Mp, Np) != (M, N):
        out = out[:M, :N]
    return out


def linear(x, w, b=None, activation=None):
    lead = x.shape[:-1]
    out = pallas_matmul(x.reshape(-1, x.shape[-1]), w, b, activation)
    return out.reshape(lead + (w.shape[1],))


# ----------------------------- fused FFN (conv1 + ReLU + conv2) -----------------------------

def _ffn_kernel(x_ref, w1_ref, w2_ref, o_ref, h_ref):
    cdtype = MATMUL_COMPUTE_DTYPE
    h = jnp.dot(x_ref[...].astype(cdtype), w1_ref[...].astype(cdtype),
                preferred_element_type=jnp.float32)
    h_ref[...] = jnp.maximum(h, 0.0).astype(h_ref.dtype)  # d_ff activation stays in VMEM
    o_ref[...] = jnp.dot(h_ref[...], w2_ref[...].astype(cdtype),
                         preferred_element_type=jnp.float32).astype(o_ref.dtype)


def pallas_ffn(x2d, w1, w2):
    """relu(x @ w1) @ w2 with no HBM round-trip for the [M, d_ff] intermediate."""
    M, dm = x2d.shape
    dff = w1.shape[1]
    if 2 * dm * dff * 4 > 8 * 1024 * 1024:
        # Weights too large to keep fully VMEM-resident: fall back to two tiled matmuls.
        h = pallas_matmul(x2d, w1, activation="relu")
        return pallas_matmul(h, w2)

    tm = M if M <= _TM else _TM
    Mp = _round_up(M, tm)
    if Mp != M:
        x2d = jnp.pad(x2d, ((0, Mp - M), (0, 0)))

    out = pl.pallas_call(
        _ffn_kernel,
        grid=(Mp // tm,),
        in_specs=[
            pl.BlockSpec((tm, dm), lambda i: (i, 0)),
            pl.BlockSpec((dm, dff), lambda i: (0, 0)),
            pl.BlockSpec((dff, dm), lambda i: (0, 0)),
        ],
        out_specs=pl.BlockSpec((tm, dm), lambda i: (i, 0)),
        out_shape=jax.ShapeDtypeStruct((Mp, dm), jnp.float32),
        scratch_shapes=[pltpu.VMEM((tm, dff), MATMUL_COMPUTE_DTYPE)],
        compiler_params=pltpu.CompilerParams(dimension_semantics=("parallel",)),
    )(x2d, w1, w2)
    return out[:M] if Mp != M else out


def ffn(x, w1, w2):
    B, L, dm = x.shape
    return pallas_ffn(x.reshape(B * L, dm), w1, w2).reshape(B, L, dm)


# ----------------------------- circular conv (kernel=3), fused input sum -----------------------------

def _cconv3_kernel(*args, n_in):
    x_refs, w_ref, o_ref = args[:n_in], args[n_in], args[n_in + 1]
    x = x_refs[0][...][0]                                   # (L, Cin), f32 sum in VMEM
    for r in x_refs[1:]:
        x = x + r[...][0]
    x = x.astype(MATMUL_COMPUTE_DTYPE)
    L, cin = x.shape
    w = w_ref[...].astype(MATMUL_COMPUTE_DTYPE)             # (3*Cin, Cout)
    xm1 = jnp.concatenate([x[L - 1:, :], x[:L - 1, :]], axis=0)   # x[l-1], circular
    xp1 = jnp.concatenate([x[1:, :], x[:1, :]], axis=0)           # x[l+1], circular
    acc = jnp.dot(xm1, w[:cin], preferred_element_type=jnp.float32)
    acc = acc + jnp.dot(x, w[cin:2 * cin], preferred_element_type=jnp.float32)
    acc = acc + jnp.dot(xp1, w[2 * cin:], preferred_element_type=jnp.float32)
    o_ref[...] = acc[None].astype(o_ref.dtype)


def circular_conv3(xs, w_mat):
    """Conv1d(kernel=3, padding=1, padding_mode='circular', bias=False) applied to
    sum(xs), all on the VMEM tile (no padded/summed HBM intermediates)."""
    if not isinstance(xs, (list, tuple)):
        xs = [xs]
    B, L, cin = xs[0].shape
    cout = w_mat.shape[1]
    in_specs = [pl.BlockSpec((1, L, cin), lambda b: (b, 0, 0)) for _ in xs]
    in_specs.append(pl.BlockSpec((3 * cin, cout), lambda b: (0, 0)))
    return pl.pallas_call(
        functools.partial(_cconv3_kernel, n_in=len(xs)),
        grid=(B,),
        in_specs=in_specs,
        out_specs=pl.BlockSpec((1, L, cout), lambda b: (b, 0, 0)),
        out_shape=jax.ShapeDtypeStruct((B, L, cout), jnp.float32),
        compiler_params=pltpu.CompilerParams(dimension_semantics=("parallel",)),
    )(*(list(xs) + [w_mat]))


# ----------------------------- fused DataEmbedding_wo_pos -----------------------------

def _embed_kernel(x_ref, mark_ref, wtok_ref, wmark_ref, o_ref):
    cdtype = MATMUL_COMPUTE_DTYPE
    x = x_ref[...][0].astype(cdtype)                        # (L, c_in)
    L, cin = x.shape
    w = wtok_ref[...].astype(cdtype)                        # (3*c_in, d_model)
    xm1 = jnp.concatenate([x[L - 1:, :], x[:L - 1, :]], axis=0)
    xp1 = jnp.concatenate([x[1:, :], x[:1, :]], axis=0)
    acc = jnp.dot(xm1, w[:cin], preferred_element_type=jnp.float32)
    acc = acc + jnp.dot(x, w[cin:2 * cin], preferred_element_type=jnp.float32)
    acc = acc + jnp.dot(xp1, w[2 * cin:], preferred_element_type=jnp.float32)
    acc = acc + jnp.dot(mark_ref[...][0].astype(cdtype), wmark_ref[...].astype(cdtype),
                        preferred_element_type=jnp.float32)
    o_ref[...] = acc[None].astype(o_ref.dtype)


def data_embedding_wo_pos(p, x, x_mark):
    """TokenEmbedding (circular conv3, no bias) + TimeFeatureEmbedding (linear, no bias),
    summed in one kernel (the [B, L, d_model] partial never hits HBM)."""
    B, L, cin = x.shape
    mdim = x_mark.shape[-1]
    d_model = p["mark_w"].shape[1]
    return pl.pallas_call(
        _embed_kernel,
        grid=(B,),
        in_specs=[pl.BlockSpec((1, L, cin), lambda b: (b, 0, 0)),
                  pl.BlockSpec((1, L, mdim), lambda b: (b, 0, 0)),
                  pl.BlockSpec((3 * cin, d_model), lambda b: (0, 0)),
                  pl.BlockSpec((mdim, d_model), lambda b: (0, 0))],
        out_specs=pl.BlockSpec((1, L, d_model), lambda b: (b, 0, 0)),
        out_shape=jax.ShapeDtypeStruct((B, L, d_model), jnp.float32),
        compiler_params=pltpu.CompilerParams(dimension_semantics=("parallel",)),
    )(x, x_mark, p["token_w"], p["mark_w"])


# ----------------------------- series decomposition (with fused residual add) -----------------------------

def _moving_avg_decomp(x, *, k, L, pad):
    D = x.shape[-1]
    if pad > 0:
        front = jnp.broadcast_to(x[:, :1, :], (1, pad, D))
        end = jnp.broadcast_to(x[:, L - 1:L, :], (1, pad, D))
        xpad = jnp.concatenate([front, x, end], axis=1)     # edge-replicate, VMEM only
    else:
        xpad = x
    acc = xpad[:, 0:L, :]
    # TODO(synk): a cumsum prefix-sum would be O(1) adds/element, but the op is
    # HBM-bound and k<=25, so the unrolled VALU adds are essentially filler.
    for j in range(1, k):
        acc = acc + xpad[:, j:j + L, :]
    trend = acc * (1.0 / k)
    return x - trend, trend


def _decomp_kernel(x_ref, res_ref, trend_ref, *, k, L, pad):
    res, trend = _moving_avg_decomp(x_ref[...], k=k, L=L, pad=pad)
    res_ref[...] = res.astype(res_ref.dtype)
    trend_ref[...] = trend.astype(trend_ref.dtype)


def _decomp_add_kernel(x_ref, y_ref, res_ref, trend_ref, *, k, L, pad):
    res, trend = _moving_avg_decomp(x_ref[...] + y_ref[...], k=k, L=L, pad=pad)
    res_ref[...] = res.astype(res_ref.dtype)
    trend_ref[...] = trend.astype(trend_ref.dtype)


def series_decomp(x, k, add=None):
    """series_decomp(x [+ add]): edge-replicated padding + AvgPool1d(k, stride=1);
    res = (x+add) - trend.  The residual add (if any) is fused into the kernel."""
    assert k % 2 == 1, "series_decomp requires odd moving_avg (PyTorch diverges for even k)"
    B, L, D = x.shape
    pad = (k - 1) // 2
    spec = pl.BlockSpec((1, L, D), lambda b: (b, 0, 0))
    if add is None:
        kern = functools.partial(_decomp_kernel, k=k, L=L, pad=pad)
        in_specs, args = [spec], (x,)
    else:
        kern = functools.partial(_decomp_add_kernel, k=k, L=L, pad=pad)
        in_specs, args = [spec, spec], (x, add.astype(x.dtype))
    return pl.pallas_call(
        kern,
        grid=(B,),
        in_specs=in_specs,
        out_specs=(spec, spec),
        out_shape=(jax.ShapeDtypeStruct((B, L, D), x.dtype),
                   jax.ShapeDtypeStruct((B, L, D), x.dtype)),
        compiler_params=pltpu.CompilerParams(dimension_semantics=("parallel",)),
    )(*args)


# ----------------------------- my_Layernorm (optionally fused with output projection) -----------------------------

def _my_layernorm_core(x, w, b):
    mean = jnp.mean(x, axis=-1, keepdims=True)
    var = jnp.mean(jnp.square(x - mean), axis=-1, keepdims=True)
    xhat = (x - mean) * jax.lax.rsqrt(var + 1e-5) * w + b
    return xhat - jnp.mean(xhat, axis=1, keepdims=True)       # my_Layernorm bias removal


def _my_layernorm_kernel(x_ref, w_ref, b_ref, o_ref):
    o_ref[...] = _my_layernorm_core(x_ref[...], w_ref[...], b_ref[...]).astype(o_ref.dtype)


def _my_layernorm_proj_kernel(x_ref, w_ref, b_ref, pw_ref, pb_ref, o_ref):
    xn = _my_layernorm_core(x_ref[...], w_ref[...], b_ref[...])   # (1, L, D)
    out = jnp.dot(xn[0], pw_ref[...], preferred_element_type=jnp.float32) + pb_ref[...]
    o_ref[...] = out[None].astype(o_ref.dtype)


def my_layernorm(x, w, b, proj_w=None, proj_b=None):
    B, L, D = x.shape
    w2, b2 = w.reshape(1, D), b.reshape(1, D)
    in_specs = [pl.BlockSpec((1, L, D), lambda i: (i, 0, 0)),
                pl.BlockSpec((1, D), lambda i: (0, 0)),
                pl.BlockSpec((1, D), lambda i: (0, 0))]
    cp = pltpu.CompilerParams(dimension_semantics=("parallel",))
    if proj_w is None:
        return pl.pallas_call(
            _my_layernorm_kernel, grid=(B,), in_specs=in_specs,
            out_specs=pl.BlockSpec((1, L, D), lambda i: (i, 0, 0)),
            out_shape=jax.ShapeDtypeStruct((B, L, D), x.dtype),
            compiler_params=cp,
        )(x, w2, b2)
    c_out = proj_w.shape[1]
    in_specs += [pl.BlockSpec((D, c_out), lambda i: (0, 0)),
                 pl.BlockSpec((1, c_out), lambda i: (0, 0))]
    return pl.pallas_call(
        _my_layernorm_proj_kernel, grid=(B,), in_specs=in_specs,
        out_specs=pl.BlockSpec((1, L, c_out), lambda i: (i, 0, 0)),
        out_shape=jax.ShapeDtypeStruct((B, L, c_out), x.dtype),
        compiler_params=cp,
    )(x, w2, b2, proj_w, proj_b.reshape(1, c_out))


# ----------------------------- delay aggregation (batched mixing matmul) -----------------------------

def _bmm_kernel(a_ref, m_ref, o_ref):
    a = a_ref[...][0]                        # (P, L)
    m = m_ref[...][0]                        # (L, Lo)
    o_ref[...] = jnp.dot(a, m, preferred_element_type=jnp.float32)[None].astype(o_ref.dtype)


def pallas_bmm(a, m):
    """Per-batch matmul a[b] @ m[b]: [B, P, L] x [B, L, Lo] -> [B, P, Lo]."""
    B, P, L = a.shape
    Lo = m.shape[-1]
    return pl.pallas_call(
        _bmm_kernel,
        grid=(B,),
        in_specs=[pl.BlockSpec((1, P, L), lambda b: (b, 0, 0)),
                  pl.BlockSpec((1, L, Lo), lambda b: (b, 0, 0))],
        out_specs=pl.BlockSpec((1, P, Lo), lambda b: (b, 0, 0)),
        out_shape=jax.ShapeDtypeStruct((B, P, Lo), jnp.float32),
        compiler_params=pltpu.CompilerParams(dimension_semantics=("parallel",)),
    )(a, m)


def time_delay_agg_inference(values, corr, factor):
    # values: [B, H, D, L], corr: [B, H, E, L]
    B, H, D, L = values.shape
    top_k = min(L, max(1, int(factor * math.log(L))))
    mean_value = jnp.mean(corr, axis=(1, 2))               # [B, L]
    weights, delay = jax.lax.top_k(mean_value, top_k)      # [B, top_k]
    tmp_corr = jax.nn.softmax(weights, axis=-1)
    # Recast the top-k rolled gather-accumulate as one circulant mixing matmul:
    #   agg[b, :, l] = sum_i w_i * values[b, :, (l + d_i) mod L]
    #               = sum_s values[b, :, s] * mix[b, s, l]
    dst = jnp.arange(L, dtype=jnp.int32)
    src = (dst[None, None, :] + delay[:, :, None]) % L                       # [B, k, L]
    onehot = (src[:, :, None, :] == dst[None, None, :, None]).astype(values.dtype)
    mix = jnp.einsum('bk,bksl->bsl', tmp_corr.astype(values.dtype), onehot)  # [B, L, L]
    agg = pallas_bmm(values.reshape(B, H * D, L), mix)                       # reads values once
    return agg.reshape(B, H, D, L)


def auto_correlation(q, k, v, factor):
    B, L, H, E = q.shape
    _, S, _, D = v.shape
    if L > S:
        z = jnp.zeros((B, L - S, H, D), q.dtype)
        v = jnp.concatenate([v, z], axis=1)
        k = jnp.concatenate([k, z], axis=1)
    else:
        v = v[:, :L]
        k = k[:, :L]
    qp = jnp.transpose(q, (0, 2, 3, 1))                    # [B,H,E,L]
    kp = jnp.transpose(k, (0, 2, 3, 1))
    # TODO(synk): rfft/irfft + top_k have no clean Pallas TPU equivalent; kept in XLA.
    corr = jnp.fft.irfft(
        jnp.fft.rfft(qp, axis=-1) * jnp.conj(jnp.fft.rfft(kp, axis=-1)),
        n=L, axis=-1)                                      # [B,H,E,L]
    vp = jnp.transpose(v, (0, 2, 3, 1))                    # [B,H,D,L]
    agg = time_delay_agg_inference(vp, corr, factor)
    return jnp.transpose(agg, (0, 3, 1, 2))                # [B,L,H,D]


def auto_correlation_layer(p, queries, keys, values, n_heads, factor, *, self_attn):
    B, L, d_model = queries.shape
    _, S, _ = keys.shape
    if self_attn:
        qkv = linear(queries, p["wqkv"], p["bqkv"])        # fused Q/K/V projection
        q, k, v = jnp.split(qkv, 3, axis=-1)
    else:
        q = linear(queries, p["wqkv"][:, :d_model], p["bqkv"][:d_model])
        kv = linear(keys, p["wqkv"][:, d_model:], p["bqkv"][d_model:])   # fused K/V
        k, v = jnp.split(kv, 2, axis=-1)
    q = q.reshape(B, L, n_heads, -1)
    k = k.reshape(B, S, n_heads, -1)
    v = v.reshape(B, S, n_heads, -1)
    out = auto_correlation(q, k, v, factor).reshape(B, L, -1)
    return linear(out, p["wo"], p["bo"])


# ----------------------------- encoder / decoder -----------------------------

def encoder_layer(p, x, moving_avg, n_heads, factor):
    new_x = auto_correlation_layer(p["attn"], x, x, x, n_heads, factor, self_attn=True)
    x, _ = series_decomp(x, moving_avg, add=new_x)          # fused residual add + decomp
    y = ffn(x, p["conv1_w"], p["conv2_w"])                  # fused conv1+ReLU+conv2
    res, _ = series_decomp(x, moving_avg, add=y)
    return res


def encoder_fwd(p, x, moving_avg, n_heads, factor):
    for lp in p["layers"]:
        x = encoder_layer(lp, x, moving_avg, n_heads, factor)
    return my_layernorm(x, p["norm_w"], p["norm_b"])


def decoder_layer(p, x, cross, moving_avg, n_heads, factor):
    sa = auto_correlation_layer(p["self_attn"], x, x, x, n_heads, factor, self_attn=True)
    x, trend1 = series_decomp(x, moving_avg, add=sa)
    ca = auto_correlation_layer(p["cross_attn"], x, cross, cross, n_heads, factor,
                                self_attn=False)
    x, trend2 = series_decomp(x, moving_avg, add=ca)
    y = ffn(x, p["conv1_w"], p["conv2_w"])
    x, trend3 = series_decomp(x, moving_avg, add=y)
    # trend1+trend2+trend3 summed inside the circular-conv kernel (no HBM sum pass).
    residual_trend = circular_conv3([trend1, trend2, trend3], p["proj_w"])
    return x, residual_trend


def decoder_fwd(p, x, cross, trend, moving_avg, n_heads, factor):
    for lp in p["layers"]:
        x, residual_trend = decoder_layer(lp, x, cross, moving_avg, n_heads, factor)
        trend = trend + residual_trend
    # my_Layernorm fused with the final Linear(d_model, c_out, bias=True).
    x = my_layernorm(x, p["norm_w"], p["norm_b"], proj_w=p["proj_w"], proj_b=p["proj_b"])
    return x, trend


def model_forward(params, x_enc, x_mark_enc, x_dec, x_mark_dec, cfg):
    pred_len = cfg["pred_len"]
    label_len = cfg["label_len"]
    moving_avg = cfg["moving_avg"]
    n_heads = cfg["n_heads"]
    factor = cfg["factor"]

    mean = jnp.repeat(jnp.mean(x_enc, axis=1, keepdims=True), pred_len, axis=1)
    zeros = jnp.zeros((x_dec.shape[0], pred_len, x_dec.shape[2]), x_enc.dtype)
    seasonal_init, trend_init = series_decomp(x_enc, moving_avg)
    trend_init = jnp.concatenate([trend_init[:, -label_len:, :], mean], axis=1)
    seasonal_init = jnp.concatenate([seasonal_init[:, -label_len:, :], zeros], axis=1)

    enc_out = data_embedding_wo_pos(params["enc_embed"], x_enc, x_mark_enc)
    enc_out = encoder_fwd(params["encoder"], enc_out, moving_avg, n_heads, factor)

    dec_out = data_embedding_wo_pos(params["dec_embed"], seasonal_init, x_mark_dec)
    seasonal_part, trend_part = decoder_fwd(
        params["decoder"], dec_out, enc_out, trend_init, moving_avg, n_heads, factor)

    dec_out = trend_part + seasonal_part
    return dec_out[:, -pred_len:, :]


# ----------------------------- parameter init -----------------------------

def init_params(key, cfg):
    d_model, d_ff = cfg["d_model"], cfg["d_ff"]
    enc_in, dec_in, c_out = cfg["enc_in"], cfg["dec_in"], cfg["c_out"]
    mark_dim = cfg["mark_dim"]
    keys = iter(jax.random.split(key, 128))

    def w(*shape):
        return 0.02 * jax.random.normal(next(keys), shape, jnp.float32)

    def attn_params():
        return {"wqkv": w(d_model, 3 * d_model), "bqkv": w(3 * d_model),
                "wo": w(d_model, d_model), "bo": w(d_model)}

    def enc_layer():
        return {"attn": attn_params(),
                "conv1_w": w(d_model, d_ff), "conv2_w": w(d_ff, d_model)}

    def dec_layer():
        return {"self_attn": attn_params(), "cross_attn": attn_params(),
                "conv1_w": w(d_model, d_ff), "conv2_w": w(d_ff, d_model),
                "proj_w": w(3 * d_model, c_out)}

    return {
        "enc_embed": {"token_w": w(3 * enc_in, d_model), "mark_w": w(mark_dim, d_model)},
        "dec_embed": {"token_w": w(3 * dec_in, d_model), "mark_w": w(mark_dim, d_model)},
        "encoder": {"layers": [enc_layer() for _ in range(cfg["e_layers"])],
                    "norm_w": jnp.ones((d_model,), jnp.float32),
                    "norm_b": jnp.zeros((d_model,), jnp.float32)},
        "decoder": {"layers": [dec_layer() for _ in range(cfg["d_layers"])],
                    "norm_w": jnp.ones((d_model,), jnp.float32),
                    "norm_b": jnp.zeros((d_model,), jnp.float32),
                    "proj_w": w(d_model, c_out), "proj_b": w(c_out)},
    }


# ----------------------------- main -----------------------------

if __name__ == "__main__":
    cfg = dict(seq_len=16, label_len=8, pred_len=8,
               enc_in=4, dec_in=4, c_out=4,
               d_model=32, d_ff=32, n_heads=4,
               e_layers=1, d_layers=1,
               moving_avg=5, factor=1, mark_dim=4)

    key = jax.random.PRNGKey(0)
    kp, k1, k2, k3, k4 = jax.random.split(key, 5)
    params = init_params(kp, cfg)

    B = 2
    dec_len = cfg["label_len"] + cfg["pred_len"]
    x_enc = jax.random.normal(k1, (B, cfg["seq_len"], cfg["enc_in"]), jnp.float32)
    x_mark_enc = jax.random.normal(k2, (B, cfg["seq_len"], cfg["mark_dim"]), jnp.float32)
    x_dec = jax.random.normal(k3, (B, dec_len, cfg["dec_in"]), jnp.float32)
    x_mark_dec = jax.random.normal(k4, (B, dec_len, cfg["mark_dim"]), jnp.float32)

    fwd = jax.jit(functools.partial(model_forward, cfg=cfg))
    out = fwd(params, x_enc, x_mark_enc, x_dec, x_mark_dec)
    out = jax.block_until_ready(out)

    assert out.shape == (B, cfg["pred_len"], cfg["c_out"]), out.shape
    assert bool(jnp.all(jnp.isfinite(out)))
    print("KERNEL_OK")
</pallas_src>

<mosaic_0001>
module attributes {stable_mosaic.version = 11 : i64} {
  func.func @_decomp_kernel(%arg0: i32, %arg1: memref<1x16x4xf32, #tpu.memory_space<vmem>>, %arg2: memref<1x16x4xf32, #tpu.memory_space<vmem>>, %arg3: memref<1x16x4xf32, #tpu.memory_space<vmem>>) attributes {dimension_semantics = [#tpu.dimension_semantics<parallel>], iteration_bounds = array<i64: 2>, scalar_prefetch = 0 : i64, scratch_operands = 0 : i64, tpu.core_type = #tpu.core_type<tc>, window_params = [{transform_indices = @transform_0, window_bounds = array<i64: 1, 16, 4>}, {transform_indices = @transform_1, window_bounds = array<i64: 1, 16, 4>}, {transform_indices = @transform_2, window_bounds = array<i64: 1, 16, 4>}]} {
    %c0 = arith.constant 0 : index
    %c0_0 = arith.constant 0 : index
    %c0_1 = arith.constant 0 : index
    %0 = vector.load %arg1[%c0, %c0_0, %c0_1] : memref<1x16x4xf32, #tpu.memory_space<vmem>>, vector<1x16x4xf32>
    %1 = vector.extract_strided_slice %0 {offsets = [0, 0, 0], sizes = [1, 1, 4], strides = [1, 1, 1]} : vector<1x16x4xf32> to vector<1x1x4xf32>
    %2 = vector.shape_cast %1 : vector<1x1x4xf32> to vector<1x1x4xf32>
    %3 = vector.broadcast %2 : vector<1x1x4xf32> to vector<1x2x4xf32>
    %4 = vector.extract_strided_slice %0 {offsets = [0, 15, 0], sizes = [1, 1, 4], strides = [1, 1, 1]} : vector<1x16x4xf32> to vector<1x1x4xf32>
    %5 = vector.shape_cast %4 : vector<1x1x4xf32> to vector<1x1x4xf32>
    %6 = vector.broadcast %5 : vector<1x1x4xf32> to vector<1x2x4xf32>
    %7 = tpu.concatenate %3, %0, %6 in 1 : vector<1x2x4xf32>, vector<1x16x4xf32>, vector<1x2x4xf32> -> vector<1x20x4xf32>
    %8 = vector.extract_strided_slice %7 {offsets = [0, 0, 0], sizes = [1, 16, 4], strides = [1, 1, 1]} : vector<1x20x4xf32> to vector<1x16x4xf32>
    %9 = vector.extract_strided_slice %7 {offsets = [0, 1, 0], sizes = [1, 16, 4], strides = [1, 1, 1]} : vector<1x20x4xf32> to vector<1x16x4xf32>
    %10 = arith.addf %8, %9 : vector<1x16x4xf32>
    %11 = vector.extract_strided_slice %7 {offsets = [0, 2, 0], sizes = [1, 16, 4], strides = [1, 1, 1]} : vector<1x20x4xf32> to vector<1x16x4xf32>
    %12 = arith.addf %10, %11 : vector<1x16x4xf32>
    %13 = vector.extract_strided_slice %7 {offsets = [0, 3, 0], sizes = [1, 16, 4], strides = [1, 1, 1]} : vector<1x20x4xf32> to vector<1x16x4xf32>
    %14 = arith.addf %12, %13 : vector<1x16x4xf32>
    %15 = vector.extract_strided_slice %7 {offsets = [0, 4, 0], sizes = [1, 16, 4], strides = [1, 1, 1]} : vector<1x20x4xf32> to vector<1x16x4xf32>
    %16 = arith.addf %14, %15 : vector<1x16x4xf32>
    %cst = arith.constant 2.000000e-01 : f32
    %17 = vector.broadcast %cst : f32 to vector<1x16x4xf32>
    %18 = arith.mulf %16, %17 : vector<1x16x4xf32>
    %19 = arith.subf %0, %18 : vector<1x16x4xf32>
    %c0_2 = arith.constant 0 : index
    %c0_3 = arith.constant 0 : index
    %c0_4 = arith.constant 0 : index
    %20 = vector.load %arg2[%c0_2, %c0_3, %c0_4] : memref<1x16x4xf32, #tpu.memory_space<vmem>>, vector<1x16x4xf32>
    tpu.vector_store %arg2[%c0_2, %c0_3, %c0_4], %19 {strides = array<i32>} : memref<1x16x4xf32, #tpu.memory_space<vmem>>, vector<1x16x4xf32>,
    %c0_5 = arith.constant 0 : index
    %c0_6 = arith.constant 0 : index
    %c0_7 = arith.constant 0 : index
    %21 = vector.load %arg3[%c0_5, %c0_6, %c0_7] : memref<1x16x4xf32, #tpu.memory_space<vmem>>, vector<1x16x4xf32>
    tpu.vector_store %arg3[%c0_5, %c0_6, %c0_7], %18 {strides = array<i32>} : memref<1x16x4xf32, #tpu.memory_space<vmem>>, vector<1x16x4xf32>,
    return
  }
  func.func @transform_0(%arg0: i32) -> (i32, i32, i32) {
    %c0_i32 = arith.constant 0 : i32
    %c0_i32_0 = arith.constant 0 : i32
    %c0_i32_1 = arith.constant 0 : i32
    return %arg0, %c0_i32, %c0_i32_0 : i32, i32, i32
  }
  func.func @transform_1(%arg0: i32) -> (i32, i32, i32) {
    %c0_i32 = arith.constant 0 : i32
    %c0_i32_0 = arith.constant 0 : i32
    %c0_i32_1 = arith.constant 0 : i32
    return %arg0, %c0_i32, %c0_i32_0 : i32, i32, i32
  }
  func.func @transform_2(%arg0: i32) -> (i32, i32, i32) {
    %c0_i32 = arith.constant 0 : i32
    %c0_i32_0 = arith.constant 0 : i32
    %c0_i32_1 = arith.constant 0 : i32
    return %arg0, %c0_i32, %c0_i32_0 : i32, i32, i32
  }
}

module attributes {stable_mosaic.version = 11 : i64} {
  func.func @_embed_kernel(%arg0: i32, %arg1: memref<1x16x4xf32, #tpu.memory_space<vmem>>, %arg2: memref<1x16x4xf32, #tpu.memory_space<vmem>>, %arg3: memref<12x32xf32, #tpu.memory_space<vmem>>, %arg4: memref<4x32xf32, #tpu.memory_space<vmem>>, %arg5: memref<1x16x32xf32, #tpu.memory_space<vmem>>) attributes {dimension_semantics = [#tpu.dimension_semantics<parallel>], iteration_bounds = array<i64: 2>, scalar_prefetch = 0 : i64, scratch_operands = 0 : i64, tpu.core_type = #tpu.core_type<tc>, window_params = [{transform_indices = @transform_0, window_bounds = array<i64: 1, 16, 4>}, {transform_indices = @transform_1, window_bounds = array<i64: 1, 16, 4>}, {pipeline_mode = #tpu.pipeline_mode<synchronous>, transform_indices = @transform_2, window_bounds = array<i64: 12, 32>}, {pipeline_mode = #tpu.pipeline_mode<synchronous>, transform_indices = @transform_3, window_bounds = array<i64: 4, 32>}, {transform_indices = @transform_4, window_bounds = array<i64: 1, 16, 32>}]} {
    %c0 = arith.constant 0 : index
    %c0_0 = arith.constant 0 : index
    %c0_1 = arith.constant 0 : index
    %0 = vector.load %arg1[%c0, %c0_0, %c0_1] : memref<1x16x4xf32, #tpu.memory_space<vmem>>, vector<1x16x4xf32>
    %1 = vector.shape_cast %0 : vector<1x16x4xf32> to vector<16x4xf32>
    %2 = arith.truncf %1 : vector<16x4xf32> to vector<16x4xbf16>
    %c0_2 = arith.constant 0 : index
    %c0_3 = arith.constant 0 : index
    %3 = vector.load %arg3[%c0_2, %c0_3] : memref<12x32xf32, #tpu.memory_space<vmem>>, vector<12x32xf32>
    %4 = arith.truncf %3 : vector<12x32xf32> to vector<12x32xbf16>
    %5 = vector.extract_strided_slice %2 {offsets = [15, 0], sizes = [1, 4], strides = [1, 1]} : vector<16x4xbf16> to vector<1x4xbf16>
    %6 = vector.extract_strided_slice %2 {offsets = [0, 0], sizes = [15, 4], strides = [1, 1]} : vector<16x4xbf16> to vector<15x4xbf16>
    %7 = tpu.concatenate %5, %6 in 0 : vector<1x4xbf16>, vector<15x4xbf16> -> vector<16x4xbf16>
    %8 = vector.extract_strided_slice %2 {offsets = [1, 0], sizes = [15, 4], strides = [1, 1]} : vector<16x4xbf16> to vector<15x4xbf16>
    %9 = vector.extract_strided_slice %2 {offsets = [0, 0], sizes = [1, 4], strides = [1, 1]} : vector<16x4xbf16> to vector<1x4xbf16>
    %10 = tpu.concatenate %8, %9 in 0 : vector<15x4xbf16>, vector<1x4xbf16> -> vector<16x4xbf16>
    %11 = vector.extract_strided_slice %4 {offsets = [0, 0], sizes = [4, 32], strides = [1, 1]} : vector<12x32xbf16> to vector<4x32xbf16>
    %cst = arith.constant dense<0.000000e+00> : vector<16x32xf32>
    %12 = tpu.matmul %7, %11, %cst {dimension_numbers = #tpu.dot_dimension_numbers<[1], [0], [0], [1], [0, 0, 1, 1], [], []>} : vector<16x4xbf16>, vector<4x32xbf16>, vector<16x32xf32> -> vector<16x32xf32>
    %13 = vector.extract_strided_slice %4 {offsets = [4, 0], sizes = [4, 32], strides = [1, 1]} : vector<12x32xbf16> to vector<4x32xbf16>
    %cst_4 = arith.constant dense<0.000000e+00> : vector<16x32xf32>
    %14 = tpu.matmul %2, %13, %cst_4 {dimension_numbers = #tpu.dot_dimension_numbers<[1], [0], [0], [1], [0, 0, 1, 1], [], []>} : vector<16x4xbf16>, vector<4x32xbf16>, vector<16x32xf32> -> vector<16x32xf32>
    %15 = arith.addf %12, %14 : vector<16x32xf32>
    %16 = vector.extract_strided_slice %4 {offsets = [8, 0], sizes = [4, 32], strides = [1, 1]} : vector<12x32xbf16> to vector<4x32xbf16>
    %cst_5 = arith.constant dense<0.000000e+00> : vector<16x32xf32>
    %17 = tpu.matmul %10, %16, %cst_5 {dimension_numbers = #tpu.dot_dimension_numbers<[1], [0], [0], [1], [0, 0, 1, 1], [], []>} : vector<16x4xbf16>, vector<4x32xbf16>, vector<16x32xf32> -> vector<16x32xf32>
    %18 = arith.addf %15, %17 : vector<16x32xf32>
    %c0_6 = arith.constant 0 : index
    %c0_7 = arith.constant 0 : index
    %c0_8 = arith.constant 0 : index
    %19 = vector.load %arg2[%c0_6, %c0_7, %c0_8] : memref<1x16x4xf32, #tpu.memory_space<vmem>>, vector<1x16x4xf32>
    %20 = vector.shape_cast %19 : vector<1x16x4xf32> to vector<16x4xf32>
    %21 = arith.truncf %20 : vector<16x4xf32> to vector<16x4xbf16>
    %c0_9 = arith.constant 0 : index
    %c0_10 = arith.constant 0 : index
    %22 = vector.load %arg4[%c0_9, %c0_10] : memref<4x32xf32, #tpu.memory_space<vmem>>, vector<4x32xf32>
    %23 = arith.truncf %22 : vector<4x32xf32> to vector<4x32xbf16>
    %cst_11 = arith.constant dense<0.000000e+00> : vector<16x32xf32>
    %24 = tpu.matmul %21, %23, %cst_11 {dimension_numbers = #tpu.dot_dimension_numbers<[1], [0], [0], [1], [0, 0, 1, 1], [], []>} : vector<16x4xbf16>, vector<4x32xbf16>, vector<16x32xf32> -> vector<16x32xf32>
    %25 = arith.addf %18, %24 : vector<16x32xf32>
    %26 = vector.shape_cast %25 : vector<16x32xf32> to vector<1x16x32xf32>
    %c0_12 = arith.constant 0 : index
    %c0_13 = arith.constant 0 : index
    %c0_14 = arith.constant 0 : index
    %27 = vector.load %arg5[%c0_12, %c0_13, %c0_14] : memref<1x16x32xf32, #tpu.memory_space<vmem>>, vector<1x16x32xf32>
    tpu.vector_store %arg5[%c0_12, %c0_13, %c0_14], %26 {strides = array<i32>} : memref<1x16x32xf32, #tpu.memory_space<vmem>>, vector<1x16x32xf32>,
    return
  }
  func.func @transform_0(%arg0: i32) -> (i32, i32, i32) {
    %c0_i32 = arith.constant 0 : i32
    %c0_i32_0 = arith.constant 0 : i32
    %c0_i32_1 = arith.constant 0 : i32
    return %arg0, %c0_i32, %c0_i32_0 : i32, i32, i32
  }
  func.func @transform_1(%arg0: i32) -> (i32, i32, i32) {
    %c0_i32 = arith.constant 0 : i32
    %c0_i32_0 = arith.constant 0 : i32
    %c0_i32_1 = arith.constant 0 : i32
    return %arg0, %c0_i32, %c0_i32_0 : i32, i32, i32
  }
  func.func @transform_2(%arg0: i32) -> (i32, i32) {
    %c0_i32 = arith.constant 0 : i32
    %c0_i32_0 = arith.constant 0 : i32
    %c0_i32_1 = arith.constant 0 : i32
    return %c0_i32, %c0_i32_0 : i32, i32
  }
  func.func @transform_3(%arg0: i32) -> (i32, i32) {
    %c0_i32 = arith.constant 0 : i32
    %c0_i32_0 = arith.constant 0 : i32
    %c0_i32_1 = arith.constant 0 : i32
    return %c0_i32, %c0_i32_0 : i32, i32
  }
  func.func @transform_4(%arg0: i32) -> (i32, i32, i32) {
    %c0_i32 = arith.constant 0 : i32
    %c0_i32_0 = arith.constant 0 : i32
    %c0_i32_1 = arith.constant 0 : i32
    return %arg0, %c0_i32, %c0_i32_0 : i32, i32, i32
  }
}

module attributes {stable_mosaic.version = 11 : i64} {
  func.func @_matmul_kernel(%arg0: i32, %arg1: i32, %arg2: i32, %arg3: memref<32x32xf32, #tpu.memory_space<vmem>>, %arg4: memref<32x96xf32, #tpu.memory_space<vmem>>, %arg5: memref<1x96xf32, #tpu.memory_space<vmem>>, %arg6: memref<32x96xf32, #tpu.memory_space<vmem>>, %arg7: memref<32x96xf32, #tpu.memory_space<vmem>>) attributes {dimension_semantics = [#tpu.dimension_semantics<parallel>, #tpu.dimension_semantics<parallel>, #tpu.dimension_semantics<arbitrary>], iteration_bounds = array<i64: 1, 1, 1>, scalar_prefetch = 0 : i64, scratch_operands = 1 : i64, tpu.core_type = #tpu.core_type<tc>, window_params = [{transform_indices = @transform_0, window_bounds = array<i64: 32, 32>}, {transform_indices = @transform_1, window_bounds = array<i64: 32, 96>}, {transform_indices = @transform_2, window_bounds = array<i64: 1, 96>}, {transform_indices = @transform_3, window_bounds = array<i64: 32, 96>}]} {
    %c0_i32 = arith.constant 0 : i32
    %0 = arith.cmpi eq, %arg2, %c0_i32 : i32
    %1 = arith.extui %0 : i1 to i32
    %c0_i32_0 = arith.constant 0 : i32
    %2 = arith.cmpi ne, %1, %c0_i32_0 : i32
    scf.if %2 {
      %cst_10 = arith.constant 0.000000e+00 : f32
      %14 = vector.broadcast %cst_10 : f32 to vector<32x96xf32>
      %c0_11 = arith.constant 0 : index
      %c0_12 = arith.constant 0 : index
      %15 = vector.load %arg7[%c0_11, %c0_12] : memref<32x96xf32, #tpu.memory_space<vmem>>, vector<32x96xf32>
      tpu.vector_store %arg7[%c0_11, %c0_12], %14 {strides = array<i32>} : memref<32x96xf32, #tpu.memory_space<vmem>>, vector<32x96xf32>,
    } else {
    }
    %c0 = arith.constant 0 : index
    %c0_1 = arith.constant 0 : index
    %3 = vector.load %arg7[%c0, %c0_1] : memref<32x96xf32, #tpu.memory_space<vmem>>, vector<32x96xf32>
    %c0_2 = arith.constant 0 : index
    %c0_3 = arith.constant 0 : index
    %4 = vector.load %arg3[%c0_2, %c0_3] : memref<32x32xf32, #tpu.memory_space<vmem>>, vector<32x32xf32>
    %5 = arith.truncf %4 : vector<32x32xf32> to vector<32x32xbf16>
    %c0_4 = arith.constant 0 : index
    %c0_5 = arith.constant 0 : index
    %6 = vector.load %arg4[%c0_4, %c0_5] : memref<32x96xf32, #tpu.memory_space<vmem>>, vector<32x96xf32>
    %7 = arith.truncf %6 : vector<32x96xf32> to vector<32x96xbf16>
    %cst = arith.constant dense<0.000000e+00> : vector<32x96xf32>
    %8 = tpu.matmul %5, %7, %cst {dimension_numbers = #tpu.dot_dimension_numbers<[1], [0], [0], [1], [0, 0, 1, 1], [], []>} : vector<32x32xbf16>, vector<32x96xbf16>, vector<32x96xf32> -> vector<32x96xf32>
    %9 = arith.addf %3, %8 : vector<32x96xf32>
    %c0_6 = arith.constant 0 : index
    %c0_7 = arith.constant 0 : index
    %10 = vector.load %arg7[%c0_6, %c0_7] : memref<32x96xf32, #tpu.memory_space<vmem>>, vector<32x96xf32>
    tpu.vector_store %arg7[%c0_6, %c0_7], %9 {strides = array<i32>} : memref<32x96xf32, #tpu.memory_space<vmem>>, vector<32x96xf32>,
    %c0_i32_8 = arith.constant 0 : i32
    %11 = arith.cmpi eq, %arg2, %c0_i32_8 : i32
    %12 = arith.extui %11 : i1 to i32
    %c0_i32_9 = arith.constant 0 : i32
    %13 = arith.cmpi ne, %12, %c0_i32_9 : i32
    scf.if %13 {
      %c0_10 = arith.constant 0 : index
      %c0_11 = arith.constant 0 : index
      %14 = vector.load %arg7[%c0_10, %c0_11] : memref<32x96xf32, #tpu.memory_space<vmem>>, vector<32x96xf32>
      %c0_12 = arith.constant 0 : index
      %c0_13 = arith.constant 0 : index
      %15 = vector.load %arg5[%c0_12, %c0_13] : memref<1x96xf32, #tpu.memory_space<vmem>>, vector<1x96xf32>
      %16 = vector.broadcast %15 : vector<1x96xf32> to vector<32x96xf32>
      %17 = arith.addf %14, %16 : vector<32x96xf32>
      %c0_14 = arith.constant 0 : index
      %c0_15 = arith.constant 0 : index
      %18 = vector.load %arg6[%c0_14, %c0_15] : memref<32x96xf32, #tpu.memory_space<vmem>>, vector<32x96xf32>
      tpu.vector_store %arg6[%c0_14, %c0_15], %17 {strides = array<i32>} : memref<32x96xf32, #tpu.memory_space<vmem>>, vector<32x96xf32>,
    } else {
    }
    return
  }
  func.func @transform_0(%arg0: i32, %arg1: i32, %arg2: i32) -> (i32, i32) {
    %c0_i32 = arith.constant 0 : i32
    return %arg0, %arg2 : i32, i32
  }
  func.func @transform_1(%arg0: i32, %arg1: i32, %arg2: i32) -> (i32, i32) {
    %c0_i32 = arith.constant 0 : i32
    return %arg2, %arg1 : i32, i32
  }
  func.func @transform_2(%arg0: i32, %arg1: i32, %arg2: i32) -> (i32, i32) {
    %c0_i32 = arith.constant 0 : i32
    %c0_i32_0 = arith.constant 0 : i32
    return %c0_i32, %arg1 : i32, i32
  }
  func.func @transform_3(%arg0: i32, %arg1: i32, %arg2: i32) -> (i32, i32) {
    %c0_i32 = arith.constant 0 : i32
    return %arg0, %arg1 : i32, i32
  }
}

module attributes {stable_mosaic.version = 11 : i64} {
  func.func @_bmm_kernel(%arg0: i32, %arg1: memref<1x32x16xf32, #tpu.memory_space<vmem>>, %arg2: memref<1x16x16xf32, #tpu.memory_space<vmem>>, %arg3: memref<1x32x16xf32, #tpu.memory_space<vmem>>) attributes {dimension_semantics = [#tpu.dimension_semantics<parallel>], iteration_bounds = array<i64: 2>, scalar_prefetch = 0 : i64, scratch_operands = 0 : i64, tpu.core_type = #tpu.core_type<tc>, window_params = [{transform_indices = @transform_0, window_bounds = array<i64: 1, 32, 16>}, {transform_indices = @transform_1, window_bounds = array<i64: 1, 16, 16>}, {transform_indices = @transform_2, window_bounds = array<i64: 1, 32, 16>}]} {
    %c0 = arith.constant 0 : index
    %c0_0 = arith.constant 0 : index
    %c0_1 = arith.constant 0 : index
    %0 = vector.load %arg1[%c0, %c0_0, %c0_1] : memref<1x32x16xf32, #tpu.memory_space<vmem>>, vector<1x32x16xf32>
    %1 = vector.shape_cast %0 : vector<1x32x16xf32> to vector<32x16xf32>
    %c0_2 = arith.constant 0 : index
    %c0_3 = arith.constant 0 : index
    %c0_4 = arith.constant 0 : index
    %2 = vector.load %arg2[%c0_2, %c0_3, %c0_4] : memref<1x16x16xf32, #tpu.memory_space<vmem>>, vector<1x16x16xf32>
    %3 = vector.shape_cast %2 : vector<1x16x16xf32> to vector<16x16xf32>
    %cst = arith.constant dense<0.000000e+00> : vector<32x16xf32>
    %4 = tpu.matmul %1, %3, %cst {dimension_numbers = #tpu.dot_dimension_numbers<[1], [0], [0], [1], [0, 0, 1, 1], [], []>} : vector<32x16xf32>, vector<16x16xf32>, vector<32x16xf32> -> vector<32x16xf32>
    %5 = vector.shape_cast %4 : vector<32x16xf32> to vector<1x32x16xf32>
    %c0_5 = arith.constant 0 : index
    %c0_6 = arith.constant 0 : index
    %c0_7 = arith.constant 0 : index
    %6 = vector.load %arg3[%c0_5, %c0_6, %c0_7] : memref<1x32x16xf32, #tpu.memory_space<vmem>>, vector<1x32x16xf32>
    tpu.vector_store %arg3[%c0_5, %c0_6, %c0_7], %5 {strides = array<i32>} : memref<1x32x16xf32, #tpu.memory_space<vmem>>, vector<1x32x16xf32>,
    return
  }
  func.func @transform_0(%arg0: i32) -> (i32, i32, i32) {
    %c0_i32 = arith.constant 0 : i32
    %c0_i32_0 = arith.constant 0 : i32
    %c0_i32_1 = arith.constant 0 : i32
    return %arg0, %c0_i32, %c0_i32_0 : i32, i32, i32
  }
  func.func @transform_1(%arg0: i32) -> (i32, i32, i32) {
    %c0_i32 = arith.constant 0 : i32
    %c0_i32_0 = arith.constant 0 : i32
    %c0_i32_1 = arith.constant 0 : i32
    return %arg0, %c0_i32, %c0_i32_0 : i32, i32, i32
  }
  func.func @transform_2(%arg0: i32) -> (i32, i32, i32) {
    %c0_i32 = arith.constant 0 : i32
    %c0_i32_0 = arith.constant 0 : i32
    %c0_i32_1 = arith.constant 0 : i32
    return %arg0, %c0_i32, %c0_i32_0 : i32, i32, i32
  }
}

module attributes {stable_mosaic.version = 11 : i64} {
  func.func @_decomp_add_kernel(%arg0: i32, %arg1: memref<1x16x32xf32, #tpu.memory_space<vmem>>, %arg2: memref<1x16x32xf32, #tpu.memory_space<vmem>>, %arg3: memref<1x16x32xf32, #tpu.memory_space<vmem>>, %arg4: memref<1x16x32xf32, #tpu.memory_space<vmem>>) attributes {dimension_semantics = [#tpu.dimension_semantics<parallel>], iteration_bounds = array<i64: 2>, scalar_prefetch = 0 : i64, scratch_operands = 0 : i64, tpu.core_type = #tpu.core_type<tc>, window_params = [{transform_indices = @transform_0, window_bounds = array<i64: 1, 16, 32>}, {transform_indices = @transform_1, window_bounds = array<i64: 1, 16, 32>}, {transform_indices = @transform_2, window_bounds = array<i64: 1, 16, 32>}, {transform_indices = @transform_3, window_bounds = array<i64: 1, 16, 32>}]} {
    %c0 = arith.constant 0 : index
    %c0_0 = arith.constant 0 : index
    %c0_1 = arith.constant 0 : index
    %0 = vector.load %arg1[%c0, %c0_0, %c0_1] : memref<1x16x32xf32, #tpu.memory_space<vmem>>, vector<1x16x32xf32>
    %c0_2 = arith.constant 0 : index
    %c0_3 = arith.constant 0 : index
    %c0_4 = arith.constant 0 : index
    %1 = vector.load %arg2[%c0_2, %c0_3, %c0_4] : memref<1x16x32xf32, #tpu.memory_space<vmem>>, vector<1x16x32xf32>
    %2 = arith.addf %0, %1 : vector<1x16x32xf32>
    %3 = vector.extract_strided_slice %2 {offsets = [0, 0, 0], sizes = [1, 1, 32], strides = [1, 1, 1]} : vector<1x16x32xf32> to vector<1x1x32xf32>
    %4 = vector.shape_cast %3 : vector<1x1x32xf32> to vector<1x1x32xf32>
    %5 = vector.broadcast %4 : vector<1x1x32xf32> to vector<1x2x32xf32>
    %6 = vector.extract_strided_slice %2 {offsets = [0, 15, 0], sizes = [1, 1, 32], strides = [1, 1, 1]} : vector<1x16x32xf32> to vector<1x1x32xf32>
    %7 = vector.shape_cast %6 : vector<1x1x32xf32> to vector<1x1x32xf32>
    %8 = vector.broadcast %7 : vector<1x1x32xf32> to vector<1x2x32xf32>
    %9 = tpu.concatenate %5, %2, %8 in 1 : vector<1x2x32xf32>, vector<1x16x32xf32>, vector<1x2x32xf32> -> vector<1x20x32xf32>
    %10 = vector.extract_strided_slice %9 {offsets = [0, 0, 0], sizes = [1, 16, 32], strides = [1, 1, 1]} : vector<1x20x32xf32> to vector<1x16x32xf32>
    %11 = vector.extract_strided_slice %9 {offsets = [0, 1, 0], sizes = [1, 16, 32], strides = [1, 1, 1]} : vector<1x20x32xf32> to vector<1x16x32xf32>
    %12 = arith.addf %10, %11 : vector<1x16x32xf32>
    %13 = vector.extract_strided_slice %9 {offsets = [0, 2, 0], sizes = [1, 16, 32], strides = [1, 1, 1]} : vector<1x20x32xf32> to vector<1x16x32xf32>
    %14 = arith.addf %12, %13 : vector<1x16x32xf32>
    %15 = vector.extract_strided_slice %9 {offsets = [0, 3, 0], sizes = [1, 16, 32], strides = [1, 1, 1]} : vector<1x20x32xf32> to vector<1x16x32xf32>
    %16 = arith.addf %14, %15 : vector<1x16x32xf32>
    %17 = vector.extract_strided_slice %9 {offsets = [0, 4, 0], sizes = [1, 16, 32], strides = [1, 1, 1]} : vector<1x20x32xf32> to vector<1x16x32xf32>
    %18 = arith.addf %16, %17 : vector<1x16x32xf32>
    %cst = arith.constant 2.000000e-01 : f32
    %19 = vector.broadcast %cst : f32 to vector<1x16x32xf32>
    %20 = arith.mulf %18, %19 : vector<1x16x32xf32>
    %21 = arith.subf %2, %20 : vector<1x16x32xf32>
    %c0_5 = arith.constant 0 : index
    %c0_6 = arith.constant 0 : index
    %c0_7 = arith.constant 0 : index
    %22 = vector.load %arg3[%c0_5, %c0_6, %c0_7] : memref<1x16x32xf32, #tpu.memory_space<vmem>>, vector<1x16x32xf32>
    tpu.vector_store %arg3[%c0_5, %c0_6, %c0_7], %21 {strides = array<i32>} : memref<1x16x32xf32, #tpu.memory_space<vmem>>, vector<1x16x32xf32>,
    %c0_8 = arith.constant 0 : index
    %c0_9 = arith.constant 0 : index
    %c0_10 = arith.constant 0 : index
    %23 = vector.load %arg4[%c0_8, %c0_9, %c0_10] : memref<1x16x32xf32, #tpu.memory_space<vmem>>, vector<1x16x32xf32>
    tpu.vector_store %arg4[%c0_8, %c0_9, %c0_10], %20 {strides = array<i32>} : memref<1x16x32xf32, #tpu.memory_space<vmem>>, vector<1x16x32xf32>,
    return
  }
  func.func @transform_0(%arg0: i32) -> (i32, i32, i32) {
    %c0_i32 = arith.constant 0 : i32
    %c0_i32_0 = arith.constant 0 : i32
    %c0_i32_1 = arith.constant 0 : i32
    return %arg0, %c0_i32, %c0_i32_0 : i32, i32, i32
  }
  func.func @transform_1(%arg0: i32) -> (i32, i32, i32) {
    %c0_i32 = arith.constant 0 : i32
    %c0_i32_0 = arith.constant 0 : i32
    %c0_i32_1 = arith.constant 0 : i32
    return %arg0, %c0_i32, %c0_i32_0 : i32, i32, i32
  }
  func.func @transform_2(%arg0: i32) -> (i32, i32, i32) {
    %c0_i32 = arith.constant 0 : i32
    %c0_i32_0 = arith.constant 0 : i32
    %c0_i32_1 = arith.constant 0 : i32
    return %arg0, %c0_i32, %c0_i32_0 : i32, i32, i32
  }
  func.func @transform_3(%arg0: i32) -> (i32, i32, i32) {
    %c0_i32 = arith.constant 0 : i32
    %c0_i32_0 = arith.constant 0 : i32
    %c0_i32_1 = arith.constant 0 : i32
    return %arg0, %c0_i32, %c0_i32_0 : i32, i32, i32
  }
}

module attributes {stable_mosaic.version = 11 : i64} {
  func.func @_decomp_add_kernel(%arg0: i32, %arg1: memref<1x16x32xf32, #tpu.memory_space<vmem>>, %arg2: memref<1x16x32xf32, #tpu.memory_space<vmem>>, %arg3: memref<1x16x32xf32, #tpu.memory_space<vmem>>, %arg4: memref<1x16x32xf32, #tpu.memory_space<vmem>>) attributes {dimension_semantics = [#tpu.dimension_semantics<parallel>], iteration_bounds = array<i64: 2>, scalar_prefetch = 0 : i64, scratch_operands = 0 : i64, tpu.core_type = #tpu.core_type<tc>, window_params = [{transform_indices = @transform_0, window_bounds = array<i64: 1, 16, 32>}, {transform_indices = @transform_1, window_bounds = array<i64: 1, 16, 32>}, {transform_indices = @transform_2, window_bounds = array<i64: 1, 16, 32>}, {transform_indices = @transform_3, window_bounds = array<i64: 1, 16, 32>}]} {
    %c0 = arith.constant 0 : index
    %c0_0 = arith.constant 0 : index
    %c0_1 = arith.constant 0 : index
    %0 = vector.load %arg1[%c0, %c0_0, %c0_1] : memref<1x16x32xf32, #tpu.memory_space<vmem>>, vector<1x16x32xf32>
    %c0_2 = arith.constant 0 : index
    %c0_3 = arith.constant 0 : index
    %c0_4 = arith.constant 0 : index
    %1 = vector.load %arg2[%c0_2, %c0_3, %c0_4] : memref<1x16x32xf32, #tpu.memory_space<vmem>>, vector<1x16x32xf32>
    %2 = arith.addf %0, %1 : vector<1x16x32xf32>
    %3 = vector.extract_strided_slice %2 {offsets = [0, 0, 0], sizes = [1, 1, 32], strides = [1, 1, 1]} : vector<1x16x32xf32> to vector<1x1x32xf32>
    %4 = vector.shape_cast %3 : vector<1x1x32xf32> to vector<1x1x32xf32>
    %5 = vector.broadcast %4 : vector<1x1x32xf32> to vector<1x2x32xf32>
    %6 = vector.extract_strided_slice %2 {offsets = [0, 15, 0], sizes = [1, 1, 32], strides = [1, 1, 1]} : vector<1x16x32xf32> to vector<1x1x32xf32>
    %7 = vector.shape_cast %6 : vector<1x1x32xf32> to vector<1x1x32xf32>
    %8 = vector.broadcast %7 : vector<1x1x32xf32> to vector<1x2x32xf32>
    %9 = tpu.concatenate %5, %2, %8 in 1 : vector<1x2x32xf32>, vector<1x16x32xf32>, vector<1x2x32xf32> -> vector<1x20x32xf32>
    %10 = vector.extract_strided_slice %9 {offsets = [0, 0, 0], sizes = [1, 16, 32], strides = [1, 1, 1]} : vector<1x20x32xf32> to vector<1x16x32xf32>
    %11 = vector.extract_strided_slice %9 {offsets = [0, 1, 0], sizes = [1, 16, 32], strides = [1, 1, 1]} : vector<1x20x32xf32> to vector<1x16x32xf32>
    %12 = arith.addf %10, %11 : vector<1x16x32xf32>
    %13 = vector.extract_strided_slice %9 {offsets = [0, 2, 0], sizes = [1, 16, 32], strides = [1, 1, 1]} : vector<1x20x32xf32> to vector<1x16x32xf32>
    %14 = arith.addf %12, %13 : vector<1x16x32xf32>
    %15 = vector.extract_strided_slice %9 {offsets = [0, 3, 0], sizes = [1, 16, 32], strides = [1, 1, 1]} : vector<1x20x32xf32> to vector<1x16x32xf32>
    %16 = arith.addf %14, %15 : vector<1x16x32xf32>
    %17 = vector.extract_strided_slice %9 {offsets = [0, 4, 0], sizes = [1, 16, 32], strides = [1, 1, 1]} : vector<1x20x32xf32> to vector<1x16x32xf32>
    %18 = arith.addf %16, %17 : vector<1x16x32xf32>
    %cst = arith.constant 2.000000e-01 : f32
    %19 = vector.broadcast %cst : f32 to vector<1x16x32xf32>
    %20 = arith.mulf %18, %19 : vector<1x16x32xf32>
    %21 = arith.subf %2, %20 : vector<1x16x32xf32>
    %c0_5 = arith.constant 0 : index
    %c0_6 = arith.constant 0 : index
    %c0_7 = arith.constant 0 : index
    %22 = vector.load %arg3[%c0_5, %c0_6, %c0_7] : memref<1x16x32xf32, #tpu.memory_space<vmem>>, vector<1x16x32xf32>
    tpu.vector_store %arg3[%c0_5, %c0_6, %c0_7], %21 {strides = array<i32>} : memref<1x16x32xf32, #tpu.memory_space<vmem>>, vector<1x16x32xf32>,
    %c0_8 = arith.constant 0 : index
    %c0_9 = arith.constant 0 : index
    %c0_10 = arith.constant 0 : index
    %23 = vector.load %arg4[%c0_8, %c0_9, %c0_10] : memref<1x16x32xf32, #tpu.memory_space<vmem>>, vector<1x16x32xf32>
    tpu.vector_store %arg4[%c0_8, %c0_9, %c0_10], %20 {strides = array<i32>} : memref<1x16x32xf32, #tpu.memory_space<vmem>>, vector<1x16x32xf32>,
    return
  }
  func.func @transform_0(%arg0: i32) -> (i32, i32, i32) {
    %c0_i32 = arith.constant 0 : i32
    %c0_i32_0 = arith.constant 0 : i32
    %c0_i32_1 = arith.constant 0 : i32
    return %arg0, %c0_i32, %c0_i32_0 : i32, i32, i32
  }
  func.func @transform_1(%arg0: i32) -> (i32, i32, i32) {
    %c0_i32 = arith.constant 0 : i32
    %c0_i32_0 = arith.constant 0 : i32
    %c0_i32_1 = arith.constant 0 : i32
    return %arg0, %c0_i32, %c0_i32_0 : i32, i32, i32
  }
  func.func @transform_2(%arg0: i32) -> (i32, i32, i32) {
    %c0_i32 = arith.constant 0 : i32
    %c0_i32_0 = arith.constant 0 : i32
    %c0_i32_1 = arith.constant 0 : i32
    return %arg0, %c0_i32, %c0_i32_0 : i32, i32, i32
  }
  func.func @transform_3(%arg0: i32) -> (i32, i32, i32) {
    %c0_i32 = arith.constant 0 : i32
    %c0_i32_0 = arith.constant 0 : i32
    %c0_i32_1 = arith.constant 0 : i32
    return %arg0, %c0_i32, %c0_i32_0 : i32, i32, i32
  }
}

module attributes {stable_mosaic.version = 11 : i64} {
  func.func @_matmul_kernel(%arg0: i32, %arg1: i32, %arg2: i32, %arg3: memref<32x32xf32, #tpu.memory_space<vmem>>, %arg4: memref<32x32xf32, #tpu.memory_space<vmem>>, %arg5: memref<1x32xf32, #tpu.memory_space<vmem>>, %arg6: memref<32x32xf32, #tpu.memory_space<vmem>>, %arg7: memref<32x32xf32, #tpu.memory_space<vmem>>) attributes {dimension_semantics = [#tpu.dimension_semantics<parallel>, #tpu.dimension_semantics<parallel>, #tpu.dimension_semantics<arbitrary>], iteration_bounds = array<i64: 1, 1, 1>, scalar_prefetch = 0 : i64, scratch_operands = 1 : i64, tpu.core_type = #tpu.core_type<tc>, window_params = [{transform_indices = @transform_0, window_bounds = array<i64: 32, 32>}, {transform_indices = @transform_1, window_bounds = array<i64: 32, 32>}, {transform_indices = @transform_2, window_bounds = array<i64: 1, 32>}, {transform_indices = @transform_3, window_bounds = array<i64: 32, 32>}]} {
    %c0_i32 = arith.constant 0 : i32
    %0 = arith.cmpi eq, %arg2, %c0_i32 : i32
    %1 = arith.extui %0 : i1 to i32
    %c0_i32_0 = arith.constant 0 : i32
    %2 = arith.cmpi ne, %1, %c0_i32_0 : i32
    scf.if %2 {
      %cst_10 = arith.constant 0.000000e+00 : f32
      %14 = vector.broadcast %cst_10 : f32 to vector<32x32xf32>
      %c0_11 = arith.constant 0 : index
      %c0_12 = arith.constant 0 : index
      %15 = vector.load %arg7[%c0_11, %c0_12] : memref<32x32xf32, #tpu.memory_space<vmem>>, vector<32x32xf32>
      tpu.vector_store %arg7[%c0_11, %c0_12], %14 {strides = array<i32>} : memref<32x32xf32, #tpu.memory_space<vmem>>, vector<32x32xf32>,
    } else {
    }
    %c0 = arith.constant 0 : index
    %c0_1 = arith.constant 0 : index
    %3 = vector.load %arg7[%c0, %c0_1] : memref<32x32xf32, #tpu.memory_space<vmem>>, vector<32x32xf32>
    %c0_2 = arith.constant 0 : index
    %c0_3 = arith.constant 0 : index
    %4 = vector.load %arg3[%c0_2, %c0_3] : memref<32x32xf32, #tpu.memory_space<vmem>>, vector<32x32xf32>
    %5 = arith.truncf %4 : vector<32x32xf32> to vector<32x32xbf16>
    %c0_4 = arith.constant 0 : index
    %c0_5 = arith.constant 0 : index
    %6 = vector.load %arg4[%c0_4, %c0_5] : memref<32x32xf32, #tpu.memory_space<vmem>>, vector<32x32xf32>
    %7 = arith.truncf %6 : vector<32x32xf32> to vector<32x32xbf16>
    %cst = arith.constant dense<0.000000e+00> : vector<32x32xf32>
    %8 = tpu.matmul %5, %7, %cst {dimension_numbers = #tpu.dot_dimension_numbers<[1], [0], [0], [1], [0, 0, 1, 1], [], []>} : vector<32x32xbf16>, vector<32x32xbf16>, vector<32x32xf32> -> vector<32x32xf32>
    %9 = arith.addf %3, %8 : vector<32x32xf32>
    %c0_6 = arith.constant 0 : index
    %c0_7 = arith.constant 0 : index
    %10 = vector.load %arg7[%c0_6, %c0_7] : memref<32x32xf32, #tpu.memory_space<vmem>>, vector<32x32xf32>
    tpu.vector_store %arg7[%c0_6, %c0_7], %9 {strides = array<i32>} : memref<32x32xf32, #tpu.memory_space<vmem>>, vector<32x32xf32>,
    %c0_i32_8 = arith.constant 0 : i32
    %11 = arith.cmpi eq, %arg2, %c0_i32_8 : i32
    %12 = arith.extui %11 : i1 to i32
    %c0_i32_9 = arith.constant 0 : i32
    %13 = arith.cmpi ne, %12, %c0_i32_9 : i32
    scf.if %13 {
      %c0_10 = arith.constant 0 : index
      %c0_11 = arith.constant 0 : index
      %14 = vector.load %arg7[%c0_10, %c0_11] : memref<32x32xf32, #tpu.memory_space<vmem>>, vector<32x32xf32>
      %c0_12 = arith.constant 0 : index
      %c0_13 = arith.constant 0 : index
      %15 = vector.load %arg5[%c0_12, %c0_13] : memref<1x32xf32, #tpu.memory_space<vmem>>, vector<1x32xf32>
      %16 = vector.broadcast %15 : vector<1x32xf32> to vector<32x32xf32>
      %17 = arith.addf %14, %16 : vector<32x32xf32>
      %c0_14 = arith.constant 0 : index
      %c0_15 = arith.constant 0 : index
      %18 = vector.load %arg6[%c0_14, %c0_15] : memref<32x32xf32, #tpu.memory_space<vmem>>, vector<32x32xf32>
      tpu.vector_store %arg6[%c0_14, %c0_15], %17 {strides = array<i32>} : memref<32x32xf32, #tpu.memory_space<vmem>>, vector<32x32xf32>,
    } else {
    }
    return
  }
  func.func @transform_0(%arg0: i32, %arg1: i32, %arg2: i32) -> (i32, i32) {
    %c0_i32 = arith.constant 0 : i32
    return %arg0, %arg2 : i32, i32
  }
  func.func @transform_1(%arg0: i32, %arg1: i32, %arg2: i32) -> (i32, i32) {
    %c0_i32 = arith.constant 0 : i32
    return %arg2, %arg1 : i32, i32
  }
  func.func @transform_2(%arg0: i32, %arg1: i32, %arg2: i32) -> (i32, i32) {
    %c0_i32 = arith.constant 0 : i32
    %c0_i32_0 = arith.constant 0 : i32
    return %c0_i32, %arg1 : i32, i32
  }
  func.func @transform_3(%arg0: i32, %arg1: i32, %arg2: i32) -> (i32, i32) {
    %c0_i32 = arith.constant 0 : i32
    return %arg0, %arg1 : i32, i32
  }
}

module attributes {stable_mosaic.version = 11 : i64} {
  func.func @_ffn_kernel(%arg0: i32, %arg1: memref<32x32xf32, #tpu.memory_space<vmem>>, %arg2: memref<32x32xf32, #tpu.memory_space<vmem>>, %arg3: memref<32x32xf32, #tpu.memory_space<vmem>>, %arg4: memref<32x32xf32, #tpu.memory_space<vmem>>, %arg5: memref<32x32xbf16, #tpu.memory_space<vmem>>) attributes {dimension_semantics = [#tpu.dimension_semantics<parallel>], iteration_bounds = array<i64: 1>, scalar_prefetch = 0 : i64, scratch_operands = 1 : i64, tpu.core_type = #tpu.core_type<tc>, window_params = [{transform_indices = @transform_0, window_bounds = array<i64: 32, 32>}, {pipeline_mode = #tpu.pipeline_mode<synchronous>, transform_indices = @transform_1, window_bounds = array<i64: 32, 32>}, {pipeline_mode = #tpu.pipeline_mode<synchronous>, transform_indices = @transform_2, window_bounds = array<i64: 32, 32>}, {transform_indices = @transform_3, window_bounds = array<i64: 32, 32>}]} {
    %c0 = arith.constant 0 : index
    %c0_0 = arith.constant 0 : index
    %0 = vector.load %arg1[%c0, %c0_0] : memref<32x32xf32, #tpu.memory_space<vmem>>, vector<32x32xf32>
    %1 = arith.truncf %0 : vector<32x32xf32> to vector<32x32xbf16>
    %c0_1 = arith.constant 0 : index
    %c0_2 = arith.constant 0 : index
    %2 = vector.load %arg2[%c0_1, %c0_2] : memref<32x32xf32, #tpu.memory_space<vmem>>, vector<32x32xf32>
    %3 = arith.truncf %2 : vector<32x32xf32> to vector<32x32xbf16>
    %cst = arith.constant dense<0.000000e+00> : vector<32x32xf32>
    %4 = tpu.matmul %1, %3, %cst {dimension_numbers = #tpu.dot_dimension_numbers<[1], [0], [0], [1], [0, 0, 1, 1], [], []>} : vector<32x32xbf16>, vector<32x32xbf16>, vector<32x32xf32> -> vector<32x32xf32>
    %cst_3 = arith.constant 0.000000e+00 : f32
    %5 = vector.broadcast %cst_3 : f32 to vector<32x32xf32>
    %6 = arith.maximumf %4, %5 : vector<32x32xf32>
    %7 = arith.truncf %6 : vector<32x32xf32> to vector<32x32xbf16>
    %c0_4 = arith.constant 0 : index
    %c0_5 = arith.constant 0 : index
    %8 = vector.load %arg5[%c0_4, %c0_5] : memref<32x32xbf16, #tpu.memory_space<vmem>>, vector<32x32xbf16>
    tpu.vector_store %arg5[%c0_4, %c0_5], %7 {strides = array<i32>} : memref<32x32xbf16, #tpu.memory_space<vmem>>, vector<32x32xbf16>,
    %c0_6 = arith.constant 0 : index
    %c0_7 = arith.constant 0 : index
    %9 = vector.load %arg5[%c0_6, %c0_7] : memref<32x32xbf16, #tpu.memory_space<vmem>>, vector<32x32xbf16>
    %c0_8 = arith.constant 0 : index
    %c0_9 = arith.constant 0 : index
    %10 = vector.load %arg3[%c0_8, %c0_9] : memref<32x32xf32, #tpu.memory_space<vmem>>, vector<32x32xf32>
    %11 = arith.truncf %10 : vector<32x32xf32> to vector<32x32xbf16>
    %cst_10 = arith.constant dense<0.000000e+00> : vector<32x32xf32>
    %12 = tpu.matmul %9, %11, %cst_10 {dimension_numbers = #tpu.dot_dimension_numbers<[1], [0], [0], [1], [0, 0, 1, 1], [], []>} : vector<32x32xbf16>, vector<32x32xbf16>, vector<32x32xf32> -> vector<32x32xf32>
    %c0_11 = arith.constant 0 : index
    %c0_12 = arith.constant 0 : index
    %13 = vector.load %arg4[%c0_11, %c0_12] : memref<32x32xf32, #tpu.memory_space<vmem>>, vector<32x32xf32>
    tpu.vector_store %arg4[%c0_11, %c0_12], %12 {strides = array<i32>} : memref<32x32xf32, #tpu.memory_space<vmem>>, vector<32x32xf32>,
    return
  }
  func.func @transform_0(%arg0: i32) -> (i32, i32) {
    %c0_i32 = arith.constant 0 : i32
    %c0_i32_0 = arith.constant 0 : i32
    return %arg0, %c0_i32 : i32, i32
  }
  func.func @transform_1(%arg0: i32) -> (i32, i32) {
    %c0_i32 = arith.constant 0 : i32
    %c0_i32_0 = arith.constant 0 : i32
    %c0_i32_1 = arith.constant 0 : i32
    return %c0_i32, %c0_i32_0 : i32, i32
  }
  func.func @transform_2(%arg0: i32) -> (i32, i32) {
    %c0_i32 = arith.constant 0 : i32
    %c0_i32_0 = arith.constant 0 : i32
    %c0_i32_1 = arith.constant 0 : i32
    return %c0_i32, %c0_i32_0 : i32, i32
  }
  func.func @transform_3(%arg0: i32) -> (i32, i32) {
    %c0_i32 = arith.constant 0 : i32
    %c0_i32_0 = arith.constant 0 : i32
    return %arg0, %c0_i32 : i32, i32
  }
}

module attributes {stable_mosaic.version = 11 : i64} {
  func.func @_my_layernorm_kernel(%arg0: i32, %arg1: memref<1x16x32xf32, #tpu.memory_space<vmem>>, %arg2: memref<1x32xf32, #tpu.memory_space<vmem>>, %arg3: memref<1x32xf32, #tpu.memory_space<vmem>>, %arg4: memref<1x16x32xf32, #tpu.memory_space<vmem>>) attributes {dimension_semantics = [#tpu.dimension_semantics<parallel>], iteration_bounds = array<i64: 2>, scalar_prefetch = 0 : i64, scratch_operands = 0 : i64, tpu.core_type = #tpu.core_type<tc>, window_params = [{transform_indices = @transform_0, window_bounds = array<i64: 1, 16, 32>}, {pipeline_mode = #tpu.pipeline_mode<synchronous>, transform_indices = @transform_1, window_bounds = array<i64: 1, 32>}, {pipeline_mode = #tpu.pipeline_mode<synchronous>, transform_indices = @transform_2, window_bounds = array<i64: 1, 32>}, {transform_indices = @transform_3, window_bounds = array<i64: 1, 16, 32>}]} {
    %c0 = arith.constant 0 : index
    %c0_0 = arith.constant 0 : index
    %c0_1 = arith.constant 0 : index
    %0 = vector.load %arg1[%c0, %c0_0, %c0_1] : memref<1x16x32xf32, #tpu.memory_space<vmem>>, vector<1x16x32xf32>
    %c0_2 = arith.constant 0 : index
    %c0_3 = arith.constant 0 : index
    %1 = vector.load %arg2[%c0_2, %c0_3] : memref<1x32xf32, #tpu.memory_space<vmem>>, vector<1x32xf32>
    %c0_4 = arith.constant 0 : index
    %c0_5 = arith.constant 0 : index
    %2 = vector.load %arg3[%c0_4, %c0_5] : memref<1x32xf32, #tpu.memory_space<vmem>>, vector<1x32xf32>
    %cst = arith.constant dense<0.000000e+00> : vector<1x16xf32>
    %3 = vector.multi_reduction <add>, %0, %cst [2] : vector<1x16x32xf32> to vector<1x16xf32>
    %4 = vector.shape_cast %3 : vector<1x16xf32> to vector<1x16x1xf32>
    %cst_6 = arith.constant 3.200000e+01 : f32
    %5 = vector.broadcast %cst_6 : f32 to vector<1x16x1xf32>
    %6 = arith.divf %4, %5 : vector<1x16x1xf32>
    %7 = vector.broadcast %6 : vector<1x16x1xf32> to vector<1x16x32xf32>
    %8 = arith.subf %0, %7 : vector<1x16x32xf32>
    %9 = arith.mulf %8, %8 : vector<1x16x32xf32>
    %cst_7 = arith.constant dense<0.000000e+00> : vector<1x16xf32>
    %10 = vector.multi_reduction <add>, %9, %cst_7 [2] : vector<1x16x32xf32> to vector<1x16xf32>
    %11 = vector.shape_cast %10 : vector<1x16xf32> to vector<1x16x1xf32>
    %cst_8 = arith.constant 3.200000e+01 : f32
    %12 = vector.broadcast %cst_8 : f32 to vector<1x16x1xf32>
    %13 = arith.divf %11, %12 : vector<1x16x1xf32>
    %14 = vector.broadcast %6 : vector<1x16x1xf32> to vector<1x16x32xf32>
    %15 = arith.subf %0, %14 : vector<1x16x32xf32>
    %cst_9 = arith.constant 9.99999974E-6 : f32
    %16 = vector.broadcast %cst_9 : f32 to vector<1x16x1xf32>
    %17 = arith.addf %13, %16 : vector<1x16x1xf32>
    %18 = math.rsqrt %17 : vector<1x16x1xf32>
    %19 = vector.broadcast %18 : vector<1x16x1xf32> to vector<1x16x32xf32>
    %20 = arith.mulf %15, %19 : vector<1x16x32xf32>
    %21 = vector.shape_cast %1 : vector<1x32xf32> to vector<1x1x32xf32>
    %22 = vector.broadcast %21 : vector<1x1x32xf32> to vector<1x16x32xf32>
    %23 = arith.mulf %20, %22 : vector<1x16x32xf32>
    %24 = vector.shape_cast %2 : vector<1x32xf32> to vector<1x1x32xf32>
    %25 = vector.broadcast %24 : vector<1x1x32xf32> to vector<1x16x32xf32>
    %26 = arith.addf %23, %25 : vector<1x16x32xf32>
    %cst_10 = arith.constant dense<0.000000e+00> : vector<1x32xf32>
    %27 = vector.multi_reduction <add>, %26, %cst_10 [1] : vector<1x16x32xf32> to vector<1x32xf32>
    %28 = vector.shape_cast %27 : vector<1x32xf32> to vector<1x1x32xf32>
    %cst_11 = arith.constant 1.600000e+01 : f32
    %29 = vector.broadcast %cst_11 : f32 to vector<1x1x32xf32>
    %30 = arith.divf %28, %29 : vector<1x1x32xf32>
    %31 = vector.broadcast %30 : vector<1x1x32xf32> to vector<1x16x32xf32>
    %32 = arith.subf %26, %31 : vector<1x16x32xf32>
    %c0_12 = arith.constant 0 : index
    %c0_13 = arith.constant 0 : index
    %c0_14 = arith.constant 0 : index
    %33 = vector.load %arg4[%c0_12, %c0_13, %c0_14] : memref<1x16x32xf32, #tpu.memory_space<vmem>>, vector<1x16x32xf32>
    tpu.vector_store %arg4[%c0_12, %c0_13, %c0_14], %32 {strides = array<i32>} : memref<1x16x32xf32, #tpu.memory_space<vmem>>, vector<1x16x32xf32>,
    return
  }
  func.func @transform_0(%arg0: i32) -> (i32, i32, i32) {
    %c0_i32 = arith.constant 0 : i32
    %c0_i32_0 = arith.constant 0 : i32
    %c0_i32_1 = arith.constant 0 : i32
    return %arg0, %c0_i32, %c0_i32_0 : i32, i32, i32
  }
  func.func @transform_1(%arg0: i32) -> (i32, i32) {
    %c0_i32 = arith.constant 0 : i32
    %c0_i32_0 = arith.constant 0 : i32
    %c0_i32_1 = arith.constant 0 : i32
    return %c0_i32, %c0_i32_0 : i32, i32
  }
  func.func @transform_2(%arg0: i32) -> (i32, i32) {
    %c0_i32 = arith.constant 0 : i32
    %c0_i32_0 = arith.constant 0 : i32
    %c0_i32_1 = arith.constant 0 : i32
    return %c0_i32, %c0_i32_0 : i32, i32
  }
  func.func @transform_3(%arg0: i32) -> (i32, i32, i32) {
    %c0_i32 = arith.constant 0 : i32
    %c0_i32_0 = arith.constant 0 : i32
    %c0_i32_1 = arith.constant 0 : i32
    return %arg0, %c0_i32, %c0_i32_0 : i32, i32, i32
  }
}

module attributes {stable_mosaic.version = 11 : i64} {
  func.func @_matmul_kernel(%arg0: i32, %arg1: i32, %arg2: i32, %arg3: memref<32x32xf32, #tpu.memory_space<vmem>>, %arg4: memref<32x64xf32, #tpu.memory_space<vmem>>, %arg5: memref<1x64xf32, #tpu.memory_space<vmem>>, %arg6: memref<32x64xf32, #tpu.memory_space<vmem>>, %arg7: memref<32x64xf32, #tpu.memory_space<vmem>>) attributes {dimension_semantics = [#tpu.dimension_semantics<parallel>, #tpu.dimension_semantics<parallel>, #tpu.dimension_semantics<arbitrary>], iteration_bounds = array<i64: 1, 1, 1>, scalar_prefetch = 0 : i64, scratch_operands = 1 : i64, tpu.core_type = #tpu.core_type<tc>, window_params = [{transform_indices = @transform_0, window_bounds = array<i64: 32, 32>}, {transform_indices = @transform_1, window_bounds = array<i64: 32, 64>}, {transform_indices = @transform_2, window_bounds = array<i64: 1, 64>}, {transform_indices = @transform_3, window_bounds = array<i64: 32, 64>}]} {
    %c0_i32 = arith.constant 0 : i32
    %0 = arith.cmpi eq, %arg2, %c0_i32 : i32
    %1 = arith.extui %0 : i1 to i32
    %c0_i32_0 = arith.constant 0 : i32
    %2 = arith.cmpi ne, %1, %c0_i32_0 : i32
    scf.if %2 {
      %cst_10 = arith.constant 0.000000e+00 : f32
      %14 = vector.broadcast %cst_10 : f32 to vector<32x64xf32>
      %c0_11 = arith.constant 0 : index
      %c0_12 = arith.constant 0 : index
      %15 = vector.load %arg7[%c0_11, %c0_12] : memref<32x64xf32, #tpu.memory_space<vmem>>, vector<32x64xf32>
      tpu.vector_store %arg7[%c0_11, %c0_12], %14 {strides = array<i32>} : memref<32x64xf32, #tpu.memory_space<vmem>>, vector<32x64xf32>,
    } else {
    }
    %c0 = arith.constant 0 : index
    %c0_1 = arith.constant 0 : index
    %3 = vector.load %arg7[%c0, %c0_1] : memref<32x64xf32, #tpu.memory_space<vmem>>, vector<32x64xf32>
    %c0_2 = arith.constant 0 : index
    %c0_3 = arith.constant 0 : index
    %4 = vector.load %arg3[%c0_2, %c0_3] : memref<32x32xf32, #tpu.memory_space<vmem>>, vector<32x32xf32>
    %5 = arith.truncf %4 : vector<32x32xf32> to vector<32x32xbf16>
    %c0_4 = arith.constant 0 : index
    %c0_5 = arith.constant 0 : index
    %6 = vector.load %arg4[%c0_4, %c0_5] : memref<32x64xf32, #tpu.memory_space<vmem>>, vector<32x64xf32>
    %7 = arith.truncf %6 : vector<32x64xf32> to vector<32x64xbf16>
    %cst = arith.constant dense<0.000000e+00> : vector<32x64xf32>
    %8 = tpu.matmul %5, %7, %cst {dimension_numbers = #tpu.dot_dimension_numbers<[1], [0], [0], [1], [0, 0, 1, 1], [], []>} : vector<32x32xbf16>, vector<32x64xbf16>, vector<32x64xf32> -> vector<32x64xf32>
    %9 = arith.addf %3, %8 : vector<32x64xf32>
    %c0_6 = arith.constant 0 : index
    %c0_7 = arith.constant 0 : index
    %10 = vector.load %arg7[%c0_6, %c0_7] : memref<32x64xf32, #tpu.memory_space<vmem>>, vector<32x64xf32>
    tpu.vector_store %arg7[%c0_6, %c0_7], %9 {strides = array<i32>} : memref<32x64xf32, #tpu.memory_space<vmem>>, vector<32x64xf32>,
    %c0_i32_8 = arith.constant 0 : i32
    %11 = arith.cmpi eq, %arg2, %c0_i32_8 : i32
    %12 = arith.extui %11 : i1 to i32
    %c0_i32_9 = arith.constant 0 : i32
    %13 = arith.cmpi ne, %12, %c0_i32_9 : i32
    scf.if %13 {
      %c0_10 = arith.constant 0 : index
      %c0_11 = arith.constant 0 : index
      %14 = vector.load %arg7[%c0_10, %c0_11] : memref<32x64xf32, #tpu.memory_space<vmem>>, vector<32x64xf32>
      %c0_12 = arith.constant 0 : index
      %c0_13 = arith.constant 0 : index
      %15 = vector.load %arg5[%c0_12, %c0_13] : memref<1x64xf32, #tpu.memory_space<vmem>>, vector<1x64xf32>
      %16 = vector.broadcast %15 : vector<1x64xf32> to vector<32x64xf32>
      %17 = arith.addf %14, %16 : vector<32x64xf32>
      %c0_14 = arith.constant 0 : index
      %c0_15 = arith.constant 0 : index
      %18 = vector.load %arg6[%c0_14, %c0_15] : memref<32x64xf32, #tpu.memory_space<vmem>>, vector<32x64xf32>
      tpu.vector_store %arg6[%c0_14, %c0_15], %17 {strides = array<i32>} : memref<32x64xf32, #tpu.memory_space<vmem>>, vector<32x64xf32>,
    } else {
    }
    return
  }
  func.func @transform_0(%arg0: i32, %arg1: i32, %arg2: i32) -> (i32, i32) {
    %c0_i32 = arith.constant 0 : i32
    return %arg0, %arg2 : i32, i32
  }
  func.func @transform_1(%arg0: i32, %arg1: i32, %arg2: i32) -> (i32, i32) {
    %c0_i32 = arith.constant 0 : i32
    return %arg2, %arg1 : i32, i32
  }
  func.func @transform_2(%arg0: i32, %arg1: i32, %arg2: i32) -> (i32, i32) {
    %c0_i32 = arith.constant 0 : i32
    %c0_i32_0 = arith.constant 0 : i32
    return %c0_i32, %arg1 : i32, i32
  }
  func.func @transform_3(%arg0: i32, %arg1: i32, %arg2: i32) -> (i32, i32) {
    %c0_i32 = arith.constant 0 : i32
    return %arg0, %arg1 : i32, i32
  }
}

module attributes {stable_mosaic.version = 11 : i64} {
  func.func @_cconv3_kernel(%arg0: i32, %arg1: memref<1x16x32xf32, #tpu.memory_space<vmem>>, %arg2: memref<1x16x32xf32, #tpu.memory_space<vmem>>, %arg3: memref<1x16x32xf32, #tpu.memory_space<vmem>>, %arg4: memref<96x4xf32, #tpu.memory_space<vmem>>, %arg5: memref<1x16x4xf32, #tpu.memory_space<vmem>>) attributes {dimension_semantics = [#tpu.dimension_semantics<parallel>], iteration_bounds = array<i64: 2>, scalar_prefetch = 0 : i64, scratch_operands = 0 : i64, tpu.core_type = #tpu.core_type<tc>, window_params = [{transform_indices = @transform_0, window_bounds = array<i64: 1, 16, 32>}, {transform_indices = @transform_1, window_bounds = array<i64: 1, 16, 32>}, {transform_indices = @transform_2, window_bounds = array<i64: 1, 16, 32>}, {pipeline_mode = #tpu.pipeline_mode<synchronous>, transform_indices = @transform_3, window_bounds = array<i64: 96, 4>}, {transform_indices = @transform_4, window_bounds = array<i64: 1, 16, 4>}]} {
    %c0 = arith.constant 0 : index
    %c0_0 = arith.constant 0 : index
    %c0_1 = arith.constant 0 : index
    %0 = vector.load %arg1[%c0, %c0_0, %c0_1] : memref<1x16x32xf32, #tpu.memory_space<vmem>>, vector<1x16x32xf32>
    %1 = vector.shape_cast %0 : vector<1x16x32xf32> to vector<16x32xf32>
    %c0_2 = arith.constant 0 : index
    %c0_3 = arith.constant 0 : index
    %c0_4 = arith.constant 0 : index
    %2 = vector.load %arg2[%c0_2, %c0_3, %c0_4] : memref<1x16x32xf32, #tpu.memory_space<vmem>>, vector<1x16x32xf32>
    %3 = vector.shape_cast %2 : vector<1x16x32xf32> to vector<16x32xf32>
    %4 = arith.addf %1, %3 : vector<16x32xf32>
    %c0_5 = arith.constant 0 : index
    %c0_6 = arith.constant 0 : index
    %c0_7 = arith.constant 0 : index
    %5 = vector.load %arg3[%c0_5, %c0_6, %c0_7] : memref<1x16x32xf32, #tpu.memory_space<vmem>>, vector<1x16x32xf32>
    %6 = vector.shape_cast %5 : vector<1x16x32xf32> to vector<16x32xf32>
    %7 = arith.addf %4, %6 : vector<16x32xf32>
    %8 = arith.truncf %7 : vector<16x32xf32> to vector<16x32xbf16>
    %c0_8 = arith.constant 0 : index
    %c0_9 = arith.constant 0 : index
    %9 = vector.load %arg4[%c0_8, %c0_9] : memref<96x4xf32, #tpu.memory_space<vmem>>, vector<96x4xf32>
    %10 = arith.truncf %9 : vector<96x4xf32> to vector<96x4xbf16>
    %11 = vector.extract_strided_slice %8 {offsets = [15, 0], sizes = [1, 32], strides = [1, 1]} : vector<16x32xbf16> to vector<1x32xbf16>
    %12 = vector.extract_strided_slice %8 {offsets = [0, 0], sizes = [15, 32], strides = [1, 1]} : vector<16x32xbf16> to vector<15x32xbf16>
    %13 = tpu.concatenate %11, %12 in 0 : vector<1x32xbf16>, vector<15x32xbf16> -> vector<16x32xbf16>
    %14 = vector.extract_strided_slice %8 {offsets = [1, 0], sizes = [15, 32], strides = [1, 1]} : vector<16x32xbf16> to vector<15x32xbf16>
    %15 = vector.extract_strided_slice %8 {offsets = [0, 0], sizes = [1, 32], strides = [1, 1]} : vector<16x32xbf16> to vector<1x32xbf16>
    %16 = tpu.concatenate %14, %15 in 0 : vector<15x32xbf16>, vector<1x32xbf16> -> vector<16x32xbf16>
    %17 = vector.extract_strided_slice %10 {offsets = [0, 0], sizes = [32, 4], strides = [1, 1]} : vector<96x4xbf16> to vector<32x4xbf16>
    %cst = arith.constant dense<0.000000e+00> : vector<16x4xf32>
    %18 = tpu.matmul %13, %17, %cst {dimension_numbers = #tpu.dot_dimension_numbers<[1], [0], [0], [1], [0, 0, 1, 1], [], []>} : vector<16x32xbf16>, vector<32x4xbf16>, vector<16x4xf32> -> vector<16x4xf32>
    %19 = vector.extract_strided_slice %10 {offsets = [32, 0], sizes = [32, 4], strides = [1, 1]} : vector<96x4xbf16> to vector<32x4xbf16>
    %cst_10 = arith.constant dense<0.000000e+00> : vector<16x4xf32>
    %20 = tpu.matmul %8, %19, %cst_10 {dimension_numbers = #tpu.dot_dimension_numbers<[1], [0], [0], [1], [0, 0, 1, 1], [], []>} : vector<16x32xbf16>, vector<32x4xbf16>, vector<16x4xf32> -> vector<16x4xf32>
    %21 = arith.addf %18, %20 : vector<16x4xf32>
    %22 = vector.extract_strided_slice %10 {offsets = [64, 0], sizes = [32, 4], strides = [1, 1]} : vector<96x4xbf16> to vector<32x4xbf16>
    %cst_11 = arith.constant dense<0.000000e+00> : vector<16x4xf32>
    %23 = tpu.matmul %16, %22, %cst_11 {dimension_numbers = #tpu.dot_dimension_numbers<[1], [0], [0], [1], [0, 0, 1, 1], [], []>} : vector<16x32xbf16>, vector<32x4xbf16>, vector<16x4xf32> -> vector<16x4xf32>
    %24 = arith.addf %21, %23 : vector<16x4xf32>
    %25 = vector.shape_cast %24 : vector<16x4xf32> to vector<1x16x4xf32>
    %c0_12 = arith.constant 0 : index
    %c0_13 = arith.constant 0 : index
    %c0_14 = arith.constant 0 : index
    %26 = vector.load %arg5[%c0_12, %c0_13, %c0_14] : memref<1x16x4xf32, #tpu.memory_space<vmem>>, vector<1x16x4xf32>
    tpu.vector_store %arg5[%c0_12, %c0_13, %c0_14], %25 {strides = array<i32>} : memref<1x16x4xf32, #tpu.memory_space<vmem>>, vector<1x16x4xf32>,
    return
  }
  func.func @transform_0(%arg0: i32) -> (i32, i32, i32) {
    %c0_i32 = arith.constant 0 : i32
    %c0_i32_0 = arith.constant 0 : i32
    %c0_i32_1 = arith.constant 0 : i32
    return %arg0, %c0_i32, %c0_i32_0 : i32, i32, i32
  }
  func.func @transform_1(%arg0: i32) -> (i32, i32, i32) {
    %c0_i32 = arith.constant 0 : i32
    %c0_i32_0 = arith.constant 0 : i32
    %c0_i32_1 = arith.constant 0 : i32
    return %arg0, %c0_i32, %c0_i32_0 : i32, i32, i32
  }
  func.func @transform_2(%arg0: i32) -> (i32, i32, i32) {
    %c0_i32 = arith.constant 0 : i32
    %c0_i32_0 = arith.constant 0 : i32
    %c0_i32_1 = arith.constant 0 : i32
    return %arg0, %c0_i32, %c0_i32_0 : i32, i32, i32
  }
  func.func @transform_3(%arg0: i32) -> (i32, i32) {
    %c0_i32 = arith.constant 0 : i32
    %c0_i32_0 = arith.constant 0 : i32
    %c0_i32_1 = arith.constant 0 : i32
    return %c0_i32, %c0_i32_0 : i32, i32
  }
  func.func @transform_4(%arg0: i32) -> (i32, i32, i32) {
    %c0_i32 = arith.constant 0 : i32
    %c0_i32_0 = arith.constant 0 : i32
    %c0_i32_1 = arith.constant 0 : i32
    return %arg0, %c0_i32, %c0_i32_0 : i32, i32, i32
  }
}

module attributes {stable_mosaic.version = 11 : i64} {
  func.func @_my_layernorm_proj_kernel(%arg0: i32, %arg1: memref<1x16x32xf32, #tpu.memory_space<vmem>>, %arg2: memref<1x32xf32, #tpu.memory_space<vmem>>, %arg3: memref<1x32xf32, #tpu.memory_space<vmem>>, %arg4: memref<32x4xf32, #tpu.memory_space<vmem>>, %arg5: memref<1x4xf32, #tpu.memory_space<vmem>>, %arg6: memref<1x16x4xf32, #tpu.memory_space<vmem>>) attributes {dimension_semantics = [#tpu.dimension_semantics<parallel>], iteration_bounds = array<i64: 2>, scalar_prefetch = 0 : i64, scratch_operands = 0 : i64, tpu.core_type = #tpu.core_type<tc>, window_params = [{transform_indices = @transform_0, window_bounds = array<i64: 1, 16, 32>}, {pipeline_mode = #tpu.pipeline_mode<synchronous>, transform_indices = @transform_1, window_bounds = array<i64: 1, 32>}, {pipeline_mode = #tpu.pipeline_mode<synchronous>, transform_indices = @transform_2, window_bounds = array<i64: 1, 32>}, {pipeline_mode = #tpu.pipeline_mode<synchronous>, transform_indices = @transform_3, window_bounds = array<i64: 32, 4>}, {pipeline_mode = #tpu.pipeline_mode<synchronous>, transform_indices = @transform_4, window_bounds = array<i64: 1, 4>}, {transform_indices = @transform_5, window_bounds = array<i64: 1, 16, 4>}]} {
    %c0 = arith.constant 0 : index
    %c0_0 = arith.constant 0 : index
    %c0_1 = arith.constant 0 : index
    %0 = vector.load %arg1[%c0, %c0_0, %c0_1] : memref<1x16x32xf32, #tpu.memory_space<vmem>>, vector<1x16x32xf32>
    %c0_2 = arith.constant 0 : index
    %c0_3 = arith.constant 0 : index
    %1 = vector.load %arg2[%c0_2, %c0_3] : memref<1x32xf32, #tpu.memory_space<vmem>>, vector<1x32xf32>
    %c0_4 = arith.constant 0 : index
    %c0_5 = arith.constant 0 : index
    %2 = vector.load %arg3[%c0_4, %c0_5] : memref<1x32xf32, #tpu.memory_space<vmem>>, vector<1x32xf32>
    %cst = arith.constant dense<0.000000e+00> : vector<1x16xf32>
    %3 = vector.multi_reduction <add>, %0, %cst [2] : vector<1x16x32xf32> to vector<1x16xf32>
    %4 = vector.shape_cast %3 : vector<1x16xf32> to vector<1x16x1xf32>
    %cst_6 = arith.constant 3.200000e+01 : f32
    %5 = vector.broadcast %cst_6 : f32 to vector<1x16x1xf32>
    %6 = arith.divf %4, %5 : vector<1x16x1xf32>
    %7 = vector.broadcast %6 : vector<1x16x1xf32> to vector<1x16x32xf32>
    %8 = arith.subf %0, %7 : vector<1x16x32xf32>
    %9 = arith.mulf %8, %8 : vector<1x16x32xf32>
    %cst_7 = arith.constant dense<0.000000e+00> : vector<1x16xf32>
    %10 = vector.multi_reduction <add>, %9, %cst_7 [2] : vector<1x16x32xf32> to vector<1x16xf32>
    %11 = vector.shape_cast %10 : vector<1x16xf32> to vector<1x16x1xf32>
    %cst_8 = arith.constant 3.200000e+01 : f32
    %12 = vector.broadcast %cst_8 : f32 to vector<1x16x1xf32>
    %13 = arith.divf %11, %12 : vector<1x16x1xf32>
    %14 = vector.broadcast %6 : vector<1x16x1xf32> to vector<1x16x32xf32>
    %15 = arith.subf %0, %14 : vector<1x16x32xf32>
    %cst_9 = arith.constant 9.99999974E-6 : f32
    %16 = vector.broadcast %cst_9 : f32 to vector<1x16x1xf32>
    %17 = arith.addf %13, %16 : vector<1x16x1xf32>
    %18 = math.rsqrt %17 : vector<1x16x1xf32>
    %19 = vector.broadcast %18 : vector<1x16x1xf32> to vector<1x16x32xf32>
    %20 = arith.mulf %15, %19 : vector<1x16x32xf32>
    %21 = vector.shape_cast %1 : vector<1x32xf32> to vector<1x1x32xf32>
    %22 = vector.broadcast %21 : vector<1x1x32xf32> to vector<1x16x32xf32>
    %23 = arith.mulf %20, %22 : vector<1x16x32xf32>
    %24 = vector.shape_cast %2 : vector<1x32xf32> to vector<1x1x32xf32>
    %25 = vector.broadcast %24 : vector<1x1x32xf32> to vector<1x16x32xf32>
    %26 = arith.addf %23, %25 : vector<1x16x32xf32>
    %cst_10 = arith.constant dense<0.000000e+00> : vector<1x32xf32>
    %27 = vector.multi_reduction <add>, %26, %cst_10 [1] : vector<1x16x32xf32> to vector<1x32xf32>
    %28 = vector.shape_cast %27 : vector<1x32xf32> to vector<1x1x32xf32>
    %cst_11 = arith.constant 1.600000e+01 : f32
    %29 = vector.broadcast %cst_11 : f32 to vector<1x1x32xf32>
    %30 = arith.divf %28, %29 : vector<1x1x32xf32>
    %31 = vector.broadcast %30 : vector<1x1x32xf32> to vector<1x16x32xf32>
    %32 = arith.subf %26, %31 : vector<1x16x32xf32>
    %33 = vector.shape_cast %32 : vector<1x16x32xf32> to vector<16x32xf32>
    %c0_12 = arith.constant 0 : index
    %c0_13 = arith.constant 0 : index
    %34 = vector.load %arg4[%c0_12, %c0_13] : memref<32x4xf32, #tpu.memory_space<vmem>>, vector<32x4xf32>
    %cst_14 = arith.constant dense<0.000000e+00> : vector<16x4xf32>
    %35 = tpu.matmul %33, %34, %cst_14 {dimension_numbers = #tpu.dot_dimension_numbers<[1], [0], [0], [1], [0, 0, 1, 1], [], []>} : vector<16x32xf32>, vector<32x4xf32>, vector<16x4xf32> -> vector<16x4xf32>
    %c0_15 = arith.constant 0 : index
    %c0_16 = arith.constant 0 : index
    %36 = vector.load %arg5[%c0_15, %c0_16] : memref<1x4xf32, #tpu.memory_space<vmem>>, vector<1x4xf32>
    %37 = vector.broadcast %36 : vector<1x4xf32> to vector<16x4xf32>
    %38 = arith.addf %35, %37 : vector<16x4xf32>
    %39 = vector.shape_cast %38 : vector<16x4xf32> to vector<1x16x4xf32>
    %c0_17 = arith.constant 0 : index
    %c0_18 = arith.constant 0 : index
    %c0_19 = arith.constant 0 : index
    %40 = vector.load %arg6[%c0_17, %c0_18, %c0_19] : memref<1x16x4xf32, #tpu.memory_space<vmem>>, vector<1x16x4xf32>
    tpu.vector_store %arg6[%c0_17, %c0_18, %c0_19], %39 {strides = array<i32>} : memref<1x16x4xf32, #tpu.memory_space<vmem>>, vector<1x16x4xf32>,
    return
  }
  func.func @transform_0(%arg0: i32) -> (i32, i32, i32) {
    %c0_i32 = arith.constant 0 : i32
    %c0_i32_0 = arith.constant 0 : i32
    %c0_i32_1 = arith.constant 0 : i32
    return %arg0, %c0_i32, %c0_i32_0 : i32, i32, i32
  }
  func.func @transform_1(%arg0: i32) -> (i32, i32) {
    %c0_i32 = arith.constant 0 : i32
    %c0_i32_0 = arith.constant 0 : i32
    %c0_i32_1 = arith.constant 0 : i32
    return %c0_i32, %c0_i32_0 : i32, i32
  }
  func.func @transform_2(%arg0: i32) -> (i32, i32) {
    %c0_i32 = arith.constant 0 : i32
    %c0_i32_0 = arith.constant 0 : i32
    %c0_i32_1 = arith.constant 0 : i32
    return %c0_i32, %c0_i32_0 : i32, i32
  }
  func.func @transform_3(%arg0: i32) -> (i32, i32) {
    %c0_i32 = arith.constant 0 : i32
    %c0_i32_0 = arith.constant 0 : i32
    %c0_i32_1 = arith.constant 0 : i32
    return %c0_i32, %c0_i32_0 : i32, i32
  }
  func.func @transform_4(%arg0: i32) -> (i32, i32) {
    %c0_i32 = arith.constant 0 : i32
    %c0_i32_0 = arith.constant 0 : i32
    %c0_i32_1 = arith.constant 0 : i32
    return %c0_i32, %c0_i32_0 : i32, i32
  }
  func.func @transform_5(%arg0: i32) -> (i32, i32, i32) {
    %c0_i32 = arith.constant 0 : i32
    %c0_i32_0 = arith.constant 0 : i32
    %c0_i32_1 = arith.constant 0 : i32
    return %arg0, %c0_i32, %c0_i32_0 : i32, i32, i32
  }
}

</mosaic_0001>

<llo_original>
// kernel: model_forward.23
$region0: #{model_forward.23}
  #allocation0 [shape = 'u32[]', space=smem, size = 0x4, offset = 0x4, fixed_abs, tag = 'smem constant byte address 0x4 - core index']
  #allocation1 [shape = 'u32[72,128]{1,0:T(1,128)}', space=vmem, size = 0x9000, scoped, tag = 'internal scratch']
  %s0 = inlined_call_operand.vmem [shape: f32[2,16,4], index: 0, kind: input, shape index: {}]
  %s1 = inlined_call_operand.vmem [shape: f32[2,16,4], index: 1, kind: output, shape index: {0}]
  %s2 = inlined_call_operand.vmem [shape: f32[2,16,4], index: 2, kind: output, shape index: {1}]
  %3 = xla_tuple %s1, %s2
  %s4 = sld [smem:[#allocation0]]
  $region45: #{model_forward.23} parent=0
    _
  %s6 = ssub.s32 1, %s4
  %s7 = scalar_select 0, %s6, %s4
  loop: start=0, step=1, limit=4
  $region2: #{model_forward.23} parent=0 // loop_pre_header
    _
  $region3: #{model_forward.23} parent=0 // loop_header
    %s9 = sphi 0, %s13
    %p10 = scmp.ge.s32.totalorder %s9, 4
    %s19 = sphi 0, %s21
    %s22 = sphi 0, %s19
    %s23 = sphi 0, %s22
    %s39 = sphi 0, %s23
    %s45 = sphi 0, %s47
    %s48 = sphi 0, %s45
    %s49 = sphi 0, %s48
    %s65 = sphi 0, %s49
    %s71 = sphi 0, %s73
    %s74 = sphi 0, %s71
    %s75 = sphi 0, %s74
    %s91 = sphi 0, %s75
  $region4: #{model_forward.23} parent=0 // loop_header_branch
    %12 = sbr.rel (%p10) target = $region8
  $region5: #{model_forward.23} parent=0 // loop_body
    %s14 = ssub.s32 %s9, 1
    %s15 = ssub.s32 %s9, 2
    %s16 = sadd.s32 %s9, 1
    %s17 = ssub.s32 %s9, %s16
    %p18 = scmp.eq.s32.totalorder %s17, 0
    %s20 = sadd.s32 %s19, 1
    %s21 = scalar_select %p18, %s19, %s20
    %p24 = pneg %p18
    %p25 = scmp.eq.s32.totalorder %s9, 1
    %p26 = por %p24, %p25
    %p27 = scmp.ne.s32.totalorder %s19, %s22
    %p28 = scmp.eq.s32.totalorder %s9, 0
    %p29 = por %p27, %p28
    %p30 = scmp.ne.s32.totalorder %s19, %s22
    %p31 = scmp.eq.s32.totalorder %s14, 1
    %p32 = por %p30, %p31
    %p33 = scmp.ne.s32.totalorder %s22, %s23
    %p34 = scmp.eq.s32.totalorder %s14, 0
    %p35 = por %p33, %p34
    %p36 = scmp.ne.s32.totalorder %s22, %s23
    %p37 = scmp.eq.s32.totalorder %s15, 1
    %p38 = por %p36, %p37
    %p40 = scmp.ne.s32.totalorder %s23, %s39
    %p41 = scmp.eq.s32.totalorder %s15, 0
    %p42 = por %p40, %p41
    %s43 = ssub.s32 %s9, %s16
    %p44 = scmp.eq.s32.totalorder %s43, 0
    %s46 = sadd.s32 %s45, 1
    %s47 = scalar_select %p44, %s45, %s46
    %p50 = pneg %p44
    %p51 = scmp.eq.s32.totalorder %s9, 1
    %p52 = por %p50, %p51
    %p53 = scmp.ne.s32.totalorder %s45, %s48
    %p54 = scmp.eq.s32.totalorder %s9, 0
    %p55 = por %p53, %p54
    %p56 = scmp.ne.s32.totalorder %s45, %s48
    %p57 = scmp.eq.s32.totalorder %s14, 1
    %p58 = por %p56, %p57
    %p59 = scmp.ne.s32.totalorder %s48, %s49
    %p60 = scmp.eq.s32.totalorder %s14, 0
    %p61 = por %p59, %p60
    %p62 = scmp.ne.s32.totalorder %s48, %s49
    %p63 = scmp.eq.s32.totalorder %s15, 1
    %p64 = por %p62, %p63
    %p66 = scmp.ne.s32.totalorder %s49, %s65
    %p67 = scmp.eq.s32.totalorder %s15, 0
    %p68 = por %p66, %p67
    %s69 = ssub.s32 %s9, %s16
    %p70 = scmp.eq.s32.totalorder %s69, 0
    %s72 = sadd.s32 %s71, 1
    %s73 = scalar_select %p70, %s71, %s72
    %p76 = pneg %p70
    %p77 = scmp.eq.s32.totalorder %s9, 1
    %p78 = por %p76, %p77
    %p79 = scmp.ne.s32.totalorder %s71, %s74
    %p80 = scmp.eq.s32.totalorder %s9, 0
    %p81 = por %p79, %p80
    %p82 = scmp.ne.s32.totalorder %s71, %s74
    %p83 = scmp.eq.s32.totalorder %s14, 1
    %p84 = por %p82, %p83
    %p85 = scmp.ne.s32.totalorder %s74, %s75
    %p86 = scmp.eq.s32.totalorder %s14, 0
    %p87 = por %p85, %p86
    %p88 = scmp.ne.s32.totalorder %s74, %s75
    %p89 = scmp.eq.s32.totalorder %s15, 1
    %p90 = por %p88, %p89
    %p92 = scmp.ne.s32.totalorder %s75, %s91
    %p93 = scmp.eq.s32.totalorder %s15, 0
    %p94 = por %p92, %p93
    %p95 = scmp.le.s32.totalorder 1, %s9
    %p96 = scmp.lt.s32.totalorder %s9, 3
    %p97 = pnand %p95, %p96
    %p98 = pneg %p97
    // Predicated region
    $region9: #{model_forward.23} parent=5 // pred_check
      _
    $region10: #{model_forward.23} parent=5 // pred_check_branch
      %100 = sbr.rel (%p97) target = $region12
    $region11: #{model_forward.23} parent=5 // pred_region
      %s101 = ssub.s32 %s9, 1
    $region12: #{model_forward.23} parent=5 // pred_fallthru
      _
    %p102 = scmp.lt.s32.totalorder %s9, 2
    // Predicated region
    $region13: #{model_forward.23} parent=5 // pred_check
      %p103 = pneg %p102
    $region14: #{model_forward.23} parent=5 // pred_check_branch
      %105 = sbr.rel (%p103) target = $region16
    $region15: #{model_forward.23} parent=5 // pred_region
      // Predicated region
      $region17: #{model_forward.23} parent=15 // pred_check
        %p106 = pneg %p29
      $region18: #{model_forward.23} parent=15 // pred_check_branch
        %108 = sbr.rel (%p106) target = $region20
      $region19: #{model_forward.23} parent=15 // pred_region
        %p109 = scmp.lt.s32.totalorder %s9, 1
        %s110 = scalar_select %p109, %s9, 1
        %s111 = smul.addr %s110, 2
        %s112 = smul.addr %s111, 8
        %s113 = scalar_lea.vmem %s0, %s112
      $region20: #{model_forward.23} parent=15 // pred_fallthru
        _
    $region16: #{model_forward.23} parent=5 // pred_fallthru
      _
    %p114 = scmp.le.s32.totalorder 1, %s9
    %p115 = scmp.lt.s32.totalorder %s9, 3
    %p116 = pnand %p114, %p115
    %p117 = pneg %p116
    // Predicated region
    $region21: #{model_forward.23} parent=5 // pred_check
      _
    $region22: #{model_forward.23} parent=5 // pred_check_branch
      %119 = sbr.rel (%p116) target = $region24
    $region23: #{model_forward.23} parent=5 // pred_region
      %s120 = ssub.s32 %s9, 1
      %p121 = scmp.lt.s32.totalorder %s14, 1
      %s122 = scalar_select %p121, %s14, 1
      %s123 = smul.addr %s122, 2
      %s124 = smul.addr %s123, 8
      %s125 = scalar_lea.vmem %s0, %s124
      %p126 = pneg %p35
      %p127 = pneg %p32
      %p128 = pneg %p61
      %p129 = pneg %p58
      %p130 = scmp.lt.s32.totalorder %s14, 1
      %s131 = scalar_select %p130, %s14, 1
      %s132 = smul.addr %s131, 2
      %s133 = smul.addr %s132, 8
      %s134 = scalar_lea.vmem %s1, %s133
      %p135 = pneg %p87
      %p136 = pneg %p84
      %p137 = scmp.lt.s32.totalorder %s14, 1
      %s138 = scalar_select %p137, %s14, 1
      %s139 = smul.addr %s138, 2
      %s140 = smul.addr %s139, 8
      %s141 = scalar_lea.vmem %s2, %s140
      %p142 = scmp.lt.s32.totalorder %s14, 1
      %s143 = scalar_select %p142, %s14, 1
      %s144 = smul.addr %s143, 2
      %s145 = smul.addr %s144, 8
      %s146 = scalar_lea.vmem %s0, %s145
      %p147 = scmp.lt.s32.totalorder %s14, 1
      %s148 = scalar_select %p147, %s14, 1
      %s149 = smul.addr %s148, 2
      %s150 = smul.addr %s149, 8
      %s151 = scalar_lea.vmem %s1, %s150
      %p152 = scmp.lt.s32.totalorder %s14, 1
      %s153 = scalar_select %p152, %s14, 1
      %s154 = smul.addr %s153, 2
      %s155 = smul.addr %s154, 8
      %s156 = scalar_lea.vmem %s2, %s155
      %v157 = vld [vmem:[%s146] sm:$0xff]
      %v158 = vld [vmem:[%s146 + $0x8] sm:$0xff]
      %v159 = vperm.slane %v157, 0
      %v160 = vperm.slane %v158, 7
      %vm163 = vcmask 1041408
      %v164 = vrot.slane %v157, 6
      %v165 = vrot.slane %v158, 6
      %v166 = vsel %vm163, %v164, %v165
      %v170 = vsel %vm163, %v159, %v164
      %v171 = vsel %vm163, %v165, %v160
      %vm174 = vcmask 1046528
      %v175 = vrot.slane %v170, 1
      %v176 = vrot.slane %v166, 1
      %v177 = vsel %vm174, %v175, %v176
      %v178 = vrot.slane %v171, 1
      %v179 = vsel %vm174, %v176, %v178
      %v182 = vadd.f32 %v170, %v177
      %v183 = vadd.f32 %v166, %v179
      %vm184 = vcmask 1045504
      %v185 = vrot.slane %v170, 2
      %v186 = vrot.slane %v166, 2
      %v187 = vsel %vm184, %v185, %v186
      %v188 = vrot.slane %v171, 2
      %v189 = vsel %vm184, %v186, %v188
      %v192 = vadd.f32 %v182, %v187
      %v193 = vadd.f32 %v183, %v189
      %vm194 = vcmask 1044480
      %v195 = vrot.slane %v170, 3
      %v196 = vrot.slane %v166, 3
      %v197 = vsel %vm194, %v195, %v196
      %v198 = vrot.slane %v171, 3
      %v199 = vsel %vm194, %v196, %v198
      %v202 = vadd.f32 %v192, %v197
      %v203 = vadd.f32 %v193, %v199
      %vm204 = vcmask 1043456
      %v205 = vrot.slane %v170, 4
      %v206 = vrot.slane %v166, 4
      %v207 = vsel %vm204, %v205, %v206
      %v208 = vrot.slane %v171, 4
      %v209 = vsel %vm204, %v206, %v208
      %v212 = vadd.f32 %v202, %v207
      %v213 = vadd.f32 %v203, %v209
      %v214 = vmul.f32 %v212, 0.2
      %v215 = vmul.f32 %v213, 0.2
      %v216 = vsub.f32 %v157, %v214
      %v217 = vsub.f32 %v158, %v215
      %vm218 = vcmask 31744
      %219 = vst.msk [vmem:[%s151] sm:$0xff] %vm218, %v216
      %220 = vst.msk [vmem:[%s151 + $0x8] sm:$0xff] %vm218, %v217
      %221 = vst.msk [vmem:[%s156] sm:$0xff] %vm218, %v214
      %222 = vst.msk [vmem:[%s156 + $0x8] sm:$0xff] %vm218, %v215
      %p223 = scmp.lt.s32.totalorder %s14, 1
      %s224 = scalar_select %p223, %s14, 1
      %s225 = smul.addr %s224, 2
      %s226 = smul.addr %s225, 8
      %s227 = scalar_lea.vmem %s1, %s226
      %p228 = scmp.lt.s32.totalorder %s14, 1
      %s229 = scalar_select %p228, %s14, 1
      %s230 = smul.addr %s229, 2
      %s231 = smul.addr %s230, 8
      %s232 = scalar_lea.vmem %s2, %s231
      // Predicated region
      $region25: #{model_forward.23} parent=23 // pred_check
        %p233 = pneg %p58
      $region26: #{model_forward.23} parent=23 // pred_check_branch
        %235 = sbr.rel (%p233) target = $region28
      $region27: #{model_forward.23} parent=23 // pred_region
        _
      $region28: #{model_forward.23} parent=23 // pred_fallthru
        _
      // Predicated region
      $region29: #{model_forward.23} parent=23 // pred_check
        %p236 = pneg %p84
      $region30: #{model_forward.23} parent=23 // pred_check_branch
        %238 = sbr.rel (%p236) target = $region32
      $region31: #{model_forward.23} parent=23 // pred_region
        _
      $region32: #{model_forward.23} parent=23 // pred_fallthru
        _
    $region24: #{model_forward.23} parent=5 // pred_fallthru
      _
    %p239 = scmp.le.s32.totalorder 2, %s9
    // Predicated region
    $region33: #{model_forward.23} parent=5 // pred_check
      %p240 = pneg %p239
    $region34: #{model_forward.23} parent=5 // pred_check_branch
      %242 = sbr.rel (%p240) target = $region36
    $region35: #{model_forward.23} parent=5 // pred_region
      %s243 = ssub.s32 %s9, 2
      // Predicated region
      $region37: #{model_forward.23} parent=35 // pred_check
        %p244 = pneg %p64
      $region38: #{model_forward.23} parent=35 // pred_check_branch
        %246 = sbr.rel (%p244) target = $region40
      $region39: #{model_forward.23} parent=35 // pred_region
        %p247 = scmp.lt.s32.totalorder %s15, 1
        %s248 = scalar_select %p247, %s15, 1
        %s249 = smul.addr %s248, 2
        %s250 = smul.addr %s249, 8
        %s251 = scalar_lea.vmem %s1, %s250
      $region40: #{model_forward.23} parent=35 // pred_fallthru
        _
      // Predicated region
      $region41: #{model_forward.23} parent=35 // pred_check
        %p252 = pneg %p90
      $region42: #{model_forward.23} parent=35 // pred_check_branch
        %254 = sbr.rel (%p252) target = $region44
      $region43: #{model_forward.23} parent=35 // pred_region
        %p255 = scmp.lt.s32.totalorder %s15, 1
        %s256 = scalar_select %p255, %s15, 1
        %s257 = smul.addr %s256, 2
        %s258 = smul.addr %s257, 8
        %s259 = scalar_lea.vmem %s2, %s258
      $region44: #{model_forward.23} parent=35 // pred_fallthru
        _
    $region36: #{model_forward.23} parent=5 // pred_fallthru
      _
  $region6: #{model_forward.23} parent=0 // loop_footer
    %s13 = sadd.s32 1, %s9
  $region7: #{model_forward.23} parent=0 // loop_footer_branch
    %8 = sbr.rel target = $region3
  $region8: #{model_forward.23} parent=0 // loop_exit
    _

// kernel: model_forward.25
$region0: #{model_forward.25}
  #allocation0 [shape = 'u32[]', space=smem, size = 0x4, offset = 0x4, fixed_abs, tag = 'smem constant byte address 0x4 - core index']
  #allocation1 [shape = 'u32[72,128]{1,0:T(1,128)}', space=vmem, size = 0x9000, scoped, tag = 'internal scratch']
  #allocation2 [shape = 'f32[32,96]{1,0:T(8,128)}', space=vmem, size = 0x4000, scoped, tag = 'scratch operand']
  %s0 = inlined_call_operand.vmem [shape: f32[32,32], index: 0, kind: input, shape index: {}]
  %s1 = inlined_call_operand.vmem [shape: f32[32,96], index: 1, kind: input, shape index: {}]
  %s2 = inlined_call_operand.vmem [shape: f32[1,96], index: 2, kind: input, shape index: {}]
  %s3 = inlined_call_operand.vmem [shape: f32[32,96], index: 3, kind: output, shape index: {}]
  %s4 = sld [smem:[#allocation0]]
  $region30: #{model_forward.25} parent=0
    _
  %s6 = ssub.s32 1, %s4
  %s7 = scalar_select 0, %s6, %s4
  // Predicated region
  $region2: #{model_forward.25} parent=0 // pred_check
    _
  $region3: #{model_forward.25} parent=0 // pred_check_branch
    %9 = sbr.rel (0) target = $region5
  $region4: #{model_forward.25} parent=0 // pred_region
    _
  $region5: #{model_forward.25} parent=0 // pred_fallthru
    _
  // Predicated region
  $region6: #{model_forward.25} parent=0 // pred_check
    _
  $region7: #{model_forward.25} parent=0 // pred_check_branch
    %11 = sbr.rel (0) target = $region9
  $region8: #{model_forward.25} parent=0 // pred_region
    _
  $region9: #{model_forward.25} parent=0 // pred_fallthru
    _
  // Predicated region
  $region10: #{model_forward.25} parent=0 // pred_check
    _
  $region11: #{model_forward.25} parent=0 // pred_check_branch
    %13 = sbr.rel (0) target = $region13
  $region12: #{model_forward.25} parent=0 // pred_region
    _
  $region13: #{model_forward.25} parent=0 // pred_fallthru
    _
  %p15 = scmp.eq.s32.totalorder 0, 0
  // Predicated region
  $region14: #{model_forward.25} parent=0 // pred_check
    %p16 = pneg %p15
  $region15: #{model_forward.25} parent=0 // pred_check_branch
    %18 = sbr.rel (%p16) target = $region17
  $region16: #{model_forward.25} parent=0 // pred_region
    %vm19 = vcmask 785408
    %20 = vst.msk [vmem:[#allocation2] sm:$0xff] %vm19, 0.0
    %21 = vst.msk [vmem:[#allocation2 + $0x8] sm:$0xff] %vm19, 0.0
    %22 = vst.msk [vmem:[#allocation2 + $0x10] sm:$0xff] %vm19, 0.0
    %23 = vst.msk [vmem:[#allocation2 + $0x18] sm:$0xff] %vm19, 0.0
  $region17: #{model_forward.25} parent=0 // pred_fallthru
    _
  %v24 = vld [vmem:[#allocation2] sm:$0xff]
  %v25 = vld [vmem:[#allocation2 + $0x8] sm:$0xff]
  %v26 = vld [vmem:[#allocation2 + $0x10] sm:$0xff]
  %v27 = vld [vmem:[#allocation2 + $0x18] sm:$0xff]
  %v28 = vld [vmem:[%s0] sm:$0xff]
  %v29 = vld [vmem:[%s0 + $0x8] sm:$0xff]
  %v30 = vld [vmem:[%s0 + $0x10] sm:$0xff]
  %v31 = vld [vmem:[%s0 + $0x18] sm:$0xff]
  %v32 = vpack.c.bf16 %v29, %v28
  %v33 = vpack.c.bf16 %v31, %v30
  %v34 = vld [vmem:[%s1] sm:$0xff]
  %v35 = vld [vmem:[%s1 + $0x8] sm:$0xff]
  %v36 = vld [vmem:[%s1 + $0x10] sm:$0xff]
  %v37 = vld [vmem:[%s1 + $0x18] sm:$0xff]
  %v38 = vpack.c.bf16 %v35, %v34
  %v39 = vpack.c.bf16 %v37, %v36
  %vm40 = vcmask 261120
  %v42 = vsel %vm40, %v32, 0
  %v45 = vsel %vm40, %v33, 0
  %47 = vmatpush.bf16.msra.mxu0 0
  %48 = vmatpush.bf16.msra.mxu0 0
  %49 = vmatpush.bf16.msra.mxu0 0
  %50 = vmatpush.bf16.msra.mxu0 0
  %51 = vmatpush.bf16.msra.mxu0 0
  %52 = vmatpush.bf16.msra.mxu0 0
  %53 = vmatpush.bf16.msra.mxu0 %v39
  %54 = vmatpush.bf16.msra.mxu0 %v38
  %55 = vmatmul.bf16.gmra.mxu0 %v42
  %v56 = vpop.f32.mrf.mxu0
  %v57 = vadd.f32 0.0, %v56
  %v58 = vpop.f32.mrf.mxu0
  %v59 = vadd.f32 0.0, %v58
  %60 = vmatmul.bf16.gmra.mxu0 %v45
  %v61 = vpop.f32.mrf.mxu0
  %v62 = vadd.f32 0.0, %v61
  %v63 = vpop.f32.mrf.mxu0
  %v64 = vadd.f32 0.0, %v63
  %65 = vdwg.mxu0
  %v66 = vadd.f32 %v24, %v57
  %v67 = vadd.f32 %v25, %v59
  %v68 = vadd.f32 %v26, %v62
  %v69 = vadd.f32 %v27, %v64
  %vm70 = vcmask 785408
  %71 = vst.msk [vmem:[#allocation2] sm:$0xff] %vm70, %v66
  %72 = vst.msk [vmem:[#allocation2 + $0x8] sm:$0xff] %vm70, %v67
  %73 = vst.msk [vmem:[#allocation2 + $0x10] sm:$0xff] %vm70, %v68
  %74 = vst.msk [vmem:[#allocation2 + $0x18] sm:$0xff] %vm70, %v69
  // Predicated region
  $region18: #{model_forward.25} parent=0 // pred_check
    %p75 = pneg %p15
  $region19: #{model_forward.25} parent=0 // pred_check_branch
    %77 = sbr.rel (%p75) target = $region21
  $region20: #{model_forward.25} parent=0 // pred_region
    %v78 = vld [vmem:[#allocation2] sm:$0xff]
    %v79 = vld [vmem:[#allocation2 + $0x8] sm:$0xff]
    %v80 = vld [vmem:[#allocation2 + $0x10] sm:$0xff]
    %v81 = vld [vmem:[#allocation2 + $0x18] sm:$0xff]
    %v82 = vld [vmem:[%s2] sm:$0x1]
    %v84 = vperm.slane %v82, 0
    %v86 = vadd.f32 %v78, %v84
    %v87 = vadd.f32 %v79, %v84
    %v88 = vadd.f32 %v80, %v84
    %v89 = vadd.f32 %v81, %v84
    %90 = vst.msk [vmem:[%s3] sm:$0xff] %vm70, %v86
    %91 = vst.msk [vmem:[%s3 + $0x8] sm:$0xff] %vm70, %v87
    %92 = vst.msk [vmem:[%s3 + $0x10] sm:$0xff] %vm70, %v88
    %93 = vst.msk [vmem:[%s3 + $0x18] sm:$0xff] %vm70, %v89
  $region21: #{model_forward.25} parent=0 // pred_fallthru
    _
  // Predicated region
  $region22: #{model_forward.25} parent=0 // pred_check
    _
  $region23: #{model_forward.25} parent=0 // pred_check_branch
    %95 = sbr.rel (0) target = $region25
  $region24: #{model_forward.25} parent=0 // pred_region
    _
  $region25: #{model_forward.25} parent=0 // pred_fallthru
    _
  // Predicated region
  $region26: #{model_forward.25} parent=0 // pred_check
    _
  $region27: #{model_forward.25} parent=0 // pred_check_branch
    %97 = sbr.rel (0) target = $region29
  $region28: #{model_forward.25} parent=0 // pred_region
    _
  $region29: #{model_forward.25} parent=0 // pred_fallthru
    _

// kernel: model_forward.24
$region0: #{model_forward.24}
  #allocation0 [shape = 'u32[]', space=smem, size = 0x4, offset = 0x4, fixed_abs, tag = 'smem constant byte address 0x4 - core index']
  #allocation1 [shape = 'u32[72,128]{1,0:T(1,128)}', space=vmem, size = 0x9000, scoped, tag = 'internal scratch']
  %s0 = inlined_call_operand.vmem [shape: f32[2,16,4], index: 0, kind: input, shape index: {}]
  %s1 = inlined_call_operand.vmem [shape: f32[2,16,4], index: 1, kind: input, shape index: {}]
  %s2 = inlined_call_operand.vmem [shape: f32[12,32], index: 2, kind: input, shape index: {}]
  %s3 = inlined_call_operand.vmem [shape: f32[4,32], index: 3, kind: input, shape index: {}]
  %s4 = inlined_call_operand.vmem [shape: f32[2,16,32], index: 4, kind: output, shape index: {}]
  %s5 = sld [smem:[#allocation0]]
  $region49: #{model_forward.24} parent=0
    _
  %s7 = ssub.s32 1, %s5
  %s8 = scalar_select 0, %s7, %s5
  loop: start=0, step=1, limit=4
  $region2: #{model_forward.24} parent=0 // loop_pre_header
    _
  $region3: #{model_forward.24} parent=0 // loop_header
    %s10 = sphi 0, %s14
    %p11 = scmp.ge.s32.totalorder %s10, 4
    %s20 = sphi 0, %s22
    %s23 = sphi 0, %s20
    %s24 = sphi 0, %s23
    %s40 = sphi 0, %s24
    %s46 = sphi 0, %s48
    %s49 = sphi 0, %s46
    %s50 = sphi 0, %s49
    %s66 = sphi 0, %s50
    %s70 = sphi 0, %s70
    %s72 = sphi 0, %s70
    %s73 = sphi 0, %s72
    %s87 = sphi 0, %s73
    %s91 = sphi 0, %s91
    %s93 = sphi 0, %s91
    %s94 = sphi 0, %s93
    %s108 = sphi 0, %s94
    %s114 = sphi 0, %s116
    %s117 = sphi 0, %s114
    %s118 = sphi 0, %s117
    %s134 = sphi 0, %s118
  $region4: #{model_forward.24} parent=0 // loop_header_branch
    %13 = sbr.rel (%p11) target = $region8
  $region5: #{model_forward.24} parent=0 // loop_body
    %s15 = ssub.s32 %s10, 1
    %s16 = ssub.s32 %s10, 2
    %s17 = sadd.s32 %s10, 1
    %s18 = ssub.s32 %s10, %s17
    %p19 = scmp.eq.s32.totalorder %s18, 0
    %s21 = sadd.s32 %s20, 1
    %s22 = scalar_select %p19, %s20, %s21
    %p25 = pneg %p19
    %p26 = scmp.eq.s32.totalorder %s10, 1
    %p27 = por %p25, %p26
    %p28 = scmp.ne.s32.totalorder %s20, %s23
    %p29 = scmp.eq.s32.totalorder %s10, 0
    %p30 = por %p28, %p29
    %p31 = scmp.ne.s32.totalorder %s20, %s23
    %p32 = scmp.eq.s32.totalorder %s15, 1
    %p33 = por %p31, %p32
    %p34 = scmp.ne.s32.totalorder %s23, %s24
    %p35 = scmp.eq.s32.totalorder %s15, 0
    %p36 = por %p34, %p35
    %p37 = scmp.ne.s32.totalorder %s23, %s24
    %p38 = scmp.eq.s32.totalorder %s16, 1
    %p39 = por %p37, %p38
    %p41 = scmp.ne.s32.totalorder %s24, %s40
    %p42 = scmp.eq.s32.totalorder %s16, 0
    %p43 = por %p41, %p42
    %s44 = ssub.s32 %s10, %s17
    %p45 = scmp.eq.s32.totalorder %s44, 0
    %s47 = sadd.s32 %s46, 1
    %s48 = scalar_select %p45, %s46, %s47
    %p51 = pneg %p45
    %p52 = scmp.eq.s32.totalorder %s10, 1
    %p53 = por %p51, %p52
    %p54 = scmp.ne.s32.totalorder %s46, %s49
    %p55 = scmp.eq.s32.totalorder %s10, 0
    %p56 = por %p54, %p55
    %p57 = scmp.ne.s32.totalorder %s46, %s49
    %p58 = scmp.eq.s32.totalorder %s15, 1
    %p59 = por %p57, %p58
    %p60 = scmp.ne.s32.totalorder %s49, %s50
    %p61 = scmp.eq.s32.totalorder %s15, 0
    %p62 = por %p60, %p61
    %p63 = scmp.ne.s32.totalorder %s49, %s50
    %p64 = scmp.eq.s32.totalorder %s16, 1
    %p65 = por %p63, %p64
    %p67 = scmp.ne.s32.totalorder %s50, %s66
    %p68 = scmp.eq.s32.totalorder %s16, 0
    %p69 = por %p67, %p68
    %s71 = sadd.s32 %s70, 1
    %p74 = scmp.eq.s32.totalorder %s10, 1
    %p75 = scmp.ne.s32.totalorder %s70, %s72
    %p76 = scmp.eq.s32.totalorder %s10, 0
    %p77 = por %p75, %p76
    %p78 = scmp.ne.s32.totalorder %s70, %s72
    %p79 = scmp.eq.s32.totalorder %s15, 1
    %p80 = por %p78, %p79
    %p81 = scmp.ne.s32.totalorder %s72, %s73
    %p82 = scmp.eq.s32.totalorder %s15, 0
    %p83 = por %p81, %p82
    %p84 = scmp.ne.s32.totalorder %s72, %s73
    %p85 = scmp.eq.s32.totalorder %s16, 1
    %p86 = por %p84, %p85
    %p88 = scmp.ne.s32.totalorder %s73, %s87
    %p89 = scmp.eq.s32.totalorder %s16, 0
    %p90 = por %p88, %p89
    %s92 = sadd.s32 %s91, 1
    %p95 = scmp.eq.s32.totalorder %s10, 1
    %p96 = scmp.ne.s32.totalorder %s91, %s93
    %p97 = scmp.eq.s32.totalorder %s10, 0
    %p98 = por %p96, %p97
    %p99 = scmp.ne.s32.totalorder %s91, %s93
    %p100 = scmp.eq.s32.totalorder %s15, 1
    %p101 = por %p99, %p100
    %p102 = scmp.ne.s32.totalorder %s93, %s94
    %p103 = scmp.eq.s32.totalorder %s15, 0
    %p104 = por %p102, %p103
    %p105 = scmp.ne.s32.totalorder %s93, %s94
    %p106 = scmp.eq.s32.totalorder %s16, 1
    %p107 = por %p105, %p106
    %p109 = scmp.ne.s32.totalorder %s94, %s108
    %p110 = scmp.eq.s32.totalorder %s16, 0
    %p111 = por %p109, %p110
    %s112 = ssub.s32 %s10, %s17
    %p113 = scmp.eq.s32.totalorder %s112, 0
    %s115 = sadd.s32 %s114, 1
    %s116 = scalar_select %p113, %s114, %s115
    %p119 = pneg %p113
    %p120 = scmp.eq.s32.totalorder %s10, 1
    %p121 = por %p119, %p120
    %p122 = scmp.ne.s32.totalorder %s114, %s117
    %p123 = scmp.eq.s32.totalorder %s10, 0
    %p124 = por %p122, %p123
    %p125 = scmp.ne.s32.totalorder %s114, %s117
    %p126 = scmp.eq.s32.totalorder %s15, 1
    %p127 = por %p125, %p126
    %p128 = scmp.ne.s32.totalorder %s117, %s118
    %p129 = scmp.eq.s32.totalorder %s15, 0
    %p130 = por %p128, %p129
    %p131 = scmp.ne.s32.totalorder %s117, %s118
    %p132 = scmp.eq.s32.totalorder %s16, 1
    %p133 = por %p131, %p132
    %p135 = scmp.ne.s32.totalorder %s118, %s134
    %p136 = scmp.eq.s32.totalorder %s16, 0
    %p137 = por %p135, %p136
    %p138 = scmp.le.s32.totalorder 1, %s10
    %p139 = scmp.lt.s32.totalorder %s10, 3
    %p140 = pnand %p138, %p139
    %p141 = pneg %p140
    // Predicated region
    $region9: #{model_forward.24} parent=5 // pred_check
      _
    $region10: #{model_forward.24} parent=5 // pred_check_branch
      %143 = sbr.rel (%p140) target = $region12
    $region11: #{model_forward.24} parent=5 // pred_region
      %s144 = ssub.s32 %s10, 1
      // Predicated region
      $region13: #{model_forward.24} parent=11 // pred_check
        %p145 = pneg %p83
      $region14: #{model_forward.24} parent=11 // pred_check_branch
        %147 = sbr.rel (%p145) target = $region16
      $region15: #{model_forward.24} parent=11 // pred_region
        _
      $region16: #{model_forward.24} parent=11 // pred_fallthru
        _
      // Predicated region
      $region17: #{model_forward.24} parent=11 // pred_check
        %p148 = pneg %p104
      $region18: #{model_forward.24} parent=11 // pred_check_branch
        %150 = sbr.rel (%p148) target = $region20
      $region19: #{model_forward.24} parent=11 // pred_region
        _
      $region20: #{model_forward.24} parent=11 // pred_fallthru
        _
    $region12: #{model_forward.24} parent=5 // pred_fallthru
      _
    %p151 = scmp.lt.s32.totalorder %s10, 2
    // Predicated region
    $region21: #{model_forward.24} parent=5 // pred_check
      %p152 = pneg %p151
    $region22: #{model_forward.24} parent=5 // pred_check_branch
      %154 = sbr.rel (%p152) target = $region24
    $region23: #{model_forward.24} parent=5 // pred_region
      // Predicated region
      $region25: #{model_forward.24} parent=23 // pred_check
        %p155 = pneg %p30
      $region26: #{model_forward.24} parent=23 // pred_check_branch
        %157 = sbr.rel (%p155) target = $region28
      $region27: #{model_forward.24} parent=23 // pred_region
        %p158 = scmp.lt.s32.totalorder %s10, 1
        %s159 = scalar_select %p158, %s10, 1
        %s160 = smul.addr %s159, 2
        %s161 = smul.addr %s160, 8
        %s162 = scalar_lea.vmem %s0, %s161
      $region28: #{model_forward.24} parent=23 // pred_fallthru
        _
      // Predicated region
      $region29: #{model_forward.24} parent=23 // pred_check
        %p163 = pneg %p56
      $region30: #{model_forward.24} parent=23 // pred_check_branch
        %165 = sbr.rel (%p163) target = $region32
      $region31: #{model_forward.24} parent=23 // pred_region
        %p166 = scmp.lt.s32.totalorder %s10, 1
        %s167 = scalar_select %p166, %s10, 1
        %s168 = smul.addr %s167, 2
        %s169 = smul.addr %s168, 8
        %s170 = scalar_lea.vmem %s1, %s169
      $region32: #{model_forward.24} parent=23 // pred_fallthru
        _
    $region24: #{model_forward.24} parent=5 // pred_fallthru
      _
    %p171 = scmp.le.s32.totalorder 1, %s10
    %p172 = scmp.lt.s32.totalorder %s10, 3
    %p173 = pnand %p171, %p172
    %p174 = pneg %p173
    // Predicated region
    $region33: #{model_forward.24} parent=5 // pred_check
      _
    $region34: #{model_forward.24} parent=5 // pred_check_branch
      %176 = sbr.rel (%p173) target = $region36
    $region35: #{model_forward.24} parent=5 // pred_region
      %s177 = ssub.s32 %s10, 1
      %p178 = scmp.lt.s32.totalorder %s15, 1
      %s179 = scalar_select %p178, %s15, 1
      %s180 = smul.addr %s179, 2
      %s181 = smul.addr %s180, 8
      %s182 = scalar_lea.vmem %s0, %s181
      %p183 = pneg %p36
      %p184 = pneg %p33
      %p185 = scmp.lt.s32.totalorder %s15, 1
      %s186 = scalar_select %p185, %s15, 1
      %s187 = smul.addr %s186, 2
      %s188 = smul.addr %s187, 8
      %s189 = scalar_lea.vmem %s1, %s188
      %p190 = pneg %p62
      %p191 = pneg %p59
      %p192 = pneg %p83
      %p193 = pneg %p80
      %p194 = pneg %p104
      %p195 = pneg %p101
      %p196 = pneg %p130
      %p197 = pneg %p127
      %p198 = scmp.lt.s32.totalorder %s15, 1
      %s199 = scalar_select %p198, %s15, 1
      %s200 = smul.addr %s199, 2
      %s201 = smul.addr %s200, 8
      %s202 = scalar_lea.vmem %s4, %s201
      %p203 = scmp.lt.s32.totalorder %s15, 1
      %s204 = scalar_select %p203, %s15, 1
      %s205 = smul.addr %s204, 2
      %s206 = smul.addr %s205, 8
      %s207 = scalar_lea.vmem %s0, %s206
      %p208 = scmp.lt.s32.totalorder %s15, 1
      %s209 = scalar_select %p208, %s15, 1
      %s210 = smul.addr %s209, 2
      %s211 = smul.addr %s210, 8
      %s212 = scalar_lea.vmem %s1, %s211
      %p213 = scmp.lt.s32.totalorder %s15, 1
      %s214 = scalar_select %p213, %s15, 1
      %s215 = smul.addr %s214, 2
      %s216 = smul.addr %s215, 8
      %s217 = scalar_lea.vmem %s4, %s216
      %v219 = vld [vmem:[%s207] sm:$0xff]
      %v220 = vld [vmem:[%s207 + $0x8] sm:$0xff]
      %v221 = vpack.c.bf16 %v219, %v219
      %v222 = vpack.c.bf16 %v220, %v220
      %v223 = vld [vmem:[%s2] sm:$0xff]
      %v224 = vld [vmem:[%s2 + $0x8] sm:$0xf]
      %v225 = vpack.c.bf16 %v223, %v223
      %v226 = vpack.c.bf16 %v224, %v224
      %v228 = vunpack.c.l.b16 %v222
      %v229 = vpack.c.b16 %v228, %v228
      %v231 = vshrl.u32 %v229, 16
      %v233 = vrot.slane %v231, 3
      %v236 = vunpack.c.l.b16 %v221
      %v237 = vpack.c.b16 %v228, %v236
      %v239 = vshrl.u32 %v237, 16
      %v241 = vrot.slane %v239, 7
      %v242 = vshll.u32 %v237, 16
      %v244 = vor.u32 %v241, %v242
      %vm246 = vcmask 1040384
      %vm247 = vsmask.f32 256
      %vm248 = vmand %vm246, %vm247
      %v249 = vsel %vm248, %v233, %v244
      %v250 = vrot.slane %v242, 1
      %v251 = vor.u32 %v239, %v250
      %v253 = vpack.c.b16 %v236, %v236
      %v255 = vshll.u32 %v253, 16
      %v257 = vrot.slane %v255, 1
      %vm259 = vcmask 1047552
      %vm260 = vsmask.f32 7424
      %vm261 = vmand %vm259, %vm260
      %v262 = vsel %vm261, %v251, %v257
      %v264 = vunpack.c.l.b16 %v225
      %v265 = vpack.c.b16 %v264, %v264
      %v266 = vrot.slane %v265, 2
      %vm267 = vcmask 31744
      %v268 = vsel %vm267, %v237, 0
      %vm270 = vcmask 1041408
      %v272 = vsel %vm270, %v266, 0
      %274 = vmatpush.bf16.msra.mxu0 0
      %275 = vmatpush.bf16.msra.mxu0 0
      %276 = vmatpush.bf16.msra.mxu0 0
      %277 = vmatpush.bf16.msra.mxu0 0
      %278 = vmatpush.bf16.msra.mxu0 0
      %279 = vmatpush.bf16.msra.mxu0 0
      %280 = vmatpush.bf16.msra.mxu0 0
      %281 = vmatpush.bf16.msra.mxu0 %v272
      %282 = vmatmul.bf16.gmra.mxu0 %v268
      %v283 = vpop.f32.mrf.mxu0
      %v284 = vadd.f32 0.0, %v283
      %v285 = vpop.f32.mrf.mxu0
      %v286 = vadd.f32 0.0, %v285
      %287 = vdwg.mxu0
      %v289 = vsel %vm267, %v249, 0
      %v292 = vsel %vm270, %v225, 0
      %294 = vmatpush.bf16.msra.mxu0 0
      %295 = vmatpush.bf16.msra.mxu0 0
      %296 = vmatpush.bf16.msra.mxu0 0
      %297 = vmatpush.bf16.msra.mxu0 0
      %298 = vmatpush.bf16.msra.mxu0 0
      %299 = vmatpush.bf16.msra.mxu0 0
      %300 = vmatpush.bf16.msra.mxu0 0
      %301 = vmatpush.bf16.msra.mxu0 %v292
      %302 = vmatmul.bf16.gmra.mxu0 %v289
      %v303 = vpop.f32.mrf.mxu0
      %v304 = vadd.f32 %v284, %v303
      %v305 = vpop.f32.mrf.mxu0
      %v306 = vadd.f32 %v286, %v305
      %307 = vdwg.mxu0
      %v309 = vsel %vm267, %v262, 0
      %v312 = vsel %vm270, %v226, 0
      %314 = vmatpush.bf16.msra.mxu0 0
      %315 = vmatpush.bf16.msra.mxu0 0
      %316 = vmatpush.bf16.msra.mxu0 0
      %317 = vmatpush.bf16.msra.mxu0 0
      %318 = vmatpush.bf16.msra.mxu0 0
      %319 = vmatpush.bf16.msra.mxu0 0
      %320 = vmatpush.bf16.msra.mxu0 0
      %321 = vmatpush.bf16.msra.mxu0 %v312
      %322 = vmatmul.bf16.gmra.mxu0 %v309
      %v323 = vpop.f32.mrf.mxu0
      %v324 = vadd.f32 0.0, %v323
      %v325 = vpop.f32.mrf.mxu0
      %v326 = vadd.f32 0.0, %v325
      %327 = vdwg.mxu0
      %v328 = vadd.f32 %v304, %v324
      %v329 = vadd.f32 %v306, %v326
      %v330 = vld [vmem:[%s212] sm:$0xff]
      %v331 = vld [vmem:[%s212 + $0x8] sm:$0xff]
      %v332 = vpack.c.bf16 %v331, %v330
      %v333 = vld [vmem:[%s3] sm:$0xf]
      %v334 = vpack.c.bf16 %v333, %v333
      %v336 = vsel %vm267, %v332, 0
      %v339 = vsel %vm270, %v334, 0
      %341 = vmatpush.bf16.msra.mxu0 0
      %342 = vmatpush.bf16.msra.mxu0 0
      %343 = vmatpush.bf16.msra.mxu0 0
      %344 = vmatpush.bf16.msra.mxu0 0
      %345 = vmatpush.bf16.msra.mxu0 0
      %346 = vmatpush.bf16.msra.mxu0 0
      %347 = vmatpush.bf16.msra.mxu0 0
      %348 = vmatpush.bf16.msra.mxu0 %v339
      %349 = vmatmul.bf16.gmra.mxu0 %v336
      %v350 = vpop.f32.mrf.mxu0
      %v351 = vadd.f32 0.0, %v350
      %v352 = vpop.f32.mrf.mxu0
      %v353 = vadd.f32 0.0, %v352
      %354 = vdwg.mxu0
      %v355 = vadd.f32 %v328, %v351
      %v356 = vadd.f32 %v329, %v353
      %vm357 = vcmask 261120
      %358 = vst.msk [vmem:[%s217] sm:$0xff] %vm357, %v355
      %359 = vst.msk [vmem:[%s217 + $0x8] sm:$0xff] %vm357, %v356
      %p360 = scmp.lt.s32.totalorder %s15, 1
      %s361 = scalar_select %p360, %s15, 1
      %s362 = smul.addr %s361, 2
      %s363 = smul.addr %s362, 8
      %s364 = scalar_lea.vmem %s4, %s363
      // Predicated region
      $region37: #{model_forward.24} parent=35 // pred_check
        %p365 = pneg %p127
      $region38: #{model_forward.24} parent=35 // pred_check_branch
        %367 = sbr.rel (%p365) target = $region40
      $region39: #{model_forward.24} parent=35 // pred_region
        _
      $region40: #{model_forward.24} parent=35 // pred_fallthru
        _
    $region36: #{model_forward.24} parent=5 // pred_fallthru
      _
    %p368 = scmp.le.s32.totalorder 2, %s10
    // Predicated region
    $region41: #{model_forward.24} parent=5 // pred_check
      %p369 = pneg %p368
    $region42: #{model_forward.24} parent=5 // pred_check_branch
      %371 = sbr.rel (%p369) target = $region44
    $region43: #{model_forward.24} parent=5 // pred_region
      %s372 = ssub.s32 %s10, 2
      // Predicated region
      $region45: #{model_forward.24} parent=43 // pred_check
        %p373 = pneg %p133
      $region46: #{model_forward.24} parent=43 // pred_check_branch
        %375 = sbr.rel (%p373) target = $region48
      $region47: #{model_forward.24} parent=43 // pred_region
        %p376 = scmp.lt.s32.totalorder %s16, 1
        %s377 = scalar_select %p376, %s16, 1
        %s378 = smul.addr %s377, 2
        %s379 = smul.addr %s378, 8
        %s380 = scalar_lea.vmem %s4, %s379
      $region48: #{model_forward.24} parent=43 // pred_fallthru
        _
    $region44: #{model_forward.24} parent=5 // pred_fallthru
      _
  $region6: #{model_forward.24} parent=0 // loop_footer
    %s14 = sadd.s32 1, %s10
  $region7: #{model_forward.24} parent=0 // loop_footer_branch
    %9 = sbr.rel target = $region3
  $region8: #{model_forward.24} parent=0 // loop_exit
    _

// kernel: reverse.7
$region0: #{reverse.7}
  %s0 = inlined_call_operand.vmem [shape: f32[2,4,8,7], index: 0, kind: input, shape index: {}]
  %s1 = inlined_call_operand.vmem [shape: f32[2,4,8,7], index: 1, kind: output, shape index: {}]
  %v2 = vlaneseq
  %v3 = vsub.s32 6, %v2
  %4 = vset.pattern.permute.xlu0 %v3
  $region1: #{reverse.7} parent=0
    #allocation0 [shape = 'u8[32768]{0}', space=vmem, size = 0x8000, scoped, tag = 'operand span for operand 0']
    #allocation1 [shape = 'u8[32768]{0}', space=vmem, size = 0x8000, scoped, tag = 'operand span for operand 1']
    // Predicated region
    $region2: #{reverse.7} parent=1 // pred_check
      _
    $region3: #{reverse.7} parent=1 // pred_check_branch
      %6 = sbr.rel (0) target = $region5
    $region4: #{reverse.7} parent=1 // pred_region
      // Predicated region
      $region6: #{reverse.7} parent=4 // pred_check
        _
      $region7: #{reverse.7} parent=4 // pred_check_branch
        %8 = sbr.rel (0) target = $region9
      $region8: #{reverse.7} parent=4 // pred_region
        // Predicated region
        $region21: #{reverse.7} parent=8 // pred_check
          _
        $region22: #{reverse.7} parent=8 // pred_check_branch
          %38 = sbr.rel (0) target = $region24
        $region23: #{reverse.7} parent=8 // pred_region
          loop: start=0, step=1, limit=1
          $region25: #{reverse.7} parent=23 // loop_pre_header
            _
          $region26: #{reverse.7} parent=23 // loop_header
            %s40 = sphi 0, %s44
            %p41 = scmp.ge.s32.totalorder %s40, 1
            %s45 = sphi %s0, %s0
            %s46 = sphi [#allocation0], [#allocation0]
          $region27: #{reverse.7} parent=23 // loop_header_branch
            %43 = sbr.rel (%p41) target = $region31
          $region28: #{reverse.7} parent=23 // loop_body
            %v47 = vld [vmem:[%s45] sm:$0xff]
            %48 = vst [vmem:[%s46] sm:$0xff] %v47
            %v49 = vld [vmem:[%s45 + $0x8] sm:$0xff]
            %50 = vst [vmem:[%s46 + $0x8] sm:$0xff] %v49
            %v51 = vld [vmem:[%s45 + $0x10] sm:$0xff]
            %52 = vst [vmem:[%s46 + $0x10] sm:$0xff] %v51
            %v53 = vld [vmem:[%s45 + $0x18] sm:$0xff]
            %54 = vst [vmem:[%s46 + $0x18] sm:$0xff] %v53
            %v55 = vld [vmem:[%s45 + $0x20] sm:$0xff]
            %56 = vst [vmem:[%s46 + $0x20] sm:$0xff] %v55
            %v57 = vld [vmem:[%s45 + $0x28] sm:$0xff]
            %58 = vst [vmem:[%s46 + $0x28] sm:$0xff] %v57
            %v59 = vld [vmem:[%s45 + $0x30] sm:$0xff]
            %60 = vst [vmem:[%s46 + $0x30] sm:$0xff] %v59
            %v61 = vld [vmem:[%s45 + $0x38] sm:$0xff]
            %62 = vst [vmem:[%s46 + $0x38] sm:$0xff] %v61
          $region29: #{reverse.7} parent=23 // loop_footer
            %s44 = sadd.s32 1, %s40
          $region30: #{reverse.7} parent=23 // loop_footer_branch
            %39 = sbr.rel target = $region26
          $region31: #{reverse.7} parent=23 // loop_exit
            _
        $region24: #{reverse.7} parent=8 // pred_fallthru
          _
        // Predicated region
        $region32: #{reverse.7} parent=8 // pred_check
          _
        $region33: #{reverse.7} parent=8 // pred_check_branch
          %64 = sbr.rel target = $region35
        $region34: #{reverse.7} parent=8 // pred_region
          _
        $region35: #{reverse.7} parent=8 // pred_fallthru
          _
      $region9: #{reverse.7} parent=4 // pred_fallthru
        _
      // Predicated region
      $region10: #{reverse.7} parent=4 // pred_check
        _
      $region11: #{reverse.7} parent=4 // pred_check_branch
        %10 = sbr.rel target = $region13
      $region12: #{reverse.7} parent=4 // pred_region
        %s12 = ssub.s32 256, 1
        loop: start=0, step=1, limit=1
        $region14: #{reverse.7} parent=12 // loop_pre_header
          _
        $region15: #{reverse.7} parent=12 // loop_header
          %s14 = sphi 0, %s18
          %p15 = scmp.ge.s32.totalorder %s14, 1
          %s19 = sphi %s0, %s0
          %s20 = sphi [#allocation0], [#allocation0]
        $region16: #{reverse.7} parent=12 // loop_header_branch
          %17 = sbr.rel (%p15) target = $region20
        $region17: #{reverse.7} parent=12 // loop_body
          %v21 = vld [vmem:[%s19] sm:%s12]
          %22 = vst [vmem:[%s20] sm:%s12] %v21
          %v23 = vld [vmem:[%s19 + $0x8] sm:%s12]
          %24 = vst [vmem:[%s20 + $0x8] sm:%s12] %v23
          %v25 = vld [vmem:[%s19 + $0x10] sm:%s12]
          %26 = vst [vmem:[%s20 + $0x10] sm:%s12] %v25
          %v27 = vld [vmem:[%s19 + $0x18] sm:%s12]
          %28 = vst [vmem:[%s20 + $0x18] sm:%s12] %v27
          %v29 = vld [vmem:[%s19 + $0x20] sm:%s12]
          %30 = vst [vmem:[%s20 + $0x20] sm:%s12] %v29
          %v31 = vld [vmem:[%s19 + $0x28] sm:%s12]
          %32 = vst [vmem:[%s20 + $0x28] sm:%s12] %v31
          %v33 = vld [vmem:[%s19 + $0x30] sm:%s12]
          %34 = vst [vmem:[%s20 + $0x30] sm:%s12] %v33
          %v35 = vld [vmem:[%s19 + $0x38] sm:%s12]
          %36 = vst [vmem:[%s20 + $0x38] sm:%s12] %v35
        $region18: #{reverse.7} parent=12 // loop_footer
          %s18 = sadd.s32 1, %s14
        $region19: #{reverse.7} parent=12 // loop_footer_branch
          %13 = sbr.rel target = $region15
        $region20: #{reverse.7} parent=12 // loop_exit
          _
      $region13: #{reverse.7} parent=4 // pred_fallthru
        _
    $region5: #{reverse.7} parent=1 // pred_fallthru
      _
    %65 = vnop
    %v66 = vld [vmem:[#allocation0] sm:$0xff]
    %67 = vperm.xlu0 %4, %v66
    %v68 = vpop.permute.xlu0 %67
    %69 = vst [vmem:[#allocation1] sm:$0xff] %v68
    %s70 = scalar_lea.vmem [#allocation1], 8
    %s71 = scalar_lea.vmem [#allocation0], 8
    %v72 = vld [vmem:[%s71] sm:$0xff]
    %73 = vperm.xlu0 %4, %v72
    %v74 = vpop.permute.xlu0 %73
    %75 = vst [vmem:[%s70] sm:$0xff] %v74
    %s76 = scalar_lea.vmem [#allocation1], 16
    %s77 = scalar_lea.vmem [#allocation0], 16
    %v78 = vld [vmem:[%s77] sm:$0xff]
    %79 = vperm.xlu0 %4, %v78
    %v80 = vpop.permute.xlu0 %79
    %81 = vst [vmem:[%s76] sm:$0xff] %v80
    %s82 = scalar_lea.vmem [#allocation1], 24
    %s83 = scalar_lea.vmem [#allocation0], 24
    %v84 = vld [vmem:[%s83] sm:$0xff]
    %85 = vperm.xlu0 %4, %v84
    %v86 = vpop.permute.xlu0 %85
    %87 = vst [vmem:[%s82] sm:$0xff] %v86
    %s88 = scalar_lea.vmem [#allocation1], 32
    %s89 = scalar_lea.vmem [#allocation0], 32
    %v90 = vld [vmem:[%s89] sm:$0xff]
    %91 = vperm.xlu0 %4, %v90
    %v92 = vpop.permute.xlu0 %91
    %93 = vst [vmem:[%s88] sm:$0xff] %v92
    %s94 = scalar_lea.vmem [#allocation1], 40
    %s95 = scalar_lea.vmem [#allocation0], 40
    %v96 = vld [vmem:[%s95] sm:$0xff]
    %97 = vperm.xlu0 %4, %v96
    %v98 = vpop.permute.xlu0 %97
    %99 = vst [vmem:[%s94] sm:$0xff] %v98
    %s100 = scalar_lea.vmem [#allocation1], 48
    %s101 = scalar_lea.vmem [#allocation0], 48
    %v102 = vld [vmem:[%s101] sm:$0xff]
    %103 = vperm.xlu0 %4, %v102
    %v104 = vpop.permute.xlu0 %103
    %105 = vst [vmem:[%s100] sm:$0xff] %v104
    %s106 = scalar_lea.vmem [#allocation1], 56
    %s107 = scalar_lea.vmem [#allocation0], 56
    %v108 = vld [vmem:[%s107] sm:$0xff]
    %109 = vperm.xlu0 %4, %v108
    %v110 = vpop.permute.xlu0 %109
    %111 = vst [vmem:[%s106] sm:$0xff] %v110
    // Predicated region
    $region36: #{reverse.7} parent=1 // pred_check
      _
    $region37: #{reverse.7} parent=1 // pred_check_branch
      %113 = sbr.rel (0) target = $region39
    $region38: #{reverse.7} parent=1 // pred_region
      // Predicated region
      $region40: #{reverse.7} parent=38 // pred_check
        _
      $region41: #{reverse.7} parent=38 // pred_check_branch
        %115 = sbr.rel (0) target = $region43
      $region42: #{reverse.7} parent=38 // pred_region
        // Predicated region
        $region55: #{reverse.7} parent=42 // pred_check
          _
        $region56: #{reverse.7} parent=42 // pred_check_branch
          %145 = sbr.rel (0) target = $region58
        $region57: #{reverse.7} parent=42 // pred_region
          loop: start=0, step=1, limit=1
          $region59: #{reverse.7} parent=57 // loop_pre_header
            _
          $region60: #{reverse.7} parent=57 // loop_header
            %s147 = sphi 0, %s151
            %p148 = scmp.ge.s32.totalorder %s147, 1
            %s152 = sphi [#allocation1], [#allocation1]
            %s153 = sphi %s1, %s1
          $region61: #{reverse.7} parent=57 // loop_header_branch
            %150 = sbr.rel (%p148) target = $region65
          $region62: #{reverse.7} parent=57 // loop_body
            %v154 = vld [vmem:[%s152] sm:$0xff]
            %155 = vst [vmem:[%s153] sm:$0xff] %v154
            %v156 = vld [vmem:[%s152 + $0x8] sm:$0xff]
            %157 = vst [vmem:[%s153 + $0x8] sm:$0xff] %v156
            %v158 = vld [vmem:[%s152 + $0x10] sm:$0xff]
            %159 = vst [vmem:[%s153 + $0x10] sm:$0xff] %v158
            %v160 = vld [vmem:[%s152 + $0x18] sm:$0xff]
            %161 = vst [vmem:[%s153 + $0x18] sm:$0xff] %v160
            %v162 = vld [vmem:[%s152 + $0x20] sm:$0xff]
            %163 = vst [vmem:[%s153 + $0x20] sm:$0xff] %v162
            %v164 = vld [vmem:[%s152 + $0x28] sm:$0xff]
            %165 = vst [vmem:[%s153 + $0x28] sm:$0xff] %v164
            %v166 = vld [vmem:[%s152 + $0x30] sm:$0xff]
            %167 = vst [vmem:[%s153 + $0x30] sm:$0xff] %v166
            %v168 = vld [vmem:[%s152 + $0x38] sm:$0xff]
            %169 = vst [vmem:[%s153 + $0x38] sm:$0xff] %v168
          $region63: #{reverse.7} parent=57 // loop_footer
            %s151 = sadd.s32 1, %s147
          $region64: #{reverse.7} parent=57 // loop_footer_branch
            %146 = sbr.rel target = $region60
          $region65: #{reverse.7} parent=57 // loop_exit
            _
        $region58: #{reverse.7} parent=42 // pred_fallthru
          _
        // Predicated region
        $region66: #{reverse.7} parent=42 // pred_check
          _
        $region67: #{reverse.7} parent=42 // pred_check_branch
          %171 = sbr.rel target = $region69
        $region68: #{reverse.7} parent=42 // pred_region
          _
        $region69: #{reverse.7} parent=42 // pred_fallthru
          _
      $region43: #{reverse.7} parent=38 // pred_fallthru
        _
      // Predicated region
      $region44: #{reverse.7} parent=38 // pred_check
        _
      $region45: #{reverse.7} parent=38 // pred_check_branch
        %117 = sbr.rel target = $region47
      $region46: #{reverse.7} parent=38 // pred_region
        %s119 = ssub.s32 256, 1
        loop: start=0, step=1, limit=1
        $region48: #{reverse.7} parent=46 // loop_pre_header
          _
        $region49: #{reverse.7} parent=46 // loop_header
          %s121 = sphi 0, %s125
          %p122 = scmp.ge.s32.totalorder %s121, 1
          %s126 = sphi [#allocation1], [#allocation1]
          %s127 = sphi %s1, %s1
        $region50: #{reverse.7} parent=46 // loop_header_branch
          %124 = sbr.rel (%p122) target = $region54
        $region51: #{reverse.7} parent=46 // loop_body
          %v128 = vld [vmem:[%s126] sm:%s119]
          %129 = vst [vmem:[%s127] sm:%s119] %v128
          %v130 = vld [vmem:[%s126 + $0x8] sm:%s119]
          %131 = vst [vmem:[%s127 + $0x8] sm:%s119] %v130
          %v132 = vld [vmem:[%s126 + $0x10] sm:%s119]
          %133 = vst [vmem:[%s127 + $0x10] sm:%s119] %v132
          %v134 = vld [vmem:[%s126 + $0x18] sm:%s119]
          %135 = vst [vmem:[%s127 + $0x18] sm:%s119] %v134
          %v136 = vld [vmem:[%s126 + $0x20] sm:%s119]
          %137 = vst [vmem:[%s127 + $0x20] sm:%s119] %v136
          %v138 = vld [vmem:[%s126 + $0x28] sm:%s119]
          %139 = vst [vmem:[%s127 + $0x28] sm:%s119] %v138
          %v140 = vld [vmem:[%s126 + $0x30] sm:%s119]
          %141 = vst [vmem:[%s127 + $0x30] sm:%s119] %v140
          %v142 = vld [vmem:[%s126 + $0x38] sm:%s119]
          %143 = vst [vmem:[%s127 + $0x38] sm:%s119] %v142
        $region52: #{reverse.7} parent=46 // loop_footer
          %s125 = sadd.s32 1, %s121
        $region53: #{reverse.7} parent=46 // loop_footer_branch
          %120 = sbr.rel target = $region49
        $region54: #{reverse.7} parent=46 // loop_exit
          _
      $region47: #{reverse.7} parent=38 // pred_fallthru
        _
    $region39: #{reverse.7} parent=1 // pred_fallthru
      _
    %172 = vnop

// kernel: model_forward.26
$region0: #{model_forward.26}
  #allocation0 [shape = 'u32[]', space=smem, size = 0x4, offset = 0x4, fixed_abs, tag = 'smem constant byte address 0x4 - core index']
  #allocation1 [shape = 'u32[72,128]{1,0:T(1,128)}', space=vmem, size = 0x9000, scoped, tag = 'internal scratch']
  %s0 = inlined_call_operand.vmem [shape: f32[2,32,16], index: 0, kind: input, shape index: {}]
  %s1 = inlined_call_operand.vmem [shape: f32[2,16,16], index: 1, kind: input, shape index: {}]
  %s2 = inlined_call_operand.vmem [shape: f32[2,32,16], index: 2, kind: output, shape index: {}]
  %s3 = sld [smem:[#allocation0]]
  $region41: #{model_forward.26} parent=0
    _
  %s5 = ssub.s32 1, %s3
  %s6 = scalar_select 0, %s5, %s3
  loop: start=0, step=1, limit=4
  $region2: #{model_forward.26} parent=0 // loop_pre_header
    _
  $region3: #{model_forward.26} parent=0 // loop_header
    %s8 = sphi 0, %s12
    %p9 = scmp.ge.s32.totalorder %s8, 4
    %s18 = sphi 0, %s20
    %s21 = sphi 0, %s18
    %s22 = sphi 0, %s21
    %s38 = sphi 0, %s22
    %s44 = sphi 0, %s46
    %s47 = sphi 0, %s44
    %s48 = sphi 0, %s47
    %s64 = sphi 0, %s48
    %s70 = sphi 0, %s72
    %s73 = sphi 0, %s70
    %s74 = sphi 0, %s73
    %s90 = sphi 0, %s74
  $region4: #{model_forward.26} parent=0 // loop_header_branch
    %11 = sbr.rel (%p9) target = $region8
  $region5: #{model_forward.26} parent=0 // loop_body
    %s13 = ssub.s32 %s8, 1
    %s14 = ssub.s32 %s8, 2
    %s15 = sadd.s32 %s8, 1
    %s16 = ssub.s32 %s8, %s15
    %p17 = scmp.eq.s32.totalorder %s16, 0
    %s19 = sadd.s32 %s18, 1
    %s20 = scalar_select %p17, %s18, %s19
    %p23 = pneg %p17
    %p24 = scmp.eq.s32.totalorder %s8, 1
    %p25 = por %p23, %p24
    %p26 = scmp.ne.s32.totalorder %s18, %s21
    %p27 = scmp.eq.s32.totalorder %s8, 0
    %p28 = por %p26, %p27
    %p29 = scmp.ne.s32.totalorder %s18, %s21
    %p30 = scmp.eq.s32.totalorder %s13, 1
    %p31 = por %p29, %p30
    %p32 = scmp.ne.s32.totalorder %s21, %s22
    %p33 = scmp.eq.s32.totalorder %s13, 0
    %p34 = por %p32, %p33
    %p35 = scmp.ne.s32.totalorder %s21, %s22
    %p36 = scmp.eq.s32.totalorder %s14, 1
    %p37 = por %p35, %p36
    %p39 = scmp.ne.s32.totalorder %s22, %s38
    %p40 = scmp.eq.s32.totalorder %s14, 0
    %p41 = por %p39, %p40
    %s42 = ssub.s32 %s8, %s15
    %p43 = scmp.eq.s32.totalorder %s42, 0
    %s45 = sadd.s32 %s44, 1
    %s46 = scalar_select %p43, %s44, %s45
    %p49 = pneg %p43
    %p50 = scmp.eq.s32.totalorder %s8, 1
    %p51 = por %p49, %p50
    %p52 = scmp.ne.s32.totalorder %s44, %s47
    %p53 = scmp.eq.s32.totalorder %s8, 0
    %p54 = por %p52, %p53
    %p55 = scmp.ne.s32.totalorder %s44, %s47
    %p56 = scmp.eq.s32.totalorder %s13, 1
    %p57 = por %p55, %p56
    %p58 = scmp.ne.s32.totalorder %s47, %s48
    %p59 = scmp.eq.s32.totalorder %s13, 0
    %p60 = por %p58, %p59
    %p61 = scmp.ne.s32.totalorder %s47, %s48
    %p62 = scmp.eq.s32.totalorder %s14, 1
    %p63 = por %p61, %p62
    %p65 = scmp.ne.s32.totalorder %s48, %s64
    %p66 = scmp.eq.s32.totalorder %s14, 0
    %p67 = por %p65, %p66
    %s68 = ssub.s32 %s8, %s15
    %p69 = scmp.eq.s32.totalorder %s68, 0
    %s71 = sadd.s32 %s70, 1
    %s72 = scalar_select %p69, %s70, %s71
    %p75 = pneg %p69
    %p76 = scmp.eq.s32.totalorder %s8, 1
    %p77 = por %p75, %p76
    %p78 = scmp.ne.s32.totalorder %s70, %s73
    %p79 = scmp.eq.s32.totalorder %s8, 0
    %p80 = por %p78, %p79
    %p81 = scmp.ne.s32.totalorder %s70, %s73
    %p82 = scmp.eq.s32.totalorder %s13, 1
    %p83 = por %p81, %p82
    %p84 = scmp.ne.s32.totalorder %s73, %s74
    %p85 = scmp.eq.s32.totalorder %s13, 0
    %p86 = por %p84, %p85
    %p87 = scmp.ne.s32.totalorder %s73, %s74
    %p88 = scmp.eq.s32.totalorder %s14, 1
    %p89 = por %p87, %p88
    %p91 = scmp.ne.s32.totalorder %s74, %s90
    %p92 = scmp.eq.s32.totalorder %s14, 0
    %p93 = por %p91, %p92
    %p94 = scmp.le.s32.totalorder 1, %s8
    %p95 = scmp.lt.s32.totalorder %s8, 3
    %p96 = pnand %p94, %p95
    %p97 = pneg %p96
    // Predicated region
    $region9: #{model_forward.26} parent=5 // pred_check
      _
    $region10: #{model_forward.26} parent=5 // pred_check_branch
      %99 = sbr.rel (%p96) target = $region12
    $region11: #{model_forward.26} parent=5 // pred_region
      %s100 = ssub.s32 %s8, 1
    $region12: #{model_forward.26} parent=5 // pred_fallthru
      _
    %p101 = scmp.lt.s32.totalorder %s8, 2
    // Predicated region
    $region13: #{model_forward.26} parent=5 // pred_check
      %p102 = pneg %p101
    $region14: #{model_forward.26} parent=5 // pred_check_branch
      %104 = sbr.rel (%p102) target = $region16
    $region15: #{model_forward.26} parent=5 // pred_region
      // Predicated region
      $region17: #{model_forward.26} parent=15 // pred_check
        %p105 = pneg %p28
      $region18: #{model_forward.26} parent=15 // pred_check_branch
        %107 = sbr.rel (%p105) target = $region20
      $region19: #{model_forward.26} parent=15 // pred_region
        %p108 = scmp.lt.s32.totalorder %s8, 1
        %s109 = scalar_select %p108, %s8, 1
        %s110 = smul.addr %s109, 4
        %s111 = smul.addr %s110, 8
        %s112 = scalar_lea.vmem %s0, %s111
      $region20: #{model_forward.26} parent=15 // pred_fallthru
        _
      // Predicated region
      $region21: #{model_forward.26} parent=15 // pred_check
        %p113 = pneg %p54
      $region22: #{model_forward.26} parent=15 // pred_check_branch
        %115 = sbr.rel (%p113) target = $region24
      $region23: #{model_forward.26} parent=15 // pred_region
        %p116 = scmp.lt.s32.totalorder %s8, 1
        %s117 = scalar_select %p116, %s8, 1
        %s118 = smul.addr %s117, 2
        %s119 = smul.addr %s118, 8
        %s120 = scalar_lea.vmem %s1, %s119
      $region24: #{model_forward.26} parent=15 // pred_fallthru
        _
    $region16: #{model_forward.26} parent=5 // pred_fallthru
      _
    %p121 = scmp.le.s32.totalorder 1, %s8
    %p122 = scmp.lt.s32.totalorder %s8, 3
    %p123 = pnand %p121, %p122
    %p124 = pneg %p123
    // Predicated region
    $region25: #{model_forward.26} parent=5 // pred_check
      _
    $region26: #{model_forward.26} parent=5 // pred_check_branch
      %126 = sbr.rel (%p123) target = $region28
    $region27: #{model_forward.26} parent=5 // pred_region
      %s127 = ssub.s32 %s8, 1
      %p128 = scmp.lt.s32.totalorder %s13, 1
      %s129 = scalar_select %p128, %s13, 1
      %s130 = smul.addr %s129, 4
      %s131 = smul.addr %s130, 8
      %s132 = scalar_lea.vmem %s0, %s131
      %p133 = pneg %p34
      %p134 = pneg %p31
      %p135 = scmp.lt.s32.totalorder %s13, 1
      %s136 = scalar_select %p135, %s13, 1
      %s137 = smul.addr %s136, 2
      %s138 = smul.addr %s137, 8
      %s139 = scalar_lea.vmem %s1, %s138
      %p140 = pneg %p60
      %p141 = pneg %p57
      %p142 = pneg %p86
      %p143 = pneg %p83
      %p144 = scmp.lt.s32.totalorder %s13, 1
      %s145 = scalar_select %p144, %s13, 1
      %s146 = smul.addr %s145, 4
      %s147 = smul.addr %s146, 8
      %s148 = scalar_lea.vmem %s2, %s147
      %p149 = scmp.lt.s32.totalorder %s13, 1
      %s150 = scalar_select %p149, %s13, 1
      %s151 = smul.addr %s150, 4
      %s152 = smul.addr %s151, 8
      %s153 = scalar_lea.vmem %s0, %s152
      %p154 = scmp.lt.s32.totalorder %s13, 1
      %s155 = scalar_select %p154, %s13, 1
      %s156 = smul.addr %s155, 2
      %s157 = smul.addr %s156, 8
      %s158 = scalar_lea.vmem %s1, %s157
      %p159 = scmp.lt.s32.totalorder %s13, 1
      %s160 = scalar_select %p159, %s13, 1
      %s161 = smul.addr %s160, 4
      %s162 = smul.addr %s161, 8
      %s163 = scalar_lea.vmem %s2, %s162
      %v164 = vld [vmem:[%s153] sm:$0xff]
      %v165 = vld [vmem:[%s153 + $0x8] sm:$0xff]
      %v166 = vld [vmem:[%s153 + $0x10] sm:$0xff]
      %v167 = vld [vmem:[%s153 + $0x18] sm:$0xff]
      %v168 = vld [vmem:[%s158] sm:$0xff]
      %v169 = vld [vmem:[%s158 + $0x8] sm:$0xff]
      %vm170 = vcmask 130048
      %v172 = vsel %vm170, %v164, 0
      %v175 = vsel %vm170, %v165, 0
      %v178 = vsel %vm170, %v166, 0
      %v181 = vsel %vm170, %v167, 0
      %183 = vmatpush.msra.mxu0 0.0
      %184 = vmatpush.msra.mxu0 0.0
      %185 = vmatpush.msra.mxu0 0.0
      %186 = vmatpush.msra.mxu0 0.0
      %187 = vmatpush.msra.mxu0 0.0
      %188 = vmatpush.msra.mxu0 0.0
      %189 = vmatpush.msra.mxu0 0.0
      %190 = vmatpush.msra.mxu0 0.0
      %191 = vmatpush.msra.mxu0 0.0
      %192 = vmatpush.msra.mxu0 0.0
      %193 = vmatpush.msra.mxu0 0.0
      %194 = vmatpush.msra.mxu0 0.0
      %195 = vmatpush.msra.mxu0 0.0
      %196 = vmatpush.msra.mxu0 0.0
      %197 = vmatpush.msra.mxu0 %v169
      %198 = vmatpush.msra.mxu0 %v168
      %199 = vmatmul.f32.gmra.mxu0 %v172
      %v200 = vpop.f32.mrf.mxu0
      %v201 = vadd.f32 0.0, %v200
      %202 = vmatmul.f32.gmra.mxu0 %v175
      %v203 = vpop.f32.mrf.mxu0
      %v204 = vadd.f32 0.0, %v203
      %205 = vmatmul.f32.gmra.mxu0 %v178
      %v206 = vpop.f32.mrf.mxu0
      %v207 = vadd.f32 0.0, %v206
      %208 = vmatmul.f32.gmra.mxu0 %v181
      %v209 = vpop.f32.mrf.mxu0
      %v210 = vadd.f32 0.0, %v209
      %211 = vdwg.mxu0
      %212 = vst.msk [vmem:[%s163] sm:$0xff] %vm170, %v201
      %213 = vst.msk [vmem:[%s163 + $0x8] sm:$0xff] %vm170, %v204
      %214 = vst.msk [vmem:[%s163 + $0x10] sm:$0xff] %vm170, %v207
      %215 = vst.msk [vmem:[%s163 + $0x18] sm:$0xff] %vm170, %v210
      %p216 = scmp.lt.s32.totalorder %s13, 1
      %s217 = scalar_select %p216, %s13, 1
      %s218 = smul.addr %s217, 4
      %s219 = smul.addr %s218, 8
      %s220 = scalar_lea.vmem %s2, %s219
      // Predicated region
      $region29: #{model_forward.26} parent=27 // pred_check
        %p221 = pneg %p83
      $region30: #{model_forward.26} parent=27 // pred_check_branch
        %223 = sbr.rel (%p221) target = $region32
      $region31: #{model_forward.26} parent=27 // pred_region
        _
      $region32: #{model_forward.26} parent=27 // pred_fallthru
        _
    $region28: #{model_forward.26} parent=5 // pred_fallthru
      _
    %p224 = scmp.le.s32.totalorder 2, %s8
    // Predicated region
    $region33: #{model_forward.26} parent=5 // pred_check
      %p225 = pneg %p224
    $region34: #{model_forward.26} parent=5 // pred_check_branch
      %227 = sbr.rel (%p225) target = $region36
    $region35: #{model_forward.26} parent=5 // pred_region
      %s228 = ssub.s32 %s8, 2
      // Predicated region
      $region37: #{model_forward.26} parent=35 // pred_check
        %p229 = pneg %p89
      $region38: #{model_forward.26} parent=35 // pred_check_branch
        %231 = sbr.rel (%p229) target = $region40
      $region39: #{model_forward.26} parent=35 // pred_region
        %p232 = scmp.lt.s32.totalorder %s14, 1
        %s233 = scalar_select %p232, %s14, 1
        %s234 = smul.addr %s233, 4
        %s235 = smul.addr %s234, 8
        %s236 = scalar_lea.vmem %s2, %s235
      $region40: #{model_forward.26} parent=35 // pred_fallthru
        _
    $region36: #{model_forward.26} parent=5 // pred_fallthru
      _
  $region6: #{model_forward.26} parent=0 // loop_footer
    %s12 = sadd.s32 1, %s8
  $region7: #{model_forward.26} parent=0 // loop_footer_branch
    %7 = sbr.rel target = $region3
  $region8: #{model_forward.26} parent=0 // loop_exit
    _

// kernel: model_forward.28
$region0: #{model_forward.28}
  #allocation0 [shape = 'u32[]', space=smem, size = 0x4, offset = 0x4, fixed_abs, tag = 'smem constant byte address 0x4 - core index']
  #allocation1 [shape = 'u32[72,128]{1,0:T(1,128)}', space=vmem, size = 0x9000, scoped, tag = 'internal scratch']
  %s0 = inlined_call_operand.vmem [shape: f32[2,16,32], index: 0, kind: input, shape index: {}]
  %s1 = inlined_call_operand.vmem [shape: f32[2,16,32], index: 1, kind: input, shape index: {}]
  %s2 = inlined_call_operand.vmem [shape: f32[2,16,32], index: 2, kind: output, shape index: {0}]
  %s3 = inlined_call_operand.vmem [shape: f32[2,16,32], index: 3, kind: output, shape index: {1}]
  %4 = xla_tuple %s2, %s3
  %s5 = sld [smem:[#allocation0]]
  $region49: #{model_forward.28} parent=0
    _
  %s7 = ssub.s32 1, %s5
  %s8 = scalar_select 0, %s7, %s5
  loop: start=0, step=1, limit=4
  $region2: #{model_forward.28} parent=0 // loop_pre_header
    _
  $region3: #{model_forward.28} parent=0 // loop_header
    %s10 = sphi 0, %s14
    %p11 = scmp.ge.s32.totalorder %s10, 4
    %s20 = sphi 0, %s22
    %s23 = sphi 0, %s20
    %s24 = sphi 0, %s23
    %s40 = sphi 0, %s24
    %s46 = sphi 0, %s48
    %s49 = sphi 0, %s46
    %s50 = sphi 0, %s49
    %s66 = sphi 0, %s50
    %s72 = sphi 0, %s74
    %s75 = sphi 0, %s72
    %s76 = sphi 0, %s75
    %s92 = sphi 0, %s76
    %s98 = sphi 0, %s100
    %s101 = sphi 0, %s98
    %s102 = sphi 0, %s101
    %s118 = sphi 0, %s102
  $region4: #{model_forward.28} parent=0 // loop_header_branch
    %13 = sbr.rel (%p11) target = $region8
  $region5: #{model_forward.28} parent=0 // loop_body
    %s15 = ssub.s32 %s10, 1
    %s16 = ssub.s32 %s10, 2
    %s17 = sadd.s32 %s10, 1
    %s18 = ssub.s32 %s10, %s17
    %p19 = scmp.eq.s32.totalorder %s18, 0
    %s21 = sadd.s32 %s20, 1
    %s22 = scalar_select %p19, %s20, %s21
    %p25 = pneg %p19
    %p26 = scmp.eq.s32.totalorder %s10, 1
    %p27 = por %p25, %p26
    %p28 = scmp.ne.s32.totalorder %s20, %s23
    %p29 = scmp.eq.s32.totalorder %s10, 0
    %p30 = por %p28, %p29
    %p31 = scmp.ne.s32.totalorder %s20, %s23
    %p32 = scmp.eq.s32.totalorder %s15, 1
    %p33 = por %p31, %p32
    %p34 = scmp.ne.s32.totalorder %s23, %s24
    %p35 = scmp.eq.s32.totalorder %s15, 0
    %p36 = por %p34, %p35
    %p37 = scmp.ne.s32.totalorder %s23, %s24
    %p38 = scmp.eq.s32.totalorder %s16, 1
    %p39 = por %p37, %p38
    %p41 = scmp.ne.s32.totalorder %s24, %s40
    %p42 = scmp.eq.s32.totalorder %s16, 0
    %p43 = por %p41, %p42
    %s44 = ssub.s32 %s10, %s17
    %p45 = scmp.eq.s32.totalorder %s44, 0
    %s47 = sadd.s32 %s46, 1
    %s48 = scalar_select %p45, %s46, %s47
    %p51 = pneg %p45
    %p52 = scmp.eq.s32.totalorder %s10, 1
    %p53 = por %p51, %p52
    %p54 = scmp.ne.s32.totalorder %s46, %s49
    %p55 = scmp.eq.s32.totalorder %s10, 0
    %p56 = por %p54, %p55
    %p57 = scmp.ne.s32.totalorder %s46, %s49
    %p58 = scmp.eq.s32.totalorder %s15, 1
    %p59 = por %p57, %p58
    %p60 = scmp.ne.s32.totalorder %s49, %s50
    %p61 = scmp.eq.s32.totalorder %s15, 0
    %p62 = por %p60, %p61
    %p63 = scmp.ne.s32.totalorder %s49, %s50
    %p64 = scmp.eq.s32.totalorder %s16, 1
    %p65 = por %p63, %p64
    %p67 = scmp.ne.s32.totalorder %s50, %s66
    %p68 = scmp.eq.s32.totalorder %s16, 0
    %p69 = por %p67, %p68
    %s70 = ssub.s32 %s10, %s17
    %p71 = scmp.eq.s32.totalorder %s70, 0
    %s73 = sadd.s32 %s72, 1
    %s74 = scalar_select %p71, %s72, %s73
    %p77 = pneg %p71
    %p78 = scmp.eq.s32.totalorder %s10, 1
    %p79 = por %p77, %p78
    %p80 = scmp.ne.s32.totalorder %s72, %s75
    %p81 = scmp.eq.s32.totalorder %s10, 0
    %p82 = por %p80, %p81
    %p83 = scmp.ne.s32.totalorder %s72, %s75
    %p84 = scmp.eq.s32.totalorder %s15, 1
    %p85 = por %p83, %p84
    %p86 = scmp.ne.s32.totalorder %s75, %s76
    %p87 = scmp.eq.s32.totalorder %s15, 0
    %p88 = por %p86, %p87
    %p89 = scmp.ne.s32.totalorder %s75, %s76
    %p90 = scmp.eq.s32.totalorder %s16, 1
    %p91 = por %p89, %p90
    %p93 = scmp.ne.s32.totalorder %s76, %s92
    %p94 = scmp.eq.s32.totalorder %s16, 0
    %p95 = por %p93, %p94
    %s96 = ssub.s32 %s10, %s17
    %p97 = scmp.eq.s32.totalorder %s96, 0
    %s99 = sadd.s32 %s98, 1
    %s100 = scalar_select %p97, %s98, %s99
    %p103 = pneg %p97
    %p104 = scmp.eq.s32.totalorder %s10, 1
    %p105 = por %p103, %p104
    %p106 = scmp.ne.s32.totalorder %s98, %s101
    %p107 = scmp.eq.s32.totalorder %s10, 0
    %p108 = por %p106, %p107
    %p109 = scmp.ne.s32.totalorder %s98, %s101
    %p110 = scmp.eq.s32.totalorder %s15, 1
    %p111 = por %p109, %p110
    %p112 = scmp.ne.s32.totalorder %s101, %s102
    %p113 = scmp.eq.s32.totalorder %s15, 0
    %p114 = por %p112, %p113
    %p115 = scmp.ne.s32.totalorder %s101, %s102
    %p116 = scmp.eq.s32.totalorder %s16, 1
    %p117 = por %p115, %p116
    %p119 = scmp.ne.s32.totalorder %s102, %s118
    %p120 = scmp.eq.s32.totalorder %s16, 0
    %p121 = por %p119, %p120
    %p122 = scmp.le.s32.totalorder 1, %s10
    %p123 = scmp.lt.s32.totalorder %s10, 3
    %p124 = pnand %p122, %p123
    %p125 = pneg %p124
    // Predicated region
    $region9: #{model_forward.28} parent=5 // pred_check
      _
    $region10: #{model_forward.28} parent=5 // pred_check_branch
      %127 = sbr.rel (%p124) target = $region12
    $region11: #{model_forward.28} parent=5 // pred_region
      %s128 = ssub.s32 %s10, 1
    $region12: #{model_forward.28} parent=5 // pred_fallthru
      _
    %p129 = scmp.lt.s32.totalorder %s10, 2
    // Predicated region
    $region13: #{model_forward.28} parent=5 // pred_check
      %p130 = pneg %p129
    $region14: #{model_forward.28} parent=5 // pred_check_branch
      %132 = sbr.rel (%p130) target = $region16
    $region15: #{model_forward.28} parent=5 // pred_region
      // Predicated region
      $region17: #{model_forward.28} parent=15 // pred_check
        %p133 = pneg %p30
      $region18: #{model_forward.28} parent=15 // pred_check_branch
        %135 = sbr.rel (%p133) target = $region20
      $region19: #{model_forward.28} parent=15 // pred_region
        %p136 = scmp.lt.s32.totalorder %s10, 1
        %s137 = scalar_select %p136, %s10, 1
        %s138 = smul.addr %s137, 2
        %s139 = smul.addr %s138, 8
        %s140 = scalar_lea.vmem %s0, %s139
      $region20: #{model_forward.28} parent=15 // pred_fallthru
        _
      // Predicated region
      $region21: #{model_forward.28} parent=15 // pred_check
        %p141 = pneg %p56
      $region22: #{model_forward.28} parent=15 // pred_check_branch
        %143 = sbr.rel (%p141) target = $region24
      $region23: #{model_forward.28} parent=15 // pred_region
        %p144 = scmp.lt.s32.totalorder %s10, 1
        %s145 = scalar_select %p144, %s10, 1
        %s146 = smul.addr %s145, 2
        %s147 = smul.addr %s146, 8
        %s148 = scalar_lea.vmem %s1, %s147
      $region24: #{model_forward.28} parent=15 // pred_fallthru
        _
    $region16: #{model_forward.28} parent=5 // pred_fallthru
      _
    %p149 = scmp.le.s32.totalorder 1, %s10
    %p150 = scmp.lt.s32.totalorder %s10, 3
    %p151 = pnand %p149, %p150
    %p152 = pneg %p151
    // Predicated region
    $region25: #{model_forward.28} parent=5 // pred_check
      _
    $region26: #{model_forward.28} parent=5 // pred_check_branch
      %154 = sbr.rel (%p151) target = $region28
    $region27: #{model_forward.28} parent=5 // pred_region
      %s155 = ssub.s32 %s10, 1
      %p156 = scmp.lt.s32.totalorder %s15, 1
      %s157 = scalar_select %p156, %s15, 1
      %s158 = smul.addr %s157, 2
      %s159 = smul.addr %s158, 8
      %s160 = scalar_lea.vmem %s0, %s159
      %p161 = pneg %p36
      %p162 = pneg %p33
      %p163 = scmp.lt.s32.totalorder %s15, 1
      %s164 = scalar_select %p163, %s15, 1
      %s165 = smul.addr %s164, 2
      %s166 = smul.addr %s165, 8
      %s167 = scalar_lea.vmem %s1, %s166
      %p168 = pneg %p62
      %p169 = pneg %p59
      %p170 = pneg %p88
      %p171 = pneg %p85
      %p172 = scmp.lt.s32.totalorder %s15, 1
      %s173 = scalar_select %p172, %s15, 1
      %s174 = smul.addr %s173, 2
      %s175 = smul.addr %s174, 8
      %s176 = scalar_lea.vmem %s2, %s175
      %p177 = pneg %p114
      %p178 = pneg %p111
      %p179 = scmp.lt.s32.totalorder %s15, 1
      %s180 = scalar_select %p179, %s15, 1
      %s181 = smul.addr %s180, 2
      %s182 = smul.addr %s181, 8
      %s183 = scalar_lea.vmem %s3, %s182
      %p184 = scmp.lt.s32.totalorder %s15, 1
      %s185 = scalar_select %p184, %s15, 1
      %s186 = smul.addr %s185, 2
      %s187 = smul.addr %s186, 8
      %s188 = scalar_lea.vmem %s0, %s187
      %p189 = scmp.lt.s32.totalorder %s15, 1
      %s190 = scalar_select %p189, %s15, 1
      %s191 = smul.addr %s190, 2
      %s192 = smul.addr %s191, 8
      %s193 = scalar_lea.vmem %s1, %s192
      %p194 = scmp.lt.s32.totalorder %s15, 1
      %s195 = scalar_select %p194, %s15, 1
      %s196 = smul.addr %s195, 2
      %s197 = smul.addr %s196, 8
      %s198 = scalar_lea.vmem %s2, %s197
      %p199 = scmp.lt.s32.totalorder %s15, 1
      %s200 = scalar_select %p199, %s15, 1
      %s201 = smul.addr %s200, 2
      %s202 = smul.addr %s201, 8
      %s203 = scalar_lea.vmem %s3, %s202
      %v204 = vld [vmem:[%s188] sm:$0xff]
      %v205 = vld [vmem:[%s188 + $0x8] sm:$0xff]
      %v206 = vld [vmem:[%s193] sm:$0xff]
      %v207 = vld [vmem:[%s193 + $0x8] sm:$0xff]
      %v208 = vadd.f32 %v204, %v206
      %v209 = vadd.f32 %v205, %v207
      %v210 = vperm.slane %v208, 0
      %v211 = vperm.slane %v209, 7
      %vm214 = vcmask 1041408
      %v215 = vrot.slane %v208, 6
      %v216 = vrot.slane %v209, 6
      %v217 = vsel %vm214, %v215, %v216
      %v221 = vsel %vm214, %v210, %v215
      %v222 = vsel %vm214, %v216, %v211
      %vm225 = vcmask 1046528
      %v226 = vrot.slane %v221, 1
      %v227 = vrot.slane %v217, 1
      %v228 = vsel %vm225, %v226, %v227
      %v229 = vrot.slane %v222, 1
      %v230 = vsel %vm225, %v227, %v229
      %v233 = vadd.f32 %v221, %v228
      %v234 = vadd.f32 %v217, %v230
      %vm235 = vcmask 1045504
      %v236 = vrot.slane %v221, 2
      %v237 = vrot.slane %v217, 2
      %v238 = vsel %vm235, %v236, %v237
      %v239 = vrot.slane %v222, 2
      %v240 = vsel %vm235, %v237, %v239
      %v243 = vadd.f32 %v233, %v238
      %v244 = vadd.f32 %v234, %v240
      %vm245 = vcmask 1044480
      %v246 = vrot.slane %v221, 3
      %v247 = vrot.slane %v217, 3
      %v248 = vsel %vm245, %v246, %v247
      %v249 = vrot.slane %v222, 3
      %v250 = vsel %vm245, %v247, %v249
      %v253 = vadd.f32 %v243, %v248
      %v254 = vadd.f32 %v244, %v250
      %vm255 = vcmask 1043456
      %v256 = vrot.slane %v221, 4
      %v257 = vrot.slane %v217, 4
      %v258 = vsel %vm255, %v256, %v257
      %v259 = vrot.slane %v222, 4
      %v260 = vsel %vm255, %v257, %v259
      %v263 = vadd.f32 %v253, %v258
      %v264 = vadd.f32 %v254, %v260
      %v265 = vmul.f32 %v263, 0.2
      %v266 = vmul.f32 %v264, 0.2
      %v267 = vsub.f32 %v208, %v265
      %v268 = vsub.f32 %v209, %v266
      %vm269 = vcmask 261120
      %270 = vst.msk [vmem:[%s198] sm:$0xff] %vm269, %v267
      %271 = vst.msk [vmem:[%s198 + $0x8] sm:$0xff] %vm269, %v268
      %272 = vst.msk [vmem:[%s203] sm:$0xff] %vm269, %v265
      %273 = vst.msk [vmem:[%s203 + $0x8] sm:$0xff] %vm269, %v266
      %p274 = scmp.lt.s32.totalorder %s15, 1
      %s275 = scalar_select %p274, %s15, 1
      %s276 = smul.addr %s275, 2
      %s277 = smul.addr %s276, 8
      %s278 = scalar_lea.vmem %s2, %s277
      %p279 = scmp.lt.s32.totalorder %s15, 1
      %s280 = scalar_select %p279, %s15, 1
      %s281 = smul.addr %s280, 2
      %s282 = smul.addr %s281, 8
      %s283 = scalar_lea.vmem %s3, %s282
      // Predicated region
      $region29: #{model_forward.28} parent=27 // pred_check
        %p284 = pneg %p85
      $region30: #{model_forward.28} parent=27 // pred_check_branch
        %286 = sbr.rel (%p284) target = $region32
      $region31: #{model_forward.28} parent=27 // pred_region
        _
      $region32: #{model_forward.28} parent=27 // pred_fallthru
        _
      // Predicated region
      $region33: #{model_forward.28} parent=27 // pred_check
        %p287 = pneg %p111
      $region34: #{model_forward.28} parent=27 // pred_check_branch
        %289 = sbr.rel (%p287) target = $region36
      $region35: #{model_forward.28} parent=27 // pred_region
        _
      $region36: #{model_forward.28} parent=27 // pred_fallthru
        _
    $region28: #{model_forward.28} parent=5 // pred_fallthru
      _
    %p290 = scmp.le.s32.totalorder 2, %s10
    // Predicated region
    $region37: #{model_forward.28} parent=5 // pred_check
      %p291 = pneg %p290
    $region38: #{model_forward.28} parent=5 // pred_check_branch
      %293 = sbr.rel (%p291) target = $region40
    $region39: #{model_forward.28} parent=5 // pred_region
      %s294 = ssub.s32 %s10, 2
      // Predicated region
      $region41: #{model_forward.28} parent=39 // pred_check
        %p295 = pneg %p91
      $region42: #{model_forward.28} parent=39 // pred_check_branch
        %297 = sbr.rel (%p295) target = $region44
      $region43: #{model_forward.28} parent=39 // pred_region
        %p298 = scmp.lt.s32.totalorder %s16, 1
        %s299 = scalar_select %p298, %s16, 1
        %s300 = smul.addr %s299, 2
        %s301 = smul.addr %s300, 8
        %s302 = scalar_lea.vmem %s2, %s301
      $region44: #{model_forward.28} parent=39 // pred_fallthru
        _
      // Predicated region
      $region45: #{model_forward.28} parent=39 // pred_check
        %p303 = pneg %p117
      $region46: #{model_forward.28} parent=39 // pred_check_branch
        %305 = sbr.rel (%p303) target = $region48
      $region47: #{model_forward.28} parent=39 // pred_region
        %p306 = scmp.lt.s32.totalorder %s16, 1
        %s307 = scalar_select %p306, %s16, 1
        %s308 = smul.addr %s307, 2
        %s309 = smul.addr %s308, 8
        %s310 = scalar_lea.vmem %s3, %s309
      $region48: #{model_forward.28} parent=39 // pred_fallthru
        _
    $region40: #{model_forward.28} parent=5 // pred_fallthru
      _
  $region6: #{model_forward.28} parent=0 // loop_footer
    %s14 = sadd.s32 1, %s10
  $region7: #{model_forward.28} parent=0 // loop_footer_branch
    %9 = sbr.rel target = $region3
  $region8: #{model_forward.28} parent=0 // loop_exit
    _

// kernel: model_forward.33
$region0: #{model_forward.33}
  #allocation0 [shape = 'u32[]', space=smem, size = 0x4, offset = 0x4, fixed_abs, tag = 'smem constant byte address 0x4 - core index']
  #allocation1 [shape = 'u32[72,128]{1,0:T(1,128)}', space=vmem, size = 0x9000, scoped, tag = 'internal scratch']
  %s0 = inlined_call_operand.vmem [shape: f32[2,16,32], index: 0, kind: input, shape index: {}]
  %s1 = inlined_call_operand.vmem [shape: f32[2,16,32], index: 1, kind: input, shape index: {}]
  %s2 = inlined_call_operand.vmem [shape: f32[2,16,32], index: 2, kind: output, shape index: {0}]
  %s3 = inlined_call_operand.hbm [shape: f32[2,16,32], index: 3, kind: output, shape index: {1}]
  %4 = xla_tuple %s2, %s3
  %s5 = sld [smem:[#allocation0]]
  $region49: #{model_forward.33} parent=0
    _
  %s7 = ssub.s32 1, %s5
  %s8 = scalar_select 0, %s7, %s5
  $region1: #{model_forward.33} parent=0
    #allocation2 [shape = 'u8[16384]{0}', space=vmem, size = 0x4000, scoped, tag = 'output window, operand 1']
    #allocation3 [shape = 's32[2]{0}', space=sflag, size = 0x8, scoped, tag = 'scoped memory for model_forward.33']
    %9 = vsyncpa [#allocation3], 0
    %s10 = scalar_lea.sflag [#allocation3], 1
    %11 = vsyncpa %s10, 0
    loop: start=0, step=1, limit=4
    $region2: #{model_forward.33} parent=1 // loop_pre_header
      _
    $region3: #{model_forward.33} parent=1 // loop_header
      %s13 = sphi 0, %s17
      %p14 = scmp.ge.s32.totalorder %s13, 4
      %s23 = sphi 0, %s25
      %s26 = sphi 0, %s23
      %s27 = sphi 0, %s26
      %s43 = sphi 0, %s27
      %s49 = sphi 0, %s51
      %s52 = sphi 0, %s49
      %s53 = sphi 0, %s52
      %s69 = sphi 0, %s53
      %s75 = sphi 0, %s77
      %s78 = sphi 0, %s75
      %s79 = sphi 0, %s78
      %s95 = sphi 0, %s79
      %s101 = sphi 0, %s103
      %s104 = sphi 0, %s101
      %s105 = sphi 0, %s104
      %s121 = sphi 0, %s105
    $region4: #{model_forward.33} parent=1 // loop_header_branch
      %16 = sbr.rel (%p14) target = $region8
    $region5: #{model_forward.33} parent=1 // loop_body
      %s18 = ssub.s32 %s13, 1
      %s19 = ssub.s32 %s13, 2
      %s20 = sadd.s32 %s13, 1
      %s21 = ssub.s32 %s13, %s20
      %p22 = scmp.eq.s32.totalorder %s21, 0
      %s24 = sadd.s32 %s23, 1
      %s25 = scalar_select %p22, %s23, %s24
      %p28 = pneg %p22
      %p29 = scmp.eq.s32.totalorder %s13, 1
      %p30 = por %p28, %p29
      %p31 = scmp.ne.s32.totalorder %s23, %s26
      %p32 = scmp.eq.s32.totalorder %s13, 0
      %p33 = por %p31, %p32
      %p34 = scmp.ne.s32.totalorder %s23, %s26
      %p35 = scmp.eq.s32.totalorder %s18, 1
      %p36 = por %p34, %p35
      %p37 = scmp.ne.s32.totalorder %s26, %s27
      %p38 = scmp.eq.s32.totalorder %s18, 0
      %p39 = por %p37, %p38
      %p40 = scmp.ne.s32.totalorder %s26, %s27
      %p41 = scmp.eq.s32.totalorder %s19, 1
      %p42 = por %p40, %p41
      %p44 = scmp.ne.s32.totalorder %s27, %s43
      %p45 = scmp.eq.s32.totalorder %s19, 0
      %p46 = por %p44, %p45
      %s47 = ssub.s32 %s13, %s20
      %p48 = scmp.eq.s32.totalorder %s47, 0
      %s50 = sadd.s32 %s49, 1
      %s51 = scalar_select %p48, %s49, %s50
      %p54 = pneg %p48
      %p55 = scmp.eq.s32.totalorder %s13, 1
      %p56 = por %p54, %p55
      %p57 = scmp.ne.s32.totalorder %s49, %s52
      %p58 = scmp.eq.s32.totalorder %s13, 0
      %p59 = por %p57, %p58
      %p60 = scmp.ne.s32.totalorder %s49, %s52
      %p61 = scmp.eq.s32.totalorder %s18, 1
      %p62 = por %p60, %p61
      %p63 = scmp.ne.s32.totalorder %s52, %s53
      %p64 = scmp.eq.s32.totalorder %s18, 0
      %p65 = por %p63, %p64
      %p66 = scmp.ne.s32.totalorder %s52, %s53
      %p67 = scmp.eq.s32.totalorder %s19, 1
      %p68 = por %p66, %p67
      %p70 = scmp.ne.s32.totalorder %s53, %s69
      %p71 = scmp.eq.s32.totalorder %s19, 0
      %p72 = por %p70, %p71
      %s73 = ssub.s32 %s13, %s20
      %p74 = scmp.eq.s32.totalorder %s73, 0
      %s76 = sadd.s32 %s75, 1
      %s77 = scalar_select %p74, %s75, %s76
      %p80 = pneg %p74
      %p81 = scmp.eq.s32.totalorder %s13, 1
      %p82 = por %p80, %p81
      %p83 = scmp.ne.s32.totalorder %s75, %s78
      %p84 = scmp.eq.s32.totalorder %s13, 0
      %p85 = por %p83, %p84
      %p86 = scmp.ne.s32.totalorder %s75, %s78
      %p87 = scmp.eq.s32.totalorder %s18, 1
      %p88 = por %p86, %p87
      %p89 = scmp.ne.s32.totalorder %s78, %s79
      %p90 = scmp.eq.s32.totalorder %s18, 0
      %p91 = por %p89, %p90
      %p92 = scmp.ne.s32.totalorder %s78, %s79
      %p93 = scmp.eq.s32.totalorder %s19, 1
      %p94 = por %p92, %p93
      %p96 = scmp.ne.s32.totalorder %s79, %s95
      %p97 = scmp.eq.s32.totalorder %s19, 0
      %p98 = por %p96, %p97
      %s99 = ssub.s32 %s13, %s20
      %p100 = scmp.eq.s32.totalorder %s99, 0
      %s102 = sadd.s32 %s101, 1
      %s103 = scalar_select %p100, %s101, %s102
      %p106 = pneg %p100
      %p107 = scmp.eq.s32.totalorder %s13, 1
      %p108 = por %p106, %p107
      %p109 = scmp.ne.s32.totalorder %s101, %s104
      %p110 = scmp.eq.s32.totalorder %s13, 0
      %p111 = por %p109, %p110
      %p112 = scmp.ne.s32.totalorder %s101, %s104
      %p113 = scmp.eq.s32.totalorder %s18, 1
      %p114 = por %p112, %p113
      %p115 = scmp.ne.s32.totalorder %s104, %s105
      %p116 = scmp.eq.s32.totalorder %s18, 0
      %p117 = por %p115, %p116
      %p118 = scmp.ne.s32.totalorder %s104, %s105
      %p119 = scmp.eq.s32.totalorder %s19, 1
      %p120 = por %p118, %p119
      %p122 = scmp.ne.s32.totalorder %s105, %s121
      %p123 = scmp.eq.s32.totalorder %s19, 0
      %p124 = por %p122, %p123
      %p125 = scmp.le.s32.totalorder 1, %s13
      %p126 = scmp.lt.s32.totalorder %s13, 3
      %p127 = pnand %p125, %p126
      %p128 = pneg %p127
      // Predicated region
      $region9: #{model_forward.33} parent=5 // pred_check
        _
      $region10: #{model_forward.33} parent=5 // pred_check_branch
        %130 = sbr.rel (%p127) target = $region12
      $region11: #{model_forward.33} parent=5 // pred_region
        %s131 = ssub.s32 %s13, 1
      $region12: #{model_forward.33} parent=5 // pred_fallthru
        _
      %p132 = scmp.lt.s32.totalorder %s13, 2
      // Predicated region
      $region13: #{model_forward.33} parent=5 // pred_check
        %p133 = pneg %p132
      $region14: #{model_forward.33} parent=5 // pred_check_branch
        %135 = sbr.rel (%p133) target = $region16
      $region15: #{model_forward.33} parent=5 // pred_region
        // Predicated region
        $region17: #{model_forward.33} parent=15 // pred_check
          %p136 = pneg %p33
        $region18: #{model_forward.33} parent=15 // pred_check_branch
          %138 = sbr.rel (%p136) target = $region20
        $region19: #{model_forward.33} parent=15 // pred_region
          %p139 = scmp.lt.s32.totalorder %s13, 1
          %s140 = scalar_select %p139, %s13, 1
          %s141 = smul.addr %s140, 2
          %s142 = smul.addr %s141, 8
          %s143 = scalar_lea.vmem %s0, %s142
        $region20: #{model_forward.33} parent=15 // pred_fallthru
          _
        // Predicated region
        $region21: #{model_forward.33} parent=15 // pred_check
          %p144 = pneg %p59
        $region22: #{model_forward.33} parent=15 // pred_check_branch
          %146 = sbr.rel (%p144) target = $region24
        $region23: #{model_forward.33} parent=15 // pred_region
          %p147 = scmp.lt.s32.totalorder %s13, 1
          %s148 = scalar_select %p147, %s13, 1
          %s149 = smul.addr %s148, 2
          %s150 = smul.addr %s149, 8
          %s151 = scalar_lea.vmem %s1, %s150
        $region24: #{model_forward.33} parent=15 // pred_fallthru
          _
      $region16: #{model_forward.33} parent=5 // pred_fallthru
        _
      %p152 = scmp.le.s32.totalorder 1, %s13
      %p153 = scmp.lt.s32.totalorder %s13, 3
      %p154 = pnand %p152, %p153
      %p155 = pneg %p154
      // Predicated region
      $region25: #{model_forward.33} parent=5 // pred_check
        _
      $region26: #{model_forward.33} parent=5 // pred_check_branch
        %157 = sbr.rel (%p154) target = $region28
      $region27: #{model_forward.33} parent=5 // pred_region
        %s158 = ssub.s32 %s13, 1
        %p159 = scmp.lt.s32.totalorder %s18, 1
        %s160 = scalar_select %p159, %s18, 1
        %s161 = smul.addr %s160, 2
        %s162 = smul.addr %s161, 8
        %s163 = scalar_lea.vmem %s0, %s162
        %p164 = pneg %p39
        %p165 = pneg %p36
        %p166 = scmp.lt.s32.totalorder %s18, 1
        %s167 = scalar_select %p166, %s18, 1
        %s168 = smul.addr %s167, 2
        %s169 = smul.addr %s168, 8
        %s170 = scalar_lea.vmem %s1, %s169
        %p171 = pneg %p65
        %p172 = pneg %p62
        %p173 = pneg %p91
        %p174 = pneg %p88
        %p175 = scmp.lt.s32.totalorder %s18, 1
        %s176 = scalar_select %p175, %s18, 1
        %s177 = smul.addr %s176, 2
        %s178 = smul.addr %s177, 8
        %s179 = scalar_lea.vmem %s2, %s178
        %p180 = pneg %p117
        %p181 = pneg %p114
        %s182 = sand.u32 %s104, 1
        %s183 = scalar_lea.sflag [#allocation3], %s182
        %s184 = sand.u32 %s104, 1
        %s185 = smul.addr %s184, 16
        %s186 = scalar_lea.vmem [#allocation2], %s185
        %p187 = scmp.lt.s32.totalorder %s18, 1
        %s188 = scalar_select %p187, %s18, 1
        %s189 = smul.addr %s188, 2
        %s190 = smul.addr %s189, 8
        %s191 = scalar_lea.vmem %s0, %s190
        %p192 = scmp.lt.s32.totalorder %s18, 1
        %s193 = scalar_select %p192, %s18, 1
        %s194 = smul.addr %s193, 2
        %s195 = smul.addr %s194, 8
        %s196 = scalar_lea.vmem %s1, %s195
        %p197 = scmp.lt.s32.totalorder %s18, 1
        %s198 = scalar_select %p197, %s18, 1
        %s199 = smul.addr %s198, 2
        %s200 = smul.addr %s199, 8
        %s201 = scalar_lea.vmem %s2, %s200
        %v202 = vld [vmem:[%s191] sm:$0xff]
        %v203 = vld [vmem:[%s191 + $0x8] sm:$0xff]
        %v204 = vld [vmem:[%s196] sm:$0xff]
        %v205 = vld [vmem:[%s196 + $0x8] sm:$0xff]
        %v206 = vadd.f32 %v202, %v204
        %v207 = vadd.f32 %v203, %v205
        %v208 = vperm.slane %v206, 0
        %v209 = vperm.slane %v207, 7
        %vm212 = vcmask 1041408
        %v213 = vrot.slane %v206, 6
        %v214 = vrot.slane %v207, 6
        %v215 = vsel %vm212, %v213, %v214
        %v219 = vsel %vm212, %v208, %v213
        %v220 = vsel %vm212, %v214, %v209
        %vm223 = vcmask 1046528
        %v224 = vrot.slane %v219, 1
        %v225 = vrot.slane %v215, 1
        %v226 = vsel %vm223, %v224, %v225
        %v227 = vrot.slane %v220, 1
        %v228 = vsel %vm223, %v225, %v227
        %v231 = vadd.f32 %v219, %v226
        %v232 = vadd.f32 %v215, %v228
        %vm233 = vcmask 1045504
        %v234 = vrot.slane %v219, 2
        %v235 = vrot.slane %v215, 2
        %v236 = vsel %vm233, %v234, %v235
        %v237 = vrot.slane %v220, 2
        %v238 = vsel %vm233, %v235, %v237
        %v241 = vadd.f32 %v231, %v236
        %v242 = vadd.f32 %v232, %v238
        %vm243 = vcmask 1044480
        %v244 = vrot.slane %v219, 3
        %v245 = vrot.slane %v215, 3
        %v246 = vsel %vm243, %v244, %v245
        %v247 = vrot.slane %v220, 3
        %v248 = vsel %vm243, %v245, %v247
        %v251 = vadd.f32 %v241, %v246
        %v252 = vadd.f32 %v242, %v248
        %vm253 = vcmask 1043456
        %v254 = vrot.slane %v219, 4
        %v255 = vrot.slane %v215, 4
        %v256 = vsel %vm253, %v254, %v255
        %v257 = vrot.slane %v220, 4
        %v258 = vsel %vm253, %v255, %v257
        %v261 = vadd.f32 %v251, %v256
        %v262 = vadd.f32 %v252, %v258
        %v263 = vmul.f32 %v261, 0.2
        %v264 = vmul.f32 %v262, 0.2
        %v265 = vsub.f32 %v206, %v263
        %v266 = vsub.f32 %v207, %v264
        %vm267 = vcmask 261120
        %268 = vst.msk [vmem:[%s201] sm:$0xff] %vm267, %v265
        %269 = vst.msk [vmem:[%s201 + $0x8] sm:$0xff] %vm267, %v266
        %270 = vst.msk [vmem:[%s186] sm:$0xff] %vm267, %v263
        %271 = vst.msk [vmem:[%s186 + $0x8] sm:$0xff] %vm267, %v264
        %p272 = scmp.lt.s32.totalorder %s18, 1
        %s273 = scalar_select %p272, %s18, 1
        %s274 = smul.addr %s273, 2
        %s275 = smul.addr %s274, 8
        %s276 = scalar_lea.vmem %s2, %s275
        %s277 = sand.u32 %s104, 1
        %s278 = scalar_lea.sflag [#allocation3], %s277
        %s279 = sand.u32 %s104, 1
        %s280 = smul.addr %s279, 16
        %s281 = scalar_lea.vmem [#allocation2], %s280
        // Predicated region
        $region29: #{model_forward.33} parent=27 // pred_check
          %p282 = pneg %p88
        $region30: #{model_forward.33} parent=27 // pred_check_branch
          %284 = sbr.rel (%p282) target = $region32
        $region31: #{model_forward.33} parent=27 // pred_region
          _
        $region32: #{model_forward.33} parent=27 // pred_fallthru
          _
        // Predicated region
        $region33: #{model_forward.33} parent=27 // pred_check
          %p285 = pneg %p114
        $region34: #{model_forward.33} parent=27 // pred_check_branch
          %287 = sbr.rel (%p285) target = $region36
        $region35: #{model_forward.33} parent=27 // pred_region
          %289 = vsyncadd %s278, 0
          %s290 = smul.addr %s18, 2
          %s291 = smul.addr %s290, 8
          %s292 = scalar_lea.hbm %s3, %s291
          %s293 = sshll.u32 %s281, 4
          %s294 = int_to_ptr.vmem [resolvable:$true] %s293
          %s295 = sshll.u32 %s292, 4
          %s296 = int_to_ptr.hbm [resolvable:$true] %s295
          %301 = dma.vmem_to_hbm [thread:$0]  %s294, 256, %s296, %s278, 128, 128, 8
        $region36: #{model_forward.33} parent=27 // pred_fallthru
          _
      $region28: #{model_forward.33} parent=5 // pred_fallthru
        _
      %p302 = scmp.le.s32.totalorder 2, %s13
      // Predicated region
      $region37: #{model_forward.33} parent=5 // pred_check
        %p303 = pneg %p302
      $region38: #{model_forward.33} parent=5 // pred_check_branch
        %305 = sbr.rel (%p303) target = $region40
      $region39: #{model_forward.33} parent=5 // pred_region
        %s306 = ssub.s32 %s13, 2
        // Predicated region
        $region41: #{model_forward.33} parent=39 // pred_check
          %p307 = pneg %p94
        $region42: #{model_forward.33} parent=39 // pred_check_branch
          %309 = sbr.rel (%p307) target = $region44
        $region43: #{model_forward.33} parent=39 // pred_region
          %p310 = scmp.lt.s32.totalorder %s19, 1
          %s311 = scalar_select %p310, %s19, 1
          %s312 = smul.addr %s311, 2
          %s313 = smul.addr %s312, 8
          %s314 = scalar_lea.vmem %s2, %s313
        $region44: #{model_forward.33} parent=39 // pred_fallthru
          _
        // Predicated region
        $region45: #{model_forward.33} parent=39 // pred_check
          %p315 = pneg %p120
        $region46: #{model_forward.33} parent=39 // pred_check_branch
          %317 = sbr.rel (%p315) target = $region48
        $region47: #{model_forward.33} parent=39 // pred_region
          %s318 = sand.u32 %s105, 1
          %s319 = scalar_lea.sflag [#allocation3], %s318
          %s320 = sand.u32 %s105, 1
          %s321 = smul.addr %s320, 16
          %s322 = scalar_lea.vmem [#allocation2], %s321
          %324 = dma.done %s319, 256
        $region48: #{model_forward.33} parent=39 // pred_fallthru
          _
      $region40: #{model_forward.33} parent=5 // pred_fallthru
        _
    $region6: #{model_forward.33} parent=1 // loop_footer
      %s17 = sadd.s32 1, %s13
    $region7: #{model_forward.33} parent=1 // loop_footer_branch
      %12 = sbr.rel target = $region3
    $region8: #{model_forward.33} parent=1 // loop_exit
      _
    %325 = vsyncpa [#allocation3], 1
    %s326 = scalar_lea.sflag [#allocation3], 1
    %327 = vsyncpa %s326, 1

// kernel: model_forward.27
$region0: #{model_forward.27}
  #allocation0 [shape = 'u32[]', space=smem, size = 0x4, offset = 0x4, fixed_abs, tag = 'smem constant byte address 0x4 - core index']
  #allocation1 [shape = 'u32[72,128]{1,0:T(1,128)}', space=vmem, size = 0x9000, scoped, tag = 'internal scratch']
  #allocation2 [shape = 'f32[32,32]{1,0:T(8,128)}', space=vmem, size = 0x4000, scoped, tag = 'scratch operand']
  %s0 = inlined_call_operand.vmem [shape: f32[32,32], index: 0, kind: input, shape index: {}]
  %s1 = inlined_call_operand.vmem [shape: f32[32,32], index: 1, kind: input, shape index: {}]
  %s2 = inlined_call_operand.vmem [shape: f32[1,32], index: 2, kind: input, shape index: {}]
  %s3 = inlined_call_operand.vmem [shape: f32[32,32], index: 3, kind: output, shape index: {}]
  %s4 = sld [smem:[#allocation0]]
  $region30: #{model_forward.27} parent=0
    _
  %s6 = ssub.s32 1, %s4
  %s7 = scalar_select 0, %s6, %s4
  // Predicated region
  $region2: #{model_forward.27} parent=0 // pred_check
    _
  $region3: #{model_forward.27} parent=0 // pred_check_branch
    %9 = sbr.rel (0) target = $region5
  $region4: #{model_forward.27} parent=0 // pred_region
    _
  $region5: #{model_forward.27} parent=0 // pred_fallthru
    _
  // Predicated region
  $region6: #{model_forward.27} parent=0 // pred_check
    _
  $region7: #{model_forward.27} parent=0 // pred_check_branch
    %11 = sbr.rel (0) target = $region9
  $region8: #{model_forward.27} parent=0 // pred_region
    _
  $region9: #{model_forward.27} parent=0 // pred_fallthru
    _
  // Predicated region
  $region10: #{model_forward.27} parent=0 // pred_check
    _
  $region11: #{model_forward.27} parent=0 // pred_check_branch
    %13 = sbr.rel (0) target = $region13
  $region12: #{model_forward.27} parent=0 // pred_region
    _
  $region13: #{model_forward.27} parent=0 // pred_fallthru
    _
  %p15 = scmp.eq.s32.totalorder 0, 0
  // Predicated region
  $region14: #{model_forward.27} parent=0 // pred_check
    %p16 = pneg %p15
  $region15: #{model_forward.27} parent=0 // pred_check_branch
    %18 = sbr.rel (%p16) target = $region17
  $region16: #{model_forward.27} parent=0 // pred_region
    %vm19 = vcmask 261120
    %20 = vst.msk [vmem:[#allocation2] sm:$0xff] %vm19, 0.0
    %21 = vst.msk [vmem:[#allocation2 + $0x8] sm:$0xff] %vm19, 0.0
    %22 = vst.msk [vmem:[#allocation2 + $0x10] sm:$0xff] %vm19, 0.0
    %23 = vst.msk [vmem:[#allocation2 + $0x18] sm:$0xff] %vm19, 0.0
  $region17: #{model_forward.27} parent=0 // pred_fallthru
    _
  %v24 = vld [vmem:[#allocation2] sm:$0xff]
  %v25 = vld [vmem:[#allocation2 + $0x8] sm:$0xff]
  %v26 = vld [vmem:[#allocation2 + $0x10] sm:$0xff]
  %v27 = vld [vmem:[#allocation2 + $0x18] sm:$0xff]
  %v28 = vld [vmem:[%s0] sm:$0xff]
  %v29 = vld [vmem:[%s0 + $0x8] sm:$0xff]
  %v30 = vld [vmem:[%s0 + $0x10] sm:$0xff]
  %v31 = vld [vmem:[%s0 + $0x18] sm:$0xff]
  %v32 = vpack.c.bf16 %v29, %v28
  %v33 = vpack.c.bf16 %v31, %v30
  %v34 = vld [vmem:[%s1] sm:$0xff]
  %v35 = vld [vmem:[%s1 + $0x8] sm:$0xff]
  %v36 = vld [vmem:[%s1 + $0x10] sm:$0xff]
  %v37 = vld [vmem:[%s1 + $0x18] sm:$0xff]
  %v38 = vpack.c.bf16 %v35, %v34
  %v39 = vpack.c.bf16 %v37, %v36
  %vm40 = vcmask 261120
  %v42 = vsel %vm40, %v32, 0
  %v45 = vsel %vm40, %v33, 0
  %47 = vmatpush.bf16.msra.mxu0 0
  %48 = vmatpush.bf16.msra.mxu0 0
  %49 = vmatpush.bf16.msra.mxu0 0
  %50 = vmatpush.bf16.msra.mxu0 0
  %51 = vmatpush.bf16.msra.mxu0 0
  %52 = vmatpush.bf16.msra.mxu0 0
  %53 = vmatpush.bf16.msra.mxu0 %v39
  %54 = vmatpush.bf16.msra.mxu0 %v38
  %55 = vmatmul.bf16.gmra.mxu0 %v42
  %v56 = vpop.f32.mrf.mxu0
  %v57 = vadd.f32 0.0, %v56
  %v58 = vpop.f32.mrf.mxu0
  %v59 = vadd.f32 0.0, %v58
  %60 = vmatmul.bf16.gmra.mxu0 %v45
  %v61 = vpop.f32.mrf.mxu0
  %v62 = vadd.f32 0.0, %v61
  %v63 = vpop.f32.mrf.mxu0
  %v64 = vadd.f32 0.0, %v63
  %65 = vdwg.mxu0
  %v66 = vadd.f32 %v24, %v57
  %v67 = vadd.f32 %v25, %v59
  %v68 = vadd.f32 %v26, %v62
  %v69 = vadd.f32 %v27, %v64
  %70 = vst.msk [vmem:[#allocation2] sm:$0xff] %vm40, %v66
  %71 = vst.msk [vmem:[#allocation2 + $0x8] sm:$0xff] %vm40, %v67
  %72 = vst.msk [vmem:[#allocation2 + $0x10] sm:$0xff] %vm40, %v68
  %73 = vst.msk [vmem:[#allocation2 + $0x18] sm:$0xff] %vm40, %v69
  // Predicated region
  $region18: #{model_forward.27} parent=0 // pred_check
    %p74 = pneg %p15
  $region19: #{model_forward.27} parent=0 // pred_check_branch
    %76 = sbr.rel (%p74) target = $region21
  $region20: #{model_forward.27} parent=0 // pred_region
    %v77 = vld [vmem:[#allocation2] sm:$0xff]
    %v78 = vld [vmem:[#allocation2 + $0x8] sm:$0xff]
    %v79 = vld [vmem:[#allocation2 + $0x10] sm:$0xff]
    %v80 = vld [vmem:[#allocation2 + $0x18] sm:$0xff]
    %v81 = vld [vmem:[%s2] sm:$0x1]
    %v83 = vperm.slane %v81, 0
    %v85 = vadd.f32 %v77, %v83
    %v86 = vadd.f32 %v78, %v83
    %v87 = vadd.f32 %v79, %v83
    %v88 = vadd.f32 %v80, %v83
    %89 = vst.msk [vmem:[%s3] sm:$0xff] %vm40, %v85
    %90 = vst.msk [vmem:[%s3 + $0x8] sm:$0xff] %vm40, %v86
    %91 = vst.msk [vmem:[%s3 + $0x10] sm:$0xff] %vm40, %v87
    %92 = vst.msk [vmem:[%s3 + $0x18] sm:$0xff] %vm40, %v88
  $region21: #{model_forward.27} parent=0 // pred_fallthru
    _
  // Predicated region
  $region22: #{model_forward.27} parent=0 // pred_check
    _
  $region23: #{model_forward.27} parent=0 // pred_check_branch
    %94 = sbr.rel (0) target = $region25
  $region24: #{model_forward.27} parent=0 // pred_region
    _
  $region25: #{model_forward.27} parent=0 // pred_fallthru
    _
  // Predicated region
  $region26: #{model_forward.27} parent=0 // pred_check
    _
  $region27: #{model_forward.27} parent=0 // pred_check_branch
    %96 = sbr.rel (0) target = $region29
  $region28: #{model_forward.27} parent=0 // pred_region
    _
  $region29: #{model_forward.27} parent=0 // pred_fallthru
    _

// kernel: model_forward.34
$region0: #{model_forward.34}
  #allocation0 [shape = 'u32[]', space=smem, size = 0x4, offset = 0x4, fixed_abs, tag = 'smem constant byte address 0x4 - core index']
  #allocation1 [shape = 'u32[72,128]{1,0:T(1,128)}', space=vmem, size = 0x9000, scoped, tag = 'internal scratch']
  #allocation2 [shape = 'bf16[32,32]{1,0:T(8,128)(2,1)}', space=vmem, size = 0x2000, scoped, tag = 'scratch operand']
  %s0 = inlined_call_operand.vmem [shape: f32[32,32], index: 0, kind: input, shape index: {}]
  %s1 = inlined_call_operand.vmem [shape: f32[32,32], index: 1, kind: input, shape index: {}]
  %s2 = inlined_call_operand.vmem [shape: f32[32,32], index: 2, kind: input, shape index: {}]
  %s3 = inlined_call_operand.vmem [shape: f32[32,32], index: 3, kind: output, shape index: {}]
  %s4 = sld [smem:[#allocation0]]
  $region22: #{model_forward.34} parent=0
    _
  %s6 = ssub.s32 1, %s4
  %s7 = scalar_select 0, %s6, %s4
  // Predicated region
  $region2: #{model_forward.34} parent=0 // pred_check
    _
  $region3: #{model_forward.34} parent=0 // pred_check_branch
    %9 = sbr.rel (0) target = $region5
  $region4: #{model_forward.34} parent=0 // pred_region
    _
  $region5: #{model_forward.34} parent=0 // pred_fallthru
    _
  // Predicated region
  $region6: #{model_forward.34} parent=0 // pred_check
    _
  $region7: #{model_forward.34} parent=0 // pred_check_branch
    %11 = sbr.rel (0) target = $region9
  $region8: #{model_forward.34} parent=0 // pred_region
    _
  $region9: #{model_forward.34} parent=0 // pred_fallthru
    _
  // Predicated region
  $region10: #{model_forward.34} parent=0 // pred_check
    _
  $region11: #{model_forward.34} parent=0 // pred_check_branch
    %13 = sbr.rel (0) target = $region13
  $region12: #{model_forward.34} parent=0 // pred_region
    _
  $region13: #{model_forward.34} parent=0 // pred_fallthru
    _
  %v15 = vld [vmem:[%s0] sm:$0xff]
  %v16 = vld [vmem:[%s0 + $0x8] sm:$0xff]
  %v17 = vld [vmem:[%s0 + $0x10] sm:$0xff]
  %v18 = vld [vmem:[%s0 + $0x18] sm:$0xff]
  %v19 = vpack.c.bf16 %v16, %v15
  %v20 = vpack.c.bf16 %v18, %v17
  %v21 = vld [vmem:[%s1] sm:$0xff]
  %v22 = vld [vmem:[%s1 + $0x8] sm:$0xff]
  %v23 = vld [vmem:[%s1 + $0x10] sm:$0xff]
  %v24 = vld [vmem:[%s1 + $0x18] sm:$0xff]
  %v25 = vpack.c.bf16 %v22, %v21
  %v26 = vpack.c.bf16 %v24, %v23
  %vm27 = vcmask 261120
  %v29 = vsel %vm27, %v19, 0
  %v32 = vsel %vm27, %v20, 0
  %34 = vmatpush.bf16.msra.mxu0 0
  %35 = vmatpush.bf16.msra.mxu0 0
  %36 = vmatpush.bf16.msra.mxu0 0
  %37 = vmatpush.bf16.msra.mxu0 0
  %38 = vmatpush.bf16.msra.mxu0 0
  %39 = vmatpush.bf16.msra.mxu0 0
  %40 = vmatpush.bf16.msra.mxu0 %v26
  %41 = vmatpush.bf16.msra.mxu0 %v25
  %42 = vmatmul.bf16.gmra.mxu0 %v29
  %v43 = vpop.f32.mrf.mxu0
  %v44 = vadd.f32 0.0, %v43
  %v45 = vpop.f32.mrf.mxu0
  %v46 = vadd.f32 0.0, %v45
  %47 = vmatmul.bf16.gmra.mxu0 %v32
  %v48 = vpop.f32.mrf.mxu0
  %v49 = vadd.f32 0.0, %v48
  %v50 = vpop.f32.mrf.mxu0
  %v51 = vadd.f32 0.0, %v50
  %52 = vdwg.mxu0
  %v53 = vmax.f32 %v44, 0.0
  %v54 = vmax.f32 %v46, 0.0
  %v55 = vmax.f32 %v49, 0.0
  %v56 = vmax.f32 %v51, 0.0
  %v57 = vpack.c.bf16 %v53, %v53
  %v58 = vpack.c.bf16 %v54, %v54
  %v59 = vpack.c.bf16 %v55, %v55
  %v60 = vpack.c.bf16 %v56, %v56
  %vm61 = vcmask 257024
  %62 = vst.msk [vmem:[#allocation2] sm:$0xf] %vm61, %v57
  %63 = vst.msk [vmem:[#allocation2 + $0x4] sm:$0xf] %vm61, %v58
  %64 = vst.msk [vmem:[#allocation2 + $0x8] sm:$0xf] %vm61, %v59
  %65 = vst.msk [vmem:[#allocation2 + $0xc] sm:$0xf] %vm61, %v60
  %v66 = vld [vmem:[#allocation2] sm:$0xf]
  %v67 = vld [vmem:[#allocation2 + $0x4] sm:$0xf]
  %v68 = vld [vmem:[#allocation2 + $0x8] sm:$0xf]
  %v69 = vld [vmem:[#allocation2 + $0xc] sm:$0xf]
  %v70 = vld [vmem:[%s2] sm:$0xff]
  %v71 = vld [vmem:[%s2 + $0x8] sm:$0xff]
  %v72 = vld [vmem:[%s2 + $0x10] sm:$0xff]
  %v73 = vld [vmem:[%s2 + $0x18] sm:$0xff]
  %v74 = vpack.c.bf16 %v71, %v70
  %v75 = vpack.c.bf16 %v73, %v72
  %v80 = vunpack.c.l.b16 %v66
  %v81 = vunpack.c.l.b16 %v67
  %v82 = vunpack.c.l.b16 %v68
  %v83 = vunpack.c.l.b16 %v69
  %v84 = vpack.c.b16 %v81, %v80
  %v85 = vpack.c.b16 %v83, %v82
  %v87 = vsel %vm27, %v84, 0
  %v90 = vsel %vm27, %v85, 0
  %92 = vmatpush.bf16.msra.mxu0 0
  %93 = vmatpush.bf16.msra.mxu0 0
  %94 = vmatpush.bf16.msra.mxu0 0
  %95 = vmatpush.bf16.msra.mxu0 0
  %96 = vmatpush.bf16.msra.mxu0 0
  %97 = vmatpush.bf16.msra.mxu0 0
  %98 = vmatpush.bf16.msra.mxu0 %v75
  %99 = vmatpush.bf16.msra.mxu0 %v74
  %100 = vmatmul.bf16.gmra.mxu0 %v87
  %v101 = vpop.f32.mrf.mxu0
  %v102 = vadd.f32 0.0, %v101
  %v103 = vpop.f32.mrf.mxu0
  %v104 = vadd.f32 0.0, %v103
  %105 = vmatmul.bf16.gmra.mxu0 %v90
  %v106 = vpop.f32.mrf.mxu0
  %v107 = vadd.f32 0.0, %v106
  %v108 = vpop.f32.mrf.mxu0
  %v109 = vadd.f32 0.0, %v108
  %110 = vdwg.mxu0
  %111 = vst.msk [vmem:[%s3] sm:$0xff] %vm27, %v102
  %112 = vst.msk [vmem:[%s3 + $0x8] sm:$0xff] %vm27, %v104
  %113 = vst.msk [vmem:[%s3 + $0x10] sm:$0xff] %vm27, %v107
  %114 = vst.msk [vmem:[%s3 + $0x18] sm:$0xff] %vm27, %v109
  // Predicated region
  $region14: #{model_forward.34} parent=0 // pred_check
    _
  $region15: #{model_forward.34} parent=0 // pred_check_branch
    %116 = sbr.rel (0) target = $region17
  $region16: #{model_forward.34} parent=0 // pred_region
    _
  $region17: #{model_forward.34} parent=0 // pred_fallthru
    _
  // Predicated region
  $region18: #{model_forward.34} parent=0 // pred_check
    _
  $region19: #{model_forward.34} parent=0 // pred_check_branch
    %118 = sbr.rel (0) target = $region21
  $region20: #{model_forward.34} parent=0 // pred_region
    _
  $region21: #{model_forward.34} parent=0 // pred_fallthru
    _

// kernel: model_forward.36
$region0: #{model_forward.36}
  #allocation0 [shape = 'u32[]', space=smem, size = 0x4, offset = 0x4, fixed_abs, tag = 'smem constant byte address 0x4 - core index']
  #allocation1 [shape = 'u32[72,128]{1,0:T(1,128)}', space=vmem, size = 0x9000, scoped, tag = 'internal scratch']
  %s0 = inlined_call_operand.vmem [shape: f32[2,16,32], index: 0, kind: input, shape index: {}]
  %s1 = inlined_call_operand.vmem [shape: f32[1,32], index: 1, kind: input, shape index: {}]
  %s2 = inlined_call_operand.vmem [shape: f32[1,32], index: 2, kind: input, shape index: {}]
  %s3 = inlined_call_operand.vmem [shape: f32[2,16,32], index: 3, kind: output, shape index: {}]
  %s4 = sld [smem:[#allocation0]]
  $region45: #{model_forward.36} parent=0
    _
  %s6 = ssub.s32 1, %s4
  %s7 = scalar_select 0, %s6, %s4
  loop: start=0, step=1, limit=4
  $region2: #{model_forward.36} parent=0 // loop_pre_header
    _
  $region3: #{model_forward.36} parent=0 // loop_header
    %s9 = sphi 0, %s13
    %p10 = scmp.ge.s32.totalorder %s9, 4
    %s19 = sphi 0, %s21
    %s22 = sphi 0, %s19
    %s23 = sphi 0, %s22
    %s39 = sphi 0, %s23
    %s43 = sphi 0, %s43
    %s45 = sphi 0, %s43
    %s46 = sphi 0, %s45
    %s60 = sphi 0, %s46
    %s64 = sphi 0, %s64
    %s66 = sphi 0, %s64
    %s67 = sphi 0, %s66
    %s81 = sphi 0, %s67
    %s87 = sphi 0, %s89
    %s90 = sphi 0, %s87
    %s91 = sphi 0, %s90
    %s107 = sphi 0, %s91
  $region4: #{model_forward.36} parent=0 // loop_header_branch
    %12 = sbr.rel (%p10) target = $region8
  $region5: #{model_forward.36} parent=0 // loop_body
    %s14 = ssub.s32 %s9, 1
    %s15 = ssub.s32 %s9, 2
    %s16 = sadd.s32 %s9, 1
    %s17 = ssub.s32 %s9, %s16
    %p18 = scmp.eq.s32.totalorder %s17, 0
    %s20 = sadd.s32 %s19, 1
    %s21 = scalar_select %p18, %s19, %s20
    %p24 = pneg %p18
    %p25 = scmp.eq.s32.totalorder %s9, 1
    %p26 = por %p24, %p25
    %p27 = scmp.ne.s32.totalorder %s19, %s22
    %p28 = scmp.eq.s32.totalorder %s9, 0
    %p29 = por %p27, %p28
    %p30 = scmp.ne.s32.totalorder %s19, %s22
    %p31 = scmp.eq.s32.totalorder %s14, 1
    %p32 = por %p30, %p31
    %p33 = scmp.ne.s32.totalorder %s22, %s23
    %p34 = scmp.eq.s32.totalorder %s14, 0
    %p35 = por %p33, %p34
    %p36 = scmp.ne.s32.totalorder %s22, %s23
    %p37 = scmp.eq.s32.totalorder %s15, 1
    %p38 = por %p36, %p37
    %p40 = scmp.ne.s32.totalorder %s23, %s39
    %p41 = scmp.eq.s32.totalorder %s15, 0
    %p42 = por %p40, %p41
    %s44 = sadd.s32 %s43, 1
    %p47 = scmp.eq.s32.totalorder %s9, 1
    %p48 = scmp.ne.s32.totalorder %s43, %s45
    %p49 = scmp.eq.s32.totalorder %s9, 0
    %p50 = por %p48, %p49
    %p51 = scmp.ne.s32.totalorder %s43, %s45
    %p52 = scmp.eq.s32.totalorder %s14, 1
    %p53 = por %p51, %p52
    %p54 = scmp.ne.s32.totalorder %s45, %s46
    %p55 = scmp.eq.s32.totalorder %s14, 0
    %p56 = por %p54, %p55
    %p57 = scmp.ne.s32.totalorder %s45, %s46
    %p58 = scmp.eq.s32.totalorder %s15, 1
    %p59 = por %p57, %p58
    %p61 = scmp.ne.s32.totalorder %s46, %s60
    %p62 = scmp.eq.s32.totalorder %s15, 0
    %p63 = por %p61, %p62
    %s65 = sadd.s32 %s64, 1
    %p68 = scmp.eq.s32.totalorder %s9, 1
    %p69 = scmp.ne.s32.totalorder %s64, %s66
    %p70 = scmp.eq.s32.totalorder %s9, 0
    %p71 = por %p69, %p70
    %p72 = scmp.ne.s32.totalorder %s64, %s66
    %p73 = scmp.eq.s32.totalorder %s14, 1
    %p74 = por %p72, %p73
    %p75 = scmp.ne.s32.totalorder %s66, %s67
    %p76 = scmp.eq.s32.totalorder %s14, 0
    %p77 = por %p75, %p76
    %p78 = scmp.ne.s32.totalorder %s66, %s67
    %p79 = scmp.eq.s32.totalorder %s15, 1
    %p80 = por %p78, %p79
    %p82 = scmp.ne.s32.totalorder %s67, %s81
    %p83 = scmp.eq.s32.totalorder %s15, 0
    %p84 = por %p82, %p83
    %s85 = ssub.s32 %s9, %s16
    %p86 = scmp.eq.s32.totalorder %s85, 0
    %s88 = sadd.s32 %s87, 1
    %s89 = scalar_select %p86, %s87, %s88
    %p92 = pneg %p86
    %p93 = scmp.eq.s32.totalorder %s9, 1
    %p94 = por %p92, %p93
    %p95 = scmp.ne.s32.totalorder %s87, %s90
    %p96 = scmp.eq.s32.totalorder %s9, 0
    %p97 = por %p95, %p96
    %p98 = scmp.ne.s32.totalorder %s87, %s90
    %p99 = scmp.eq.s32.totalorder %s14, 1
    %p100 = por %p98, %p99
    %p101 = scmp.ne.s32.totalorder %s90, %s91
    %p102 = scmp.eq.s32.totalorder %s14, 0
    %p103 = por %p101, %p102
    %p104 = scmp.ne.s32.totalorder %s90, %s91
    %p105 = scmp.eq.s32.totalorder %s15, 1
    %p106 = por %p104, %p105
    %p108 = scmp.ne.s32.totalorder %s91, %s107
    %p109 = scmp.eq.s32.totalorder %s15, 0
    %p110 = por %p108, %p109
    %p111 = scmp.le.s32.totalorder 1, %s9
    %p112 = scmp.lt.s32.totalorder %s9, 3
    %p113 = pnand %p111, %p112
    %p114 = pneg %p113
    // Predicated region
    $region9: #{model_forward.36} parent=5 // pred_check
      _
    $region10: #{model_forward.36} parent=5 // pred_check_branch
      %116 = sbr.rel (%p113) target = $region12
    $region11: #{model_forward.36} parent=5 // pred_region
      %s117 = ssub.s32 %s9, 1
      // Predicated region
      $region13: #{model_forward.36} parent=11 // pred_check
        %p118 = pneg %p56
      $region14: #{model_forward.36} parent=11 // pred_check_branch
        %120 = sbr.rel (%p118) target = $region16
      $region15: #{model_forward.36} parent=11 // pred_region
        _
      $region16: #{model_forward.36} parent=11 // pred_fallthru
        _
      // Predicated region
      $region17: #{model_forward.36} parent=11 // pred_check
        %p121 = pneg %p77
      $region18: #{model_forward.36} parent=11 // pred_check_branch
        %123 = sbr.rel (%p121) target = $region20
      $region19: #{model_forward.36} parent=11 // pred_region
        _
      $region20: #{model_forward.36} parent=11 // pred_fallthru
        _
    $region12: #{model_forward.36} parent=5 // pred_fallthru
      _
    %p124 = scmp.lt.s32.totalorder %s9, 2
    // Predicated region
    $region21: #{model_forward.36} parent=5 // pred_check
      %p125 = pneg %p124
    $region22: #{model_forward.36} parent=5 // pred_check_branch
      %127 = sbr.rel (%p125) target = $region24
    $region23: #{model_forward.36} parent=5 // pred_region
      // Predicated region
      $region25: #{model_forward.36} parent=23 // pred_check
        %p128 = pneg %p29
      $region26: #{model_forward.36} parent=23 // pred_check_branch
        %130 = sbr.rel (%p128) target = $region28
      $region27: #{model_forward.36} parent=23 // pred_region
        %p131 = scmp.lt.s32.totalorder %s9, 1
        %s132 = scalar_select %p131, %s9, 1
        %s133 = smul.addr %s132, 2
        %s134 = smul.addr %s133, 8
        %s135 = scalar_lea.vmem %s0, %s134
      $region28: #{model_forward.36} parent=23 // pred_fallthru
        _
    $region24: #{model_forward.36} parent=5 // pred_fallthru
      _
    %p136 = scmp.le.s32.totalorder 1, %s9
    %p137 = scmp.lt.s32.totalorder %s9, 3
    %p138 = pnand %p136, %p137
    %p139 = pneg %p138
    // Predicated region
    $region29: #{model_forward.36} parent=5 // pred_check
      _
    $region30: #{model_forward.36} parent=5 // pred_check_branch
      %141 = sbr.rel (%p138) target = $region32
    $region31: #{model_forward.36} parent=5 // pred_region
      %s142 = ssub.s32 %s9, 1
      %p143 = scmp.lt.s32.totalorder %s14, 1
      %s144 = scalar_select %p143, %s14, 1
      %s145 = smul.addr %s144, 2
      %s146 = smul.addr %s145, 8
      %s147 = scalar_lea.vmem %s0, %s146
      %p148 = pneg %p35
      %p149 = pneg %p32
      %p150 = pneg %p56
      %p151 = pneg %p53
      %p152 = pneg %p77
      %p153 = pneg %p74
      %p154 = pneg %p103
      %p155 = pneg %p100
      %p156 = scmp.lt.s32.totalorder %s14, 1
      %s157 = scalar_select %p156, %s14, 1
      %s158 = smul.addr %s157, 2
      %s159 = smul.addr %s158, 8
      %s160 = scalar_lea.vmem %s3, %s159
      %p161 = scmp.lt.s32.totalorder %s14, 1
      %s162 = scalar_select %p161, %s14, 1
      %s163 = smul.addr %s162, 2
      %s164 = smul.addr %s163, 8
      %s165 = scalar_lea.vmem %s0, %s164
      %p166 = scmp.lt.s32.totalorder %s14, 1
      %s167 = scalar_select %p166, %s14, 1
      %s168 = smul.addr %s167, 2
      %s169 = smul.addr %s168, 8
      %s170 = scalar_lea.vmem %s3, %s169
      %v171 = vld [vmem:[%s165] sm:$0xff]
      %v172 = vld [vmem:[%s165 + $0x8] sm:$0xff]
      %v173 = vld [vmem:[%s1] sm:$0x1]
      %v174 = vld [vmem:[%s2] sm:$0x1]
      %vm175 = vcmask 261120
      %v176 = vsel %vm175, %v171, 0.0
      %177 = vadd.xlane.f32.xlu0 %v176
      %v178 = vpop.xlane.xlu0 %177
      %v179 = vsel %vm175, %v172, 0.0
      %180 = vadd.xlane.f32.xlu0 %v179
      %v181 = vpop.xlane.xlu0 %180
      %v182 = vrcp.pop 32.0
      %v183 = vmul.f32 32.0, %v182
      %v184 = vsub.f32 1.0, %v183
      %v185 = vmul.f32 %v182, %v184
      %v186 = vadd.f32 %v182, %v185
      %vm187 = vweird.f32 %v182
      %v188 = vsel %vm187, %v182, %v186
      %v189 = vmul.f32 %v178, %v188
      %v190 = vmul.f32 %v181, %v188
      %v191 = vsub.f32 %v171, %v189
      %v192 = vsub.f32 %v172, %v190
      %v193 = vmul.f32 %v191, %v191
      %v194 = vmul.f32 %v192, %v192
      %v195 = vsel %vm175, %v193, 0.0
      %196 = vadd.xlane.f32.xlu0 %v195
      %v197 = vpop.xlane.xlu0 %196
      %v198 = vsel %vm175, %v194, 0.0
      %199 = vadd.xlane.f32.xlu0 %v198
      %v200 = vpop.xlane.xlu0 %199
      %v201 = vmul.f32 %v197, %v188
      %v202 = vmul.f32 %v200, %v188
      %v203 = vadd.f32 %v201, 1e-05
      %v204 = vadd.f32 %v202, 1e-05
      %v205 = vrsqrt.pop %v203
      %v206 = vmul.f32 %v205, %v203
      %v207 = vmul.f32 %v206, %v205
      %v208 = vmul.f32 0.5, %v207
      %v209 = vsub.f32 1.5, %v208
      %v210 = vmul.f32 %v205, %v209
      %vm211 = vweird.f32 %v203
      %vm212 = vweird.f32 %v205
      %vm213 = vmor %vm211, %vm212
      %v214 = vsel %vm213, %v205, %v210
      %v215 = vrsqrt.pop %v204
      %v216 = vmul.f32 %v215, %v204
      %v217 = vmul.f32 %v216, %v215
      %v218 = vmul.f32 0.5, %v217
      %v219 = vsub.f32 1.5, %v218
      %v220 = vmul.f32 %v215, %v219
      %vm221 = vweird.f32 %v204
      %vm222 = vweird.f32 %v215
      %vm223 = vmor %vm221, %vm222
      %v224 = vsel %vm223, %v215, %v220
      %v225 = vmul.f32 %v191, %v214
      %v226 = vmul.f32 %v192, %v224
      %v228 = vperm.slane %v173, 0
      %v230 = vmul.f32 %v225, %v228
      %v231 = vmul.f32 %v226, %v228
      %v233 = vperm.slane %v174, 0
      %v235 = vadd.f32 %v230, %v233
      %v236 = vadd.f32 %v231, %v233
      %v237 = vsel %vm175, %v235, 0.0
      %v238 = vsel %vm175, %v236, 0.0
      %v239 = vadd.f32 %v237, %v238
      %v240 = vrot.slane %v239, 4
      %v241 = vadd.f32 %v239, %v240
      %v242 = vrot.slane %v241, 2
      %v243 = vadd.f32 %v241, %v242
      %v244 = vrot.slane %v243, 1
      %v245 = vadd.f32 %v243, %v244
      %v246 = vrcp.pop 16.0
      %v247 = vmul.f32 16.0, %v246
      %v248 = vsub.f32 1.0, %v247
      %v249 = vmul.f32 %v246, %v248
      %v250 = vadd.f32 %v246, %v249
      %vm251 = vweird.f32 %v246
      %v252 = vsel %vm251, %v246, %v250
      %v253 = vmul.f32 %v245, %v252
      %v254 = vsub.f32 %v235, %v253
      %v255 = vsub.f32 %v236, %v253
      %256 = vst.msk [vmem:[%s170] sm:$0xff] %vm175, %v254
      %257 = vst.msk [vmem:[%s170 + $0x8] sm:$0xff] %vm175, %v255
      %p258 = scmp.lt.s32.totalorder %s14, 1
      %s259 = scalar_select %p258, %s14, 1
      %s260 = smul.addr %s259, 2
      %s261 = smul.addr %s260, 8
      %s262 = scalar_lea.vmem %s3, %s261
      // Predicated region
      $region33: #{model_forward.36} parent=31 // pred_check
        %p263 = pneg %p100
      $region34: #{model_forward.36} parent=31 // pred_check_branch
        %265 = sbr.rel (%p263) target = $region36
      $region35: #{model_forward.36} parent=31 // pred_region
        _
      $region36: #{model_forward.36} parent=31 // pred_fallthru
        _
    $region32: #{model_forward.36} parent=5 // pred_fallthru
      _
    %p266 = scmp.le.s32.totalorder 2, %s9
    // Predicated region
    $region37: #{model_forward.36} parent=5 // pred_check
      %p267 = pneg %p266
    $region38: #{model_forward.36} parent=5 // pred_check_branch
      %269 = sbr.rel (%p267) target = $region40
    $region39: #{model_forward.36} parent=5 // pred_region
      %s270 = ssub.s32 %s9, 2
      // Predicated region
      $region41: #{model_forward.36} parent=39 // pred_check
        %p271 = pneg %p106
      $region42: #{model_forward.36} parent=39 // pred_check_branch
        %273 = sbr.rel (%p271) target = $region44
      $region43: #{model_forward.36} parent=39 // pred_region
        %p274 = scmp.lt.s32.totalorder %s15, 1
        %s275 = scalar_select %p274, %s15, 1
        %s276 = smul.addr %s275, 2
        %s277 = smul.addr %s276, 8
        %s278 = scalar_lea.vmem %s3, %s277
      $region44: #{model_forward.36} parent=39 // pred_fallthru
        _
    $region40: #{model_forward.36} parent=5 // pred_fallthru
      _
  $region6: #{model_forward.36} parent=0 // loop_footer
    %s13 = sadd.s32 1, %s9
  $region7: #{model_forward.36} parent=0 // loop_footer_branch
    %8 = sbr.rel target = $region3
  $region8: #{model_forward.36} parent=0 // loop_exit
    _

// kernel: model_forward.37
$region0: #{model_forward.37}
  #allocation0 [shape = 'u32[]', space=smem, size = 0x4, offset = 0x4, fixed_abs, tag = 'smem constant byte address 0x4 - core index']
  #allocation1 [shape = 'u32[72,128]{1,0:T(1,128)}', space=vmem, size = 0x9000, scoped, tag = 'internal scratch']
  #allocation2 [shape = 'f32[32,64]{1,0:T(8,128)}', space=vmem, size = 0x4000, scoped, tag = 'scratch operand']
  %s0 = inlined_call_operand.vmem [shape: f32[32,32], index: 0, kind: input, shape index: {}]
  %s1 = inlined_call_operand.vmem [shape: f32[32,64], index: 1, kind: input, shape index: {}]
  %s2 = inlined_call_operand.vmem [shape: f32[1,64], index: 2, kind: input, shape index: {}]
  %s3 = inlined_call_operand.vmem [shape: f32[32,64], index: 3, kind: output, shape index: {}]
  %s4 = sld [smem:[#allocation0]]
  $region30: #{model_forward.37} parent=0
    _
  %s6 = ssub.s32 1, %s4
  %s7 = scalar_select 0, %s6, %s4
  // Predicated region
  $region2: #{model_forward.37} parent=0 // pred_check
    _
  $region3: #{model_forward.37} parent=0 // pred_check_branch
    %9 = sbr.rel (0) target = $region5
  $region4: #{model_forward.37} parent=0 // pred_region
    _
  $region5: #{model_forward.37} parent=0 // pred_fallthru
    _
  // Predicated region
  $region6: #{model_forward.37} parent=0 // pred_check
    _
  $region7: #{model_forward.37} parent=0 // pred_check_branch
    %11 = sbr.rel (0) target = $region9
  $region8: #{model_forward.37} parent=0 // pred_region
    _
  $region9: #{model_forward.37} parent=0 // pred_fallthru
    _
  // Predicated region
  $region10: #{model_forward.37} parent=0 // pred_check
    _
  $region11: #{model_forward.37} parent=0 // pred_check_branch
    %13 = sbr.rel (0) target = $region13
  $region12: #{model_forward.37} parent=0 // pred_region
    _
  $region13: #{model_forward.37} parent=0 // pred_fallthru
    _
  %p15 = scmp.eq.s32.totalorder 0, 0
  // Predicated region
  $region14: #{model_forward.37} parent=0 // pred_check
    %p16 = pneg %p15
  $region15: #{model_forward.37} parent=0 // pred_check_branch
    %18 = sbr.rel (%p16) target = $region17
  $region16: #{model_forward.37} parent=0 // pred_region
    %vm19 = vcmask 523264
    %20 = vst.msk [vmem:[#allocation2] sm:$0xff] %vm19, 0.0
    %21 = vst.msk [vmem:[#allocation2 + $0x8] sm:$0xff] %vm19, 0.0
    %22 = vst.msk [vmem:[#allocation2 + $0x10] sm:$0xff] %vm19, 0.0
    %23 = vst.msk [vmem:[#allocation2 + $0x18] sm:$0xff] %vm19, 0.0
  $region17: #{model_forward.37} parent=0 // pred_fallthru
    _
  %v24 = vld [vmem:[#allocation2] sm:$0xff]
  %v25 = vld [vmem:[#allocation2 + $0x8] sm:$0xff]
  %v26 = vld [vmem:[#allocation2 + $0x10] sm:$0xff]
  %v27 = vld [vmem:[#allocation2 + $0x18] sm:$0xff]
  %v28 = vld [vmem:[%s0] sm:$0xff]
  %v29 = vld [vmem:[%s0 + $0x8] sm:$0xff]
  %v30 = vld [vmem:[%s0 + $0x10] sm:$0xff]
  %v31 = vld [vmem:[%s0 + $0x18] sm:$0xff]
  %v32 = vpack.c.bf16 %v29, %v28
  %v33 = vpack.c.bf16 %v31, %v30
  %v34 = vld [vmem:[%s1] sm:$0xff]
  %v35 = vld [vmem:[%s1 + $0x8] sm:$0xff]
  %v36 = vld [vmem:[%s1 + $0x10] sm:$0xff]
  %v37 = vld [vmem:[%s1 + $0x18] sm:$0xff]
  %v38 = vpack.c.bf16 %v35, %v34
  %v39 = vpack.c.bf16 %v37, %v36
  %vm40 = vcmask 261120
  %v42 = vsel %vm40, %v32, 0
  %v45 = vsel %vm40, %v33, 0
  %47 = vmatpush.bf16.msra.mxu0 0
  %48 = vmatpush.bf16.msra.mxu0 0
  %49 = vmatpush.bf16.msra.mxu0 0
  %50 = vmatpush.bf16.msra.mxu0 0
  %51 = vmatpush.bf16.msra.mxu0 0
  %52 = vmatpush.bf16.msra.mxu0 0
  %53 = vmatpush.bf16.msra.mxu0 %v39
  %54 = vmatpush.bf16.msra.mxu0 %v38
  %55 = vmatmul.bf16.gmra.mxu0 %v42
  %v56 = vpop.f32.mrf.mxu0
  %v57 = vadd.f32 0.0, %v56
  %v58 = vpop.f32.mrf.mxu0
  %v59 = vadd.f32 0.0, %v58
  %60 = vmatmul.bf16.gmra.mxu0 %v45
  %v61 = vpop.f32.mrf.mxu0
  %v62 = vadd.f32 0.0, %v61
  %v63 = vpop.f32.mrf.mxu0
  %v64 = vadd.f32 0.0, %v63
  %65 = vdwg.mxu0
  %v66 = vadd.f32 %v24, %v57
  %v67 = vadd.f32 %v25, %v59
  %v68 = vadd.f32 %v26, %v62
  %v69 = vadd.f32 %v27, %v64
  %vm70 = vcmask 523264
  %71 = vst.msk [vmem:[#allocation2] sm:$0xff] %vm70, %v66
  %72 = vst.msk [vmem:[#allocation2 + $0x8] sm:$0xff] %vm70, %v67
  %73 = vst.msk [vmem:[#allocation2 + $0x10] sm:$0xff] %vm70, %v68
  %74 = vst.msk [vmem:[#allocation2 + $0x18] sm:$0xff] %vm70, %v69
  // Predicated region
  $region18: #{model_forward.37} parent=0 // pred_check
    %p75 = pneg %p15
  $region19: #{model_forward.37} parent=0 // pred_check_branch
    %77 = sbr.rel (%p75) target = $region21
  $region20: #{model_forward.37} parent=0 // pred_region
    %v78 = vld [vmem:[#allocation2] sm:$0xff]
    %v79 = vld [vmem:[#allocation2 + $0x8] sm:$0xff]
    %v80 = vld [vmem:[#allocation2 + $0x10] sm:$0xff]
    %v81 = vld [vmem:[#allocation2 + $0x18] sm:$0xff]
    %v82 = vld [vmem:[%s2] sm:$0x1]
    %v84 = vperm.slane %v82, 0
    %v86 = vadd.f32 %v78, %v84
    %v87 = vadd.f32 %v79, %v84
    %v88 = vadd.f32 %v80, %v84
    %v89 = vadd.f32 %v81, %v84
    %90 = vst.msk [vmem:[%s3] sm:$0xff] %vm70, %v86
    %91 = vst.msk [vmem:[%s3 + $0x8] sm:$0xff] %vm70, %v87
    %92 = vst.msk [vmem:[%s3 + $0x10] sm:$0xff] %vm70, %v88
    %93 = vst.msk [vmem:[%s3 + $0x18] sm:$0xff] %vm70, %v89
  $region21: #{model_forward.37} parent=0 // pred_fallthru
    _
  // Predicated region
  $region22: #{model_forward.37} parent=0 // pred_check
    _
  $region23: #{model_forward.37} parent=0 // pred_check_branch
    %95 = sbr.rel (0) target = $region25
  $region24: #{model_forward.37} parent=0 // pred_region
    _
  $region25: #{model_forward.37} parent=0 // pred_fallthru
    _
  // Predicated region
  $region26: #{model_forward.37} parent=0 // pred_check
    _
  $region27: #{model_forward.37} parent=0 // pred_check_branch
    %97 = sbr.rel (0) target = $region29
  $region28: #{model_forward.37} parent=0 // pred_region
    _
  $region29: #{model_forward.37} parent=0 // pred_fallthru
    _

// kernel: model_forward.45
$region0: #{model_forward.45}
  #allocation0 [shape = 'u32[]', space=smem, size = 0x4, offset = 0x4, fixed_abs, tag = 'smem constant byte address 0x4 - core index']
  #allocation1 [shape = 'u32[72,128]{1,0:T(1,128)}', space=vmem, size = 0x9000, scoped, tag = 'internal scratch']
  %s0 = inlined_call_operand.vmem [shape: f32[2,16,32], index: 0, kind: input, shape index: {}]
  %s1 = inlined_call_operand.vmem [shape: f32[1,32], index: 1, kind: input, shape index: {}]
  %s2 = inlined_call_operand.vmem [shape: f32[1,32], index: 2, kind: input, shape index: {}]
  %s3 = inlined_call_operand.vmem [shape: f32[32,4], index: 3, kind: input, shape index: {}]
  %s4 = inlined_call_operand.vmem [shape: f32[1,4], index: 4, kind: input, shape index: {}]
  %s5 = inlined_call_operand.vmem [shape: f32[2,16,4], index: 5, kind: output, shape index: {}]
  %s6 = sld [smem:[#allocation0]]
  $region53: #{model_forward.45} parent=0
    _
  %s8 = ssub.s32 1, %s6
  %s9 = scalar_select 0, %s8, %s6
  loop: start=0, step=1, limit=4
  $region2: #{model_forward.45} parent=0 // loop_pre_header
    _
  $region3: #{model_forward.45} parent=0 // loop_header
    %s11 = sphi 0, %s15
    %p12 = scmp.ge.s32.totalorder %s11, 4
    %s21 = sphi 0, %s23
    %s24 = sphi 0, %s21
    %s25 = sphi 0, %s24
    %s41 = sphi 0, %s25
    %s45 = sphi 0, %s45
    %s47 = sphi 0, %s45
    %s48 = sphi 0, %s47
    %s62 = sphi 0, %s48
    %s66 = sphi 0, %s66
    %s68 = sphi 0, %s66
    %s69 = sphi 0, %s68
    %s83 = sphi 0, %s69
    %s87 = sphi 0, %s87
    %s89 = sphi 0, %s87
    %s90 = sphi 0, %s89
    %s104 = sphi 0, %s90
    %s108 = sphi 0, %s108
    %s110 = sphi 0, %s108
    %s111 = sphi 0, %s110
    %s125 = sphi 0, %s111
    %s131 = sphi 0, %s133
    %s134 = sphi 0, %s131
    %s135 = sphi 0, %s134
    %s151 = sphi 0, %s135
  $region4: #{model_forward.45} parent=0 // loop_header_branch
    %14 = sbr.rel (%p12) target = $region8
  $region5: #{model_forward.45} parent=0 // loop_body
    %s16 = ssub.s32 %s11, 1
    %s17 = ssub.s32 %s11, 2
    %s18 = sadd.s32 %s11, 1
    %s19 = ssub.s32 %s11, %s18
    %p20 = scmp.eq.s32.totalorder %s19, 0
    %s22 = sadd.s32 %s21, 1
    %s23 = scalar_select %p20, %s21, %s22
    %p26 = pneg %p20
    %p27 = scmp.eq.s32.totalorder %s11, 1
    %p28 = por %p26, %p27
    %p29 = scmp.ne.s32.totalorder %s21, %s24
    %p30 = scmp.eq.s32.totalorder %s11, 0
    %p31 = por %p29, %p30
    %p32 = scmp.ne.s32.totalorder %s21, %s24
    %p33 = scmp.eq.s32.totalorder %s16, 1
    %p34 = por %p32, %p33
    %p35 = scmp.ne.s32.totalorder %s24, %s25
    %p36 = scmp.eq.s32.totalorder %s16, 0
    %p37 = por %p35, %p36
    %p38 = scmp.ne.s32.totalorder %s24, %s25
    %p39 = scmp.eq.s32.totalorder %s17, 1
    %p40 = por %p38, %p39
    %p42 = scmp.ne.s32.totalorder %s25, %s41
    %p43 = scmp.eq.s32.totalorder %s17, 0
    %p44 = por %p42, %p43
    %s46 = sadd.s32 %s45, 1
    %p49 = scmp.eq.s32.totalorder %s11, 1
    %p50 = scmp.ne.s32.totalorder %s45, %s47
    %p51 = scmp.eq.s32.totalorder %s11, 0
    %p52 = por %p50, %p51
    %p53 = scmp.ne.s32.totalorder %s45, %s47
    %p54 = scmp.eq.s32.totalorder %s16, 1
    %p55 = por %p53, %p54
    %p56 = scmp.ne.s32.totalorder %s47, %s48
    %p57 = scmp.eq.s32.totalorder %s16, 0
    %p58 = por %p56, %p57
    %p59 = scmp.ne.s32.totalorder %s47, %s48
    %p60 = scmp.eq.s32.totalorder %s17, 1
    %p61 = por %p59, %p60
    %p63 = scmp.ne.s32.totalorder %s48, %s62
    %p64 = scmp.eq.s32.totalorder %s17, 0
    %p65 = por %p63, %p64
    %s67 = sadd.s32 %s66, 1
    %p70 = scmp.eq.s32.totalorder %s11, 1
    %p71 = scmp.ne.s32.totalorder %s66, %s68
    %p72 = scmp.eq.s32.totalorder %s11, 0
    %p73 = por %p71, %p72
    %p74 = scmp.ne.s32.totalorder %s66, %s68
    %p75 = scmp.eq.s32.totalorder %s16, 1
    %p76 = por %p74, %p75
    %p77 = scmp.ne.s32.totalorder %s68, %s69
    %p78 = scmp.eq.s32.totalorder %s16, 0
    %p79 = por %p77, %p78
    %p80 = scmp.ne.s32.totalorder %s68, %s69
    %p81 = scmp.eq.s32.totalorder %s17, 1
    %p82 = por %p80, %p81
    %p84 = scmp.ne.s32.totalorder %s69, %s83
    %p85 = scmp.eq.s32.totalorder %s17, 0
    %p86 = por %p84, %p85
    %s88 = sadd.s32 %s87, 1
    %p91 = scmp.eq.s32.totalorder %s11, 1
    %p92 = scmp.ne.s32.totalorder %s87, %s89
    %p93 = scmp.eq.s32.totalorder %s11, 0
    %p94 = por %p92, %p93
    %p95 = scmp.ne.s32.totalorder %s87, %s89
    %p96 = scmp.eq.s32.totalorder %s16, 1
    %p97 = por %p95, %p96
    %p98 = scmp.ne.s32.totalorder %s89, %s90
    %p99 = scmp.eq.s32.totalorder %s16, 0
    %p100 = por %p98, %p99
    %p101 = scmp.ne.s32.totalorder %s89, %s90
    %p102 = scmp.eq.s32.totalorder %s17, 1
    %p103 = por %p101, %p102
    %p105 = scmp.ne.s32.totalorder %s90, %s104
    %p106 = scmp.eq.s32.totalorder %s17, 0
    %p107 = por %p105, %p106
    %s109 = sadd.s32 %s108, 1
    %p112 = scmp.eq.s32.totalorder %s11, 1
    %p113 = scmp.ne.s32.totalorder %s108, %s110
    %p114 = scmp.eq.s32.totalorder %s11, 0
    %p115 = por %p113, %p114
    %p116 = scmp.ne.s32.totalorder %s108, %s110
    %p117 = scmp.eq.s32.totalorder %s16, 1
    %p118 = por %p116, %p117
    %p119 = scmp.ne.s32.totalorder %s110, %s111
    %p120 = scmp.eq.s32.totalorder %s16, 0
    %p121 = por %p119, %p120
    %p122 = scmp.ne.s32.totalorder %s110, %s111
    %p123 = scmp.eq.s32.totalorder %s17, 1
    %p124 = por %p122, %p123
    %p126 = scmp.ne.s32.totalorder %s111, %s125
    %p127 = scmp.eq.s32.totalorder %s17, 0
    %p128 = por %p126, %p127
    %s129 = ssub.s32 %s11, %s18
    %p130 = scmp.eq.s32.totalorder %s129, 0
    %s132 = sadd.s32 %s131, 1
    %s133 = scalar_select %p130, %s131, %s132
    %p136 = pneg %p130
    %p137 = scmp.eq.s32.totalorder %s11, 1
    %p138 = por %p136, %p137
    %p139 = scmp.ne.s32.totalorder %s131, %s134
    %p140 = scmp.eq.s32.totalorder %s11, 0
    %p141 = por %p139, %p140
    %p142 = scmp.ne.s32.totalorder %s131, %s134
    %p143 = scmp.eq.s32.totalorder %s16, 1
    %p144 = por %p142, %p143
    %p145 = scmp.ne.s32.totalorder %s134, %s135
    %p146 = scmp.eq.s32.totalorder %s16, 0
    %p147 = por %p145, %p146
    %p148 = scmp.ne.s32.totalorder %s134, %s135
    %p149 = scmp.eq.s32.totalorder %s17, 1
    %p150 = por %p148, %p149
    %p152 = scmp.ne.s32.totalorder %s135, %s151
    %p153 = scmp.eq.s32.totalorder %s17, 0
    %p154 = por %p152, %p153
    %p155 = scmp.le.s32.totalorder 1, %s11
    %p156 = scmp.lt.s32.totalorder %s11, 3
    %p157 = pnand %p155, %p156
    %p158 = pneg %p157
    // Predicated region
    $region9: #{model_forward.45} parent=5 // pred_check
      _
    $region10: #{model_forward.45} parent=5 // pred_check_branch
      %160 = sbr.rel (%p157) target = $region12
    $region11: #{model_forward.45} parent=5 // pred_region
      %s161 = ssub.s32 %s11, 1
      // Predicated region
      $region13: #{model_forward.45} parent=11 // pred_check
        %p162 = pneg %p58
      $region14: #{model_forward.45} parent=11 // pred_check_branch
        %164 = sbr.rel (%p162) target = $region16
      $region15: #{model_forward.45} parent=11 // pred_region
        _
      $region16: #{model_forward.45} parent=11 // pred_fallthru
        _
      // Predicated region
      $region17: #{model_forward.45} parent=11 // pred_check
        %p165 = pneg %p79
      $region18: #{model_forward.45} parent=11 // pred_check_branch
        %167 = sbr.rel (%p165) target = $region20
      $region19: #{model_forward.45} parent=11 // pred_region
        _
      $region20: #{model_forward.45} parent=11 // pred_fallthru
        _
      // Predicated region
      $region21: #{model_forward.45} parent=11 // pred_check
        %p168 = pneg %p100
      $region22: #{model_forward.45} parent=11 // pred_check_branch
        %170 = sbr.rel (%p168) target = $region24
      $region23: #{model_forward.45} parent=11 // pred_region
        _
      $region24: #{model_forward.45} parent=11 // pred_fallthru
        _
      // Predicated region
      $region25: #{model_forward.45} parent=11 // pred_check
        %p171 = pneg %p121
      $region26: #{model_forward.45} parent=11 // pred_check_branch
        %173 = sbr.rel (%p171) target = $region28
      $region27: #{model_forward.45} parent=11 // pred_region
        _
      $region28: #{model_forward.45} parent=11 // pred_fallthru
        _
    $region12: #{model_forward.45} parent=5 // pred_fallthru
      _
    %p174 = scmp.lt.s32.totalorder %s11, 2
    // Predicated region
    $region29: #{model_forward.45} parent=5 // pred_check
      %p175 = pneg %p174
    $region30: #{model_forward.45} parent=5 // pred_check_branch
      %177 = sbr.rel (%p175) target = $region32
    $region31: #{model_forward.45} parent=5 // pred_region
      // Predicated region
      $region33: #{model_forward.45} parent=31 // pred_check
        %p178 = pneg %p31
      $region34: #{model_forward.45} parent=31 // pred_check_branch
        %180 = sbr.rel (%p178) target = $region36
      $region35: #{model_forward.45} parent=31 // pred_region
        %p181 = scmp.lt.s32.totalorder %s11, 1
        %s182 = scalar_select %p181, %s11, 1
        %s183 = smul.addr %s182, 2
        %s184 = smul.addr %s183, 8
        %s185 = scalar_lea.vmem %s0, %s184
      $region36: #{model_forward.45} parent=31 // pred_fallthru
        _
    $region32: #{model_forward.45} parent=5 // pred_fallthru
      _
    %p186 = scmp.le.s32.totalorder 1, %s11
    %p187 = scmp.lt.s32.totalorder %s11, 3
    %p188 = pnand %p186, %p187
    %p189 = pneg %p188
    // Predicated region
    $region37: #{model_forward.45} parent=5 // pred_check
      _
    $region38: #{model_forward.45} parent=5 // pred_check_branch
      %191 = sbr.rel (%p188) target = $region40
    $region39: #{model_forward.45} parent=5 // pred_region
      %s192 = ssub.s32 %s11, 1
      %p193 = scmp.lt.s32.totalorder %s16, 1
      %s194 = scalar_select %p193, %s16, 1
      %s195 = smul.addr %s194, 2
      %s196 = smul.addr %s195, 8
      %s197 = scalar_lea.vmem %s0, %s196
      %p198 = pneg %p37
      %p199 = pneg %p34
      %p200 = pneg %p58
      %p201 = pneg %p55
      %p202 = pneg %p79
      %p203 = pneg %p76
      %p204 = pneg %p100
      %p205 = pneg %p97
      %p206 = pneg %p121
      %p207 = pneg %p118
      %p208 = pneg %p147
      %p209 = pneg %p144
      %p210 = scmp.lt.s32.totalorder %s16, 1
      %s211 = scalar_select %p210, %s16, 1
      %s212 = smul.addr %s211, 2
      %s213 = smul.addr %s212, 8
      %s214 = scalar_lea.vmem %s5, %s213
      %p215 = scmp.lt.s32.totalorder %s16, 1
      %s216 = scalar_select %p215, %s16, 1
      %s217 = smul.addr %s216, 2
      %s218 = smul.addr %s217, 8
      %s219 = scalar_lea.vmem %s0, %s218
      %p220 = scmp.lt.s32.totalorder %s16, 1
      %s221 = scalar_select %p220, %s16, 1
      %s222 = smul.addr %s221, 2
      %s223 = smul.addr %s222, 8
      %s224 = scalar_lea.vmem %s5, %s223
      %v225 = vld [vmem:[%s219] sm:$0xff]
      %v226 = vld [vmem:[%s219 + $0x8] sm:$0xff]
      %v227 = vld [vmem:[%s1] sm:$0x1]
      %v228 = vld [vmem:[%s2] sm:$0x1]
      %vm229 = vcmask 261120
      %v230 = vsel %vm229, %v225, 0.0
      %231 = vadd.xlane.f32.xlu0 %v230
      %v232 = vpop.xlane.xlu0 %231
      %v233 = vsel %vm229, %v226, 0.0
      %234 = vadd.xlane.f32.xlu0 %v233
      %v235 = vpop.xlane.xlu0 %234
      %v236 = vrcp.pop 32.0
      %v237 = vmul.f32 32.0, %v236
      %v238 = vsub.f32 1.0, %v237
      %v239 = vmul.f32 %v236, %v238
      %v240 = vadd.f32 %v236, %v239
      %vm241 = vweird.f32 %v236
      %v242 = vsel %vm241, %v236, %v240
      %v243 = vmul.f32 %v232, %v242
      %v244 = vmul.f32 %v235, %v242
      %v245 = vsub.f32 %v225, %v243
      %v246 = vsub.f32 %v226, %v244
      %v247 = vmul.f32 %v245, %v245
      %v248 = vmul.f32 %v246, %v246
      %v249 = vsel %vm229, %v247, 0.0
      %250 = vadd.xlane.f32.xlu0 %v249
      %v251 = vpop.xlane.xlu0 %250
      %v252 = vsel %vm229, %v248, 0.0
      %253 = vadd.xlane.f32.xlu0 %v252
      %v254 = vpop.xlane.xlu0 %253
      %v255 = vmul.f32 %v251, %v242
      %v256 = vmul.f32 %v254, %v242
      %v257 = vadd.f32 %v255, 1e-05
      %v258 = vadd.f32 %v256, 1e-05
      %v259 = vrsqrt.pop %v257
      %v260 = vmul.f32 %v259, %v257
      %v261 = vmul.f32 %v260, %v259
      %v262 = vmul.f32 0.5, %v261
      %v263 = vsub.f32 1.5, %v262
      %v264 = vmul.f32 %v259, %v263
      %vm265 = vweird.f32 %v257
      %vm266 = vweird.f32 %v259
      %vm267 = vmor %vm265, %vm266
      %v268 = vsel %vm267, %v259, %v264
      %v269 = vrsqrt.pop %v258
      %v270 = vmul.f32 %v269, %v258
      %v271 = vmul.f32 %v270, %v269
      %v272 = vmul.f32 0.5, %v271
      %v273 = vsub.f32 1.5, %v272
      %v274 = vmul.f32 %v269, %v273
      %vm275 = vweird.f32 %v258
      %vm276 = vweird.f32 %v269
      %vm277 = vmor %vm275, %vm276
      %v278 = vsel %vm277, %v269, %v274
      %v279 = vmul.f32 %v245, %v268
      %v280 = vmul.f32 %v246, %v278
      %v282 = vperm.slane %v227, 0
      %v284 = vmul.f32 %v279, %v282
      %v285 = vmul.f32 %v280, %v282
      %v287 = vperm.slane %v228, 0
      %v289 = vadd.f32 %v284, %v287
      %v290 = vadd.f32 %v285, %v287
      %v291 = vsel %vm229, %v289, 0.0
      %v292 = vsel %vm229, %v290, 0.0
      %v293 = vadd.f32 %v291, %v292
      %v294 = vrot.slane %v293, 4
      %v295 = vadd.f32 %v293, %v294
      %v296 = vrot.slane %v295, 2
      %v297 = vadd.f32 %v295, %v296
      %v298 = vrot.slane %v297, 1
      %v299 = vadd.f32 %v297, %v298
      %v300 = vrcp.pop 16.0
      %v301 = vmul.f32 16.0, %v300
      %v302 = vsub.f32 1.0, %v301
      %v303 = vmul.f32 %v300, %v302
      %v304 = vadd.f32 %v300, %v303
      %vm305 = vweird.f32 %v300
      %v306 = vsel %vm305, %v300, %v304
      %v307 = vmul.f32 %v299, %v306
      %v308 = vsub.f32 %v289, %v307
      %v309 = vsub.f32 %v290, %v307
      %v310 = vld [vmem:[%s3] sm:$0xff]
      %v311 = vld [vmem:[%s3 + $0x8] sm:$0xff]
      %v312 = vld [vmem:[%s3 + $0x10] sm:$0xff]
      %v313 = vld [vmem:[%s3 + $0x18] sm:$0xff]
      %v314 = vld [vmem:[%s4] sm:$0x1]
      %v316 = vperm.slane %v314, 0
      %v319 = vsel %vm229, %v308, 0
      %v322 = vsel %vm229, %v309, 0
      %324 = vmatpush.msra.mxu0 0.0
      %325 = vmatpush.msra.mxu0 0.0
      %326 = vmatpush.msra.mxu0 0.0
      %327 = vmatpush.msra.mxu0 0.0
      %328 = vmatpush.msra.mxu0 0.0
      %329 = vmatpush.msra.mxu0 0.0
      %330 = vmatpush.msra.mxu0 0.0
      %331 = vmatpush.msra.mxu0 0.0
      %332 = vmatpush.msra.mxu0 0.0
      %333 = vmatpush.msra.mxu0 0.0
      %334 = vmatpush.msra.mxu0 0.0
      %335 = vmatpush.msra.mxu0 0.0
      %336 = vmatpush.msra.mxu0 %v313
      %337 = vmatpush.msra.mxu0 %v312
      %338 = vmatpush.msra.mxu0 %v311
      %339 = vmatpush.msra.mxu0 %v310
      %340 = vmatmul.f32.gmra.mxu0 %v319
      %v341 = vpop.f32.mrf.mxu0
      %v342 = vadd.f32 %v316, %v341
      %343 = vmatmul.f32.gmra.mxu0 %v322
      %v344 = vpop.f32.mrf.mxu0
      %v345 = vadd.f32 %v316, %v344
      %346 = vdwg.mxu0
      %vm347 = vcmask 31744
      %348 = vst.msk [vmem:[%s224] sm:$0xff] %vm347, %v342
      %349 = vst.msk [vmem:[%s224 + $0x8] sm:$0xff] %vm347, %v345
      %p350 = scmp.lt.s32.totalorder %s16, 1
      %s351 = scalar_select %p350, %s16, 1
      %s352 = smul.addr %s351, 2
      %s353 = smul.addr %s352, 8
      %s354 = scalar_lea.vmem %s5, %s353
      // Predicated region
      $region41: #{model_forward.45} parent=39 // pred_check
        %p355 = pneg %p144
      $region42: #{model_forward.45} parent=39 // pred_check_branch
        %357 = sbr.rel (%p355) target = $region44
      $region43: #{model_forward.45} parent=39 // pred_region
        _
      $region44: #{model_forward.45} parent=39 // pred_fallthru
        _
    $region40: #{model_forward.45} parent=5 // pred_fallthru
      _
    %p358 = scmp.le.s32.totalorder 2, %s11
    // Predicated region
    $region45: #{model_forward.45} parent=5 // pred_check
      %p359 = pneg %p358
    $region46: #{model_forward.45} parent=5 // pred_check_branch
      %361 = sbr.rel (%p359) target = $region48
    $region47: #{model_forward.45} parent=5 // pred_region
      %s362 = ssub.s32 %s11, 2
      // Predicated region
      $region49: #{model_forward.45} parent=47 // pred_check
        %p363 = pneg %p150
      $region50: #{model_forward.45} parent=47 // pred_check_branch
        %365 = sbr.rel (%p363) target = $region52
      $region51: #{model_forward.45} parent=47 // pred_region
        %p366 = scmp.lt.s32.totalorder %s17, 1
        %s367 = scalar_select %p366, %s17, 1
        %s368 = smul.addr %s367, 2
        %s369 = smul.addr %s368, 8
        %s370 = scalar_lea.vmem %s5, %s369
      $region52: #{model_forward.45} parent=47 // pred_fallthru
        _
    $region48: #{model_forward.45} parent=5 // pred_fallthru
      _
  $region6: #{model_forward.45} parent=0 // loop_footer
    %s15 = sadd.s32 1, %s11
  $region7: #{model_forward.45} parent=0 // loop_footer_branch
    %10 = sbr.rel target = $region3
  $region8: #{model_forward.45} parent=0 // loop_exit
    _

// kernel: model_forward.44
$region0: #{model_forward.44}
  #allocation0 [shape = 'u32[]', space=smem, size = 0x4, offset = 0x4, fixed_abs, tag = 'smem constant byte address 0x4 - core index']
  #allocation1 [shape = 'u32[72,128]{1,0:T(1,128)}', space=vmem, size = 0x9000, scoped, tag = 'internal scratch']
  %s0 = inlined_call_operand.vmem [shape: f32[2,16,32], index: 0, kind: input, shape index: {}]
  %s1 = inlined_call_operand.vmem [shape: f32[2,16,32], index: 1, kind: input, shape index: {}]
  %s2 = inlined_call_operand.vmem [shape: f32[2,16,32], index: 2, kind: input, shape index: {}]
  %s3 = inlined_call_operand.vmem [shape: f32[96,4], index: 3, kind: input, shape index: {}]
  %s4 = inlined_call_operand.vmem [shape: f32[2,16,4], index: 4, kind: output, shape index: {}]
  %s5 = sld [smem:[#allocation0]]
  $region49: #{model_forward.44} parent=0
    _
  %s7 = ssub.s32 1, %s5
  %s8 = scalar_select 0, %s7, %s5
  loop: start=0, step=1, limit=4
  $region2: #{model_forward.44} parent=0 // loop_pre_header
    _
  $region3: #{model_forward.44} parent=0 // loop_header
    %s10 = sphi 0, %s14
    %p11 = scmp.ge.s32.totalorder %s10, 4
    %s20 = sphi 0, %s22
    %s23 = sphi 0, %s20
    %s24 = sphi 0, %s23
    %s40 = sphi 0, %s24
    %s46 = sphi 0, %s48
    %s49 = sphi 0, %s46
    %s50 = sphi 0, %s49
    %s66 = sphi 0, %s50
    %s72 = sphi 0, %s74
    %s75 = sphi 0, %s72
    %s76 = sphi 0, %s75
    %s92 = sphi 0, %s76
    %s96 = sphi 0, %s96
    %s98 = sphi 0, %s96
    %s99 = sphi 0, %s98
    %s113 = sphi 0, %s99
    %s119 = sphi 0, %s121
    %s122 = sphi 0, %s119
    %s123 = sphi 0, %s122
    %s139 = sphi 0, %s123
  $region4: #{model_forward.44} parent=0 // loop_header_branch
    %13 = sbr.rel (%p11) target = $region8
  $region5: #{model_forward.44} parent=0 // loop_body
    %s15 = ssub.s32 %s10, 1
    %s16 = ssub.s32 %s10, 2
    %s17 = sadd.s32 %s10, 1
    %s18 = ssub.s32 %s10, %s17
    %p19 = scmp.eq.s32.totalorder %s18, 0
    %s21 = sadd.s32 %s20, 1
    %s22 = scalar_select %p19, %s20, %s21
    %p25 = pneg %p19
    %p26 = scmp.eq.s32.totalorder %s10, 1
    %p27 = por %p25, %p26
    %p28 = scmp.ne.s32.totalorder %s20, %s23
    %p29 = scmp.eq.s32.totalorder %s10, 0
    %p30 = por %p28, %p29
    %p31 = scmp.ne.s32.totalorder %s20, %s23
    %p32 = scmp.eq.s32.totalorder %s15, 1
    %p33 = por %p31, %p32
    %p34 = scmp.ne.s32.totalorder %s23, %s24
    %p35 = scmp.eq.s32.totalorder %s15, 0
    %p36 = por %p34, %p35
    %p37 = scmp.ne.s32.totalorder %s23, %s24
    %p38 = scmp.eq.s32.totalorder %s16, 1
    %p39 = por %p37, %p38
    %p41 = scmp.ne.s32.totalorder %s24, %s40
    %p42 = scmp.eq.s32.totalorder %s16, 0
    %p43 = por %p41, %p42
    %s44 = ssub.s32 %s10, %s17
    %p45 = scmp.eq.s32.totalorder %s44, 0
    %s47 = sadd.s32 %s46, 1
    %s48 = scalar_select %p45, %s46, %s47
    %p51 = pneg %p45
    %p52 = scmp.eq.s32.totalorder %s10, 1
    %p53 = por %p51, %p52
    %p54 = scmp.ne.s32.totalorder %s46, %s49
    %p55 = scmp.eq.s32.totalorder %s10, 0
    %p56 = por %p54, %p55
    %p57 = scmp.ne.s32.totalorder %s46, %s49
    %p58 = scmp.eq.s32.totalorder %s15, 1
    %p59 = por %p57, %p58
    %p60 = scmp.ne.s32.totalorder %s49, %s50
    %p61 = scmp.eq.s32.totalorder %s15, 0
    %p62 = por %p60, %p61
    %p63 = scmp.ne.s32.totalorder %s49, %s50
    %p64 = scmp.eq.s32.totalorder %s16, 1
    %p65 = por %p63, %p64
    %p67 = scmp.ne.s32.totalorder %s50, %s66
    %p68 = scmp.eq.s32.totalorder %s16, 0
    %p69 = por %p67, %p68
    %s70 = ssub.s32 %s10, %s17
    %p71 = scmp.eq.s32.totalorder %s70, 0
    %s73 = sadd.s32 %s72, 1
    %s74 = scalar_select %p71, %s72, %s73
    %p77 = pneg %p71
    %p78 = scmp.eq.s32.totalorder %s10, 1
    %p79 = por %p77, %p78
    %p80 = scmp.ne.s32.totalorder %s72, %s75
    %p81 = scmp.eq.s32.totalorder %s10, 0
    %p82 = por %p80, %p81
    %p83 = scmp.ne.s32.totalorder %s72, %s75
    %p84 = scmp.eq.s32.totalorder %s15, 1
    %p85 = por %p83, %p84
    %p86 = scmp.ne.s32.totalorder %s75, %s76
    %p87 = scmp.eq.s32.totalorder %s15, 0
    %p88 = por %p86, %p87
    %p89 = scmp.ne.s32.totalorder %s75, %s76
    %p90 = scmp.eq.s32.totalorder %s16, 1
    %p91 = por %p89, %p90
    %p93 = scmp.ne.s32.totalorder %s76, %s92
    %p94 = scmp.eq.s32.totalorder %s16, 0
    %p95 = por %p93, %p94
    %s97 = sadd.s32 %s96, 1
    %p100 = scmp.eq.s32.totalorder %s10, 1
    %p101 = scmp.ne.s32.totalorder %s96, %s98
    %p102 = scmp.eq.s32.totalorder %s10, 0
    %p103 = por %p101, %p102
    %p104 = scmp.ne.s32.totalorder %s96, %s98
    %p105 = scmp.eq.s32.totalorder %s15, 1
    %p106 = por %p104, %p105
    %p107 = scmp.ne.s32.totalorder %s98, %s99
    %p108 = scmp.eq.s32.totalorder %s15, 0
    %p109 = por %p107, %p108
    %p110 = scmp.ne.s32.totalorder %s98, %s99
    %p111 = scmp.eq.s32.totalorder %s16, 1
    %p112 = por %p110, %p111
    %p114 = scmp.ne.s32.totalorder %s99, %s113
    %p115 = scmp.eq.s32.totalorder %s16, 0
    %p116 = por %p114, %p115
    %s117 = ssub.s32 %s10, %s17
    %p118 = scmp.eq.s32.totalorder %s117, 0
    %s120 = sadd.s32 %s119, 1
    %s121 = scalar_select %p118, %s119, %s120
    %p124 = pneg %p118
    %p125 = scmp.eq.s32.totalorder %s10, 1
    %p126 = por %p124, %p125
    %p127 = scmp.ne.s32.totalorder %s119, %s122
    %p128 = scmp.eq.s32.totalorder %s10, 0
    %p129 = por %p127, %p128
    %p130 = scmp.ne.s32.totalorder %s119, %s122
    %p131 = scmp.eq.s32.totalorder %s15, 1
    %p132 = por %p130, %p131
    %p133 = scmp.ne.s32.totalorder %s122, %s123
    %p134 = scmp.eq.s32.totalorder %s15, 0
    %p135 = por %p133, %p134
    %p136 = scmp.ne.s32.totalorder %s122, %s123
    %p137 = scmp.eq.s32.totalorder %s16, 1
    %p138 = por %p136, %p137
    %p140 = scmp.ne.s32.totalorder %s123, %s139
    %p141 = scmp.eq.s32.totalorder %s16, 0
    %p142 = por %p140, %p141
    %p143 = scmp.le.s32.totalorder 1, %s10
    %p144 = scmp.lt.s32.totalorder %s10, 3
    %p145 = pnand %p143, %p144
    %p146 = pneg %p145
    // Predicated region
    $region9: #{model_forward.44} parent=5 // pred_check
      _
    $region10: #{model_forward.44} parent=5 // pred_check_branch
      %148 = sbr.rel (%p145) target = $region12
    $region11: #{model_forward.44} parent=5 // pred_region
      %s149 = ssub.s32 %s10, 1
      // Predicated region
      $region13: #{model_forward.44} parent=11 // pred_check
        %p150 = pneg %p109
      $region14: #{model_forward.44} parent=11 // pred_check_branch
        %152 = sbr.rel (%p150) target = $region16
      $region15: #{model_forward.44} parent=11 // pred_region
        _
      $region16: #{model_forward.44} parent=11 // pred_fallthru
        _
    $region12: #{model_forward.44} parent=5 // pred_fallthru
      _
    %p153 = scmp.lt.s32.totalorder %s10, 2
    // Predicated region
    $region17: #{model_forward.44} parent=5 // pred_check
      %p154 = pneg %p153
    $region18: #{model_forward.44} parent=5 // pred_check_branch
      %156 = sbr.rel (%p154) target = $region20
    $region19: #{model_forward.44} parent=5 // pred_region
      // Predicated region
      $region21: #{model_forward.44} parent=19 // pred_check
        %p157 = pneg %p30
      $region22: #{model_forward.44} parent=19 // pred_check_branch
        %159 = sbr.rel (%p157) target = $region24
      $region23: #{model_forward.44} parent=19 // pred_region
        %p160 = scmp.lt.s32.totalorder %s10, 1
        %s161 = scalar_select %p160, %s10, 1
        %s162 = smul.addr %s161, 2
        %s163 = smul.addr %s162, 8
        %s164 = scalar_lea.vmem %s0, %s163
      $region24: #{model_forward.44} parent=19 // pred_fallthru
        _
      // Predicated region
      $region25: #{model_forward.44} parent=19 // pred_check
        %p165 = pneg %p56
      $region26: #{model_forward.44} parent=19 // pred_check_branch
        %167 = sbr.rel (%p165) target = $region28
      $region27: #{model_forward.44} parent=19 // pred_region
        %p168 = scmp.lt.s32.totalorder %s10, 1
        %s169 = scalar_select %p168, %s10, 1
        %s170 = smul.addr %s169, 2
        %s171 = smul.addr %s170, 8
        %s172 = scalar_lea.vmem %s1, %s171
      $region28: #{model_forward.44} parent=19 // pred_fallthru
        _
      // Predicated region
      $region29: #{model_forward.44} parent=19 // pred_check
        %p173 = pneg %p82
      $region30: #{model_forward.44} parent=19 // pred_check_branch
        %175 = sbr.rel (%p173) target = $region32
      $region31: #{model_forward.44} parent=19 // pred_region
        %p176 = scmp.lt.s32.totalorder %s10, 1
        %s177 = scalar_select %p176, %s10, 1
        %s178 = smul.addr %s177, 2
        %s179 = smul.addr %s178, 8
        %s180 = scalar_lea.vmem %s2, %s179
      $region32: #{model_forward.44} parent=19 // pred_fallthru
        _
    $region20: #{model_forward.44} parent=5 // pred_fallthru
      _
    %p181 = scmp.le.s32.totalorder 1, %s10
    %p182 = scmp.lt.s32.totalorder %s10, 3
    %p183 = pnand %p181, %p182
    %p184 = pneg %p183
    // Predicated region
    $region33: #{model_forward.44} parent=5 // pred_check
      _
    $region34: #{model_forward.44} parent=5 // pred_check_branch
      %186 = sbr.rel (%p183) target = $region36
    $region35: #{model_forward.44} parent=5 // pred_region
      %s187 = ssub.s32 %s10, 1
      %p188 = scmp.lt.s32.totalorder %s15, 1
      %s189 = scalar_select %p188, %s15, 1
      %s190 = smul.addr %s189, 2
      %s191 = smul.addr %s190, 8
      %s192 = scalar_lea.vmem %s0, %s191
      %p193 = pneg %p36
      %p194 = pneg %p33
      %p195 = scmp.lt.s32.totalorder %s15, 1
      %s196 = scalar_select %p195, %s15, 1
      %s197 = smul.addr %s196, 2
      %s198 = smul.addr %s197, 8
      %s199 = scalar_lea.vmem %s1, %s198
      %p200 = pneg %p62
      %p201 = pneg %p59
      %p202 = scmp.lt.s32.totalorder %s15, 1
      %s203 = scalar_select %p202, %s15, 1
      %s204 = smul.addr %s203, 2
      %s205 = smul.addr %s204, 8
      %s206 = scalar_lea.vmem %s2, %s205
      %p207 = pneg %p88
      %p208 = pneg %p85
      %p209 = pneg %p109
      %p210 = pneg %p106
      %p211 = pneg %p135
      %p212 = pneg %p132
      %p213 = scmp.lt.s32.totalorder %s15, 1
      %s214 = scalar_select %p213, %s15, 1
      %s215 = smul.addr %s214, 2
      %s216 = smul.addr %s215, 8
      %s217 = scalar_lea.vmem %s4, %s216
      %p218 = scmp.lt.s32.totalorder %s15, 1
      %s219 = scalar_select %p218, %s15, 1
      %s220 = smul.addr %s219, 2
      %s221 = smul.addr %s220, 8
      %s222 = scalar_lea.vmem %s0, %s221
      %p223 = scmp.lt.s32.totalorder %s15, 1
      %s224 = scalar_select %p223, %s15, 1
      %s225 = smul.addr %s224, 2
      %s226 = smul.addr %s225, 8
      %s227 = scalar_lea.vmem %s1, %s226
      %p228 = scmp.lt.s32.totalorder %s15, 1
      %s229 = scalar_select %p228, %s15, 1
      %s230 = smul.addr %s229, 2
      %s231 = smul.addr %s230, 8
      %s232 = scalar_lea.vmem %s2, %s231
      %p233 = scmp.lt.s32.totalorder %s15, 1
      %s234 = scalar_select %p233, %s15, 1
      %s235 = smul.addr %s234, 2
      %s236 = smul.addr %s235, 8
      %s237 = scalar_lea.vmem %s4, %s236
      %v239 = vld [vmem:[%s222] sm:$0xff]
      %v240 = vld [vmem:[%s222 + $0x8] sm:$0xff]
      %v241 = vld [vmem:[%s227] sm:$0xff]
      %v242 = vld [vmem:[%s227 + $0x8] sm:$0xff]
      %v243 = vadd.f32 %v239, %v241
      %v244 = vadd.f32 %v240, %v242
      %v245 = vld [vmem:[%s232] sm:$0xff]
      %v246 = vld [vmem:[%s232 + $0x8] sm:$0xff]
      %v247 = vadd.f32 %v243, %v245
      %v248 = vadd.f32 %v244, %v246
      %v249 = vpack.c.bf16 %v247, %v247
      %v250 = vpack.c.bf16 %v248, %v248
      %v251 = vld [vmem:[%s3] sm:$0xff]
      %v252 = vld [vmem:[%s3 + $0x8] sm:$0xff]
      %v253 = vld [vmem:[%s3 + $0x10] sm:$0xff]
      %v254 = vld [vmem:[%s3 + $0x18] sm:$0xff]
      %v255 = vld [vmem:[%s3 + $0x20] sm:$0xff]
      %v256 = vld [vmem:[%s3 + $0x28] sm:$0xff]
      %v257 = vld [vmem:[%s3 + $0x30] sm:$0xff]
      %v258 = vld [vmem:[%s3 + $0x38] sm:$0xff]
      %v259 = vld [vmem:[%s3 + $0x40] sm:$0xff]
      %v260 = vld [vmem:[%s3 + $0x48] sm:$0xff]
      %v261 = vld [vmem:[%s3 + $0x50] sm:$0xff]
      %v262 = vld [vmem:[%s3 + $0x58] sm:$0xff]
      %v263 = vpack.c.bf16 %v251, %v251
      %v264 = vpack.c.bf16 %v252, %v252
      %v265 = vpack.c.bf16 %v253, %v253
      %v266 = vpack.c.bf16 %v254, %v254
      %v267 = vpack.c.bf16 %v255, %v255
      %v268 = vpack.c.bf16 %v256, %v256
      %v269 = vpack.c.bf16 %v257, %v257
      %v270 = vpack.c.bf16 %v258, %v258
      %v271 = vpack.c.bf16 %v259, %v259
      %v272 = vpack.c.bf16 %v260, %v260
      %v273 = vpack.c.bf16 %v261, %v261
      %v274 = vpack.c.bf16 %v262, %v262
      %v276 = vunpack.c.l.b16 %v250
      %v277 = vpack.c.b16 %v276, %v276
      %v279 = vshrl.u32 %v277, 16
      %v281 = vrot.slane %v279, 3
      %v284 = vunpack.c.l.b16 %v249
      %v285 = vpack.c.b16 %v276, %v284
      %v287 = vshrl.u32 %v285, 16
      %v289 = vrot.slane %v287, 7
      %v290 = vshll.u32 %v285, 16
      %v292 = vor.u32 %v289, %v290
      %vm294 = vcmask 1040384
      %vm295 = vsmask.f32 256
      %vm296 = vmand %vm294, %vm295
      %v297 = vsel %vm296, %v281, %v292
      %v298 = vrot.slane %v290, 1
      %v299 = vor.u32 %v287, %v298
      %v301 = vpack.c.b16 %v284, %v284
      %v303 = vshll.u32 %v301, 16
      %v305 = vrot.slane %v303, 1
      %vm307 = vcmask 1047552
      %vm308 = vsmask.f32 7424
      %vm309 = vmand %vm307, %vm308
      %v310 = vsel %vm309, %v299, %v305
      %v315 = vunpack.c.l.b16 %v267
      %v316 = vunpack.c.l.b16 %v268
      %v317 = vunpack.c.l.b16 %v269
      %v318 = vunpack.c.l.b16 %v270
      %v319 = vpack.c.b16 %v316, %v315
      %v320 = vpack.c.b16 %v318, %v317
      %vm323 = vcmask 261120
      %v324 = vsel %vm323, %v285, 0
      %326 = vmatpush.bf16.msra.mxu0 0
      %327 = vmatpush.bf16.msra.mxu0 0
      %328 = vmatpush.bf16.msra.mxu0 0
      %329 = vmatpush.bf16.msra.mxu0 0
      %330 = vmatpush.bf16.msra.mxu0 0
      %331 = vmatpush.bf16.msra.mxu0 0
      %332 = vmatpush.bf16.msra.mxu0 %v320
      %333 = vmatpush.bf16.msra.mxu0 %v319
      %334 = vmatmul.bf16.gmra.mxu0 %v324
      %v335 = vpop.f32.mrf.mxu0
      %v336 = vadd.f32 0.0, %v335
      %v337 = vpop.f32.mrf.mxu0
      %v338 = vadd.f32 0.0, %v337
      %339 = vdwg.mxu0
      %v344 = vunpack.c.l.b16 %v263
      %v345 = vunpack.c.l.b16 %v264
      %v346 = vunpack.c.l.b16 %v265
      %v347 = vunpack.c.l.b16 %v266
      %v348 = vpack.c.b16 %v345, %v344
      %v349 = vpack.c.b16 %v347, %v346
      %v353 = vsel %vm323, %v297, 0
      %355 = vmatpush.bf16.msra.mxu0 0
      %356 = vmatpush.bf16.msra.mxu0 0
      %357 = vmatpush.bf16.msra.mxu0 0
      %358 = vmatpush.bf16.msra.mxu0 0
      %359 = vmatpush.bf16.msra.mxu0 0
      %360 = vmatpush.bf16.msra.mxu0 0
      %361 = vmatpush.bf16.msra.mxu0 %v349
      %362 = vmatpush.bf16.msra.mxu0 %v348
      %363 = vmatmul.bf16.gmra.mxu0 %v353
      %v364 = vpop.f32.mrf.mxu0
      %v365 = vadd.f32 %v336, %v364
      %v366 = vpop.f32.mrf.mxu0
      %v367 = vadd.f32 %v338, %v366
      %368 = vdwg.mxu0
      %v373 = vunpack.c.l.b16 %v271
      %v374 = vunpack.c.l.b16 %v272
      %v375 = vunpack.c.l.b16 %v273
      %v376 = vunpack.c.l.b16 %v274
      %v377 = vpack.c.b16 %v374, %v373
      %v378 = vpack.c.b16 %v376, %v375
      %v382 = vsel %vm323, %v310, 0
      %384 = vmatpush.bf16.msra.mxu0 0
      %385 = vmatpush.bf16.msra.mxu0 0
      %386 = vmatpush.bf16.msra.mxu0 0
      %387 = vmatpush.bf16.msra.mxu0 0
      %388 = vmatpush.bf16.msra.mxu0 0
      %389 = vmatpush.bf16.msra.mxu0 0
      %390 = vmatpush.bf16.msra.mxu0 %v378
      %391 = vmatpush.bf16.msra.mxu0 %v377
      %392 = vmatmul.bf16.gmra.mxu0 %v382
      %v393 = vpop.f32.mrf.mxu0
      %v394 = vadd.f32 0.0, %v393
      %v395 = vpop.f32.mrf.mxu0
      %v396 = vadd.f32 0.0, %v395
      %397 = vdwg.mxu0
      %v398 = vadd.f32 %v365, %v394
      %v399 = vadd.f32 %v367, %v396
      %vm400 = vcmask 31744
      %401 = vst.msk [vmem:[%s237] sm:$0xff] %vm400, %v398
      %402 = vst.msk [vmem:[%s237 + $0x8] sm:$0xff] %vm400, %v399
      %p403 = scmp.lt.s32.totalorder %s15, 1
      %s404 = scalar_select %p403, %s15, 1
      %s405 = smul.addr %s404, 2
      %s406 = smul.addr %s405, 8
      %s407 = scalar_lea.vmem %s4, %s406
      // Predicated region
      $region37: #{model_forward.44} parent=35 // pred_check
        %p408 = pneg %p132
      $region38: #{model_forward.44} parent=35 // pred_check_branch
        %410 = sbr.rel (%p408) target = $region40
      $region39: #{model_forward.44} parent=35 // pred_region
        _
      $region40: #{model_forward.44} parent=35 // pred_fallthru
        _
    $region36: #{model_forward.44} parent=5 // pred_fallthru
      _
    %p411 = scmp.le.s32.totalorder 2, %s10
    // Predicated region
    $region41: #{model_forward.44} parent=5 // pred_check
      %p412 = pneg %p411
    $region42: #{model_forward.44} parent=5 // pred_check_branch
      %414 = sbr.rel (%p412) target = $region44
    $region43: #{model_forward.44} parent=5 // pred_region
      %s415 = ssub.s32 %s10, 2
      // Predicated region
      $region45: #{model_forward.44} parent=43 // pred_check
        %p416 = pneg %p138
      $region46: #{model_forward.44} parent=43 // pred_check_branch
        %418 = sbr.rel (%p416) target = $region48
      $region47: #{model_forward.44} parent=43 // pred_region
        %p419 = scmp.lt.s32.totalorder %s16, 1
        %s420 = scalar_select %p419, %s16, 1
        %s421 = smul.addr %s420, 2
        %s422 = smul.addr %s421, 8
        %s423 = scalar_lea.vmem %s4, %s422
      $region48: #{model_forward.44} parent=43 // pred_fallthru
        _
    $region44: #{model_forward.44} parent=5 // pred_fallthru
      _
  $region6: #{model_forward.44} parent=0 // loop_footer
    %s14 = sadd.s32 1, %s10
  $region7: #{model_forward.44} parent=0 // loop_footer_branch
    %9 = sbr.rel target = $region3
  $region8: #{model_forward.44} parent=0 // loop_exit
    _

</llo_original>
